<compile_context>
chip_gen: v6e
topology: v6e:2x2x1
jax: 0.10.0
libtpu: 0.0.40
codegen_flags: <defaults>
</compile_context>

<pallas_src>
import jax
import jax.numpy as jnp
from jax.experimental import pallas as pl
from jax.experimental.pallas import tpu as pltpu


def _round_up(x, m):
    return ((x + m - 1) // m) * m


def _pick_batch_tile(b, cap=8):
    """Largest tile <= cap dividing b while keeping >=2 grid steps (v7x megacore)."""
    for t in range(min(b, cap), 0, -1):
        if b % t == 0 and b // t >= 2:
            return t
    return b


def _pick_group_tile(n):
    """Multiple-of-8 tile dividing n with >=2 grid steps, else the whole n in one step."""
    for t in (128, 64, 32, 16, 8):
        if n % t == 0 and n // t >= 2:
            return t
    return n


# ---------------------------------------------------------------------------
# Kernel 1: fused conv3x3 -> ReLU -> global average pool (TB images per step)
# ---------------------------------------------------------------------------
def _make_conv_relu_avgpool_kernel(H, W, KH, chunk_h):
    HW = H * W
    CHUNK = chunk_h * W          # spatial rows processed per register-resident chunk

    def kernel(x_ref, w_ref, o_ref):
        # x_ref: (TB, (H+KH-1)*W, KW*Cin) bf16  pre-flattened, W-taps on lanes
        # w_ref: (KH, KW*Cin, CF_PAD)     bf16  conv weight, row-tap major (resident)
        # o_ref: (1, TB, CF_PAD)          f32   ReLU + avg-pooled features
        tb = x_ref.shape[0]
        cf = w_ref.shape[2]
        rows = []
        for b in range(tb):                              # static unroll over images
            run = jnp.zeros((1, cf), dtype=jnp.float32)  # running spatial sum
            for c in range(HW // CHUNK):                 # spatial chunks (bounded vregs)
                base = c * CHUNK
                acc = None
                for dh in range(KH):                     # row taps: shifted sublane slices
                    xt = x_ref[b, dh * W + base: dh * W + base + CHUNK, :]
                    part = jnp.dot(xt, w_ref[dh],
                                   preferred_element_type=jnp.float32)
                    acc = part if acc is None else acc + part
                run = run + jnp.sum(jnp.maximum(acc, 0.0), axis=0, keepdims=True)
            rows.append(run)
        # Single lane-dense store of the whole (TB, CF_PAD) tile.
        o_ref[0] = jnp.concatenate(rows, axis=0) * (1.0 / HW)

    return kernel


# ---------------------------------------------------------------------------
# Kernel 2: view max-pool + fc classifier on pooled features
# ---------------------------------------------------------------------------
def _view_pool_fc_kernel(p_ref, w_ref, b_ref, o_ref):
    # p_ref: (TN, V, CF_PAD)  f32   pooled per-view features
    # w_ref: (CF_PAD, C_PAD)  bf16  fc weight (transposed, zero-padded)
    # b_ref: (1, C_PAD)       f32   fc bias (zero-padded)
    # o_ref: (TN, C_PAD)      f32   logits (lane-dense, padded classes = 0)
    pooled = jnp.max(p_ref[...], axis=1).astype(jnp.bfloat16)   # view pooling
    o_ref[...] = (jnp.dot(pooled, w_ref[...],
                          preferred_element_type=jnp.float32) + b_ref[...])


# ---------------------------------------------------------------------------
# Full MVCNN forward
# ---------------------------------------------------------------------------
def mvcnn_forward(x, params, *, num_views):
    """x: (B, Cin, H, W) with B = N * num_views. Returns (N, num_classes) logits."""
    B, Cin, H, W = x.shape
    assert B % num_views == 0
    N = B // num_views
    Cf, Cin_w, KH, KW = params["w_conv"].shape
    assert Cin_w == Cin and KH == 3 and KW == 3
    num_classes = params["w_fc"].shape[0]

    CF_PAD = _round_up(Cf, 128)          # lane-dense conv/fc operand width
    C_PAD = _round_up(num_classes, 128)  # lane-dense logits
    ROWS_PAD = (H + KH - 1) * W
    K = KW * Cin

    # ---- glue: NHWC, zero pad, W-direction tap lane-concat, pre-flatten, bf16 ----
    # TODO(synk): on v5e move this W-tap expansion in-kernel (3x bf16 HBM read amp).
    x_nhwc = jnp.transpose(x, (0, 2, 3, 1))                              # (B, H, W, Cin)
    xp = jnp.pad(x_nhwc, ((0, 0), (1, 1), (1, 1), (0, 0)))               # (B, H+2, W+2, Cin)
    xw = jnp.concatenate([xp[:, :, dw:dw + W, :] for dw in range(KW)],
                         axis=-1)                                        # (B, H+2, W, KW*Cin)
    xw = xw.reshape(B, ROWS_PAD, K).astype(jnp.bfloat16)                 # pre-flattened

    # conv weight -> (KH, KW*Cin, CF_PAD): [dh, dw*Cin+cin, cf] = w_conv[cf, cin, dh, dw]
    w_r = jnp.transpose(params["w_conv"], (2, 3, 1, 0)).reshape(KH, K, Cf)
    w_r = jnp.pad(w_r, ((0, 0), (0, 0), (0, CF_PAD - Cf))).astype(jnp.bfloat16)

    TB = _pick_batch_tile(B)
    NB = B // TB
    chunk_h = max(1, min(H, 64 // max(W, 1)))   # ~64 spatial rows per register chunk
    while H % chunk_h:
        chunk_h -= 1

    # ---- Pallas kernel 1: conv + ReLU + global avg pool, TB images per grid step ----
    pooled = pl.pallas_call(
        _make_conv_relu_avgpool_kernel(H, W, KH, chunk_h),
        out_shape=jax.ShapeDtypeStruct((NB, TB, CF_PAD), jnp.float32),
        grid=(NB,),
        in_specs=[
            pl.BlockSpec((TB, ROWS_PAD, K), lambda i: (i, 0, 0)),
            pl.BlockSpec((KH, K, CF_PAD), lambda i: (0, 0, 0)),   # resident weight
        ],
        out_specs=pl.BlockSpec((1, TB, CF_PAD), lambda i: (i, 0, 0)),
        compiler_params=pltpu.CompilerParams(
            dimension_semantics=("parallel",)),
    )(xw, w_r)

    # (NB, TB, CF_PAD) -> (N, V, CF_PAD): leading-dim reshape only (free).
    feats = pooled.reshape(N, num_views, CF_PAD)

    # fc weight/bias, transposed + zero-padded; weight in bf16 (f32 accumulation).
    w_fc = jnp.pad(params["w_fc"].T,
                   ((0, CF_PAD - Cf), (0, C_PAD - num_classes))).astype(jnp.bfloat16)
    b_fc = jnp.pad(params["b_fc"], (0, C_PAD - num_classes)).reshape(1, C_PAD)

    # ---- Pallas kernel 2: view max-pool + fc ----
    TN = _pick_group_tile(N)
    logits = pl.pallas_call(
        _view_pool_fc_kernel,
        out_shape=jax.ShapeDtypeStruct((N, C_PAD), jnp.float32),
        grid=(N // TN,),
        in_specs=[
            pl.BlockSpec((TN, num_views, CF_PAD), lambda i: (i, 0, 0)),
            pl.BlockSpec((CF_PAD, C_PAD), lambda i: (0, 0)),
            pl.BlockSpec((1, C_PAD), lambda i: (0, 0)),
        ],
        out_specs=pl.BlockSpec((TN, C_PAD), lambda i: (i, 0)),
        compiler_params=pltpu.CompilerParams(
            dimension_semantics=("parallel",)),
    )(feats, w_fc, b_fc)

    return logits[:, :num_classes]


# ---------------------------------------------------------------------------
# Pure-JAX reference (numerics check only)
# ---------------------------------------------------------------------------
def mvcnn_reference(x, params, num_views):
    B = x.shape[0]
    N = B // num_views
    conv = jax.lax.conv_general_dilated(
        x, params["w_conv"], window_strides=(1, 1), padding="SAME",
        dimension_numbers=("NCHW", "OIHW", "NCHW"))
    f = jnp.maximum(conv, 0.0)
    feat = jnp.mean(f, axis=(2, 3))                       # (B, Cf)
    pooled = jnp.max(feat.reshape(N, num_views, -1), axis=1)
    return pooled @ params["w_fc"].T + params["b_fc"]


if __name__ == "__main__":
    num_views = 4
    num_groups = 2                  # N
    batch = num_groups * num_views  # 8
    cin, h, w = 3, 16, 16
    cf = 8                          # trunk feature channels
    num_classes = 10

    key = jax.random.PRNGKey(0)
    kx, kw1, kw2, kb2 = jax.random.split(key, 4)

    x = jax.random.normal(kx, (batch, cin, h, w), dtype=jnp.float32)
    params = {
        "w_conv": 0.1 * jax.random.normal(kw1, (cf, cin, 3, 3), dtype=jnp.float32),
        "w_fc":   0.1 * jax.random.normal(kw2, (num_classes, cf), dtype=jnp.float32),
        "b_fc":   0.1 * jax.random.normal(kb2, (num_classes,), dtype=jnp.float32),
    }

    fwd = jax.jit(lambda xx: mvcnn_forward(xx, params, num_views=num_views))
    out = jax.block_until_ready(fwd(x))
    assert out.shape == (num_groups, num_classes)

    ref = jax.block_until_ready(mvcnn_reference(x, params, num_views))
    err = float(jnp.max(jnp.abs(out - ref)))
    assert err < 5e-2, f"numerical mismatch vs reference: {err}"
    print("KERNEL_OK")
</pallas_src>

<mosaic_0001>
module attributes {stable_mosaic.version = 11 : i64} {
  func.func @kernel(%arg0: i32, %arg1: memref<4x288x9xbf16, #tpu.memory_space<vmem>>, %arg2: memref<3x9x128xbf16, #tpu.memory_space<vmem>>, %arg3: memref<1x4x128xf32, #tpu.memory_space<vmem>>) attributes {dimension_semantics = [#tpu.dimension_semantics<parallel>], iteration_bounds = array<i64: 2>, scalar_prefetch = 0 : i64, scratch_operands = 0 : i64, tpu.core_type = #tpu.core_type<tc>, window_params = [{transform_indices = @transform_0, window_bounds = array<i64: 4, 288, 9>}, {pipeline_mode = #tpu.pipeline_mode<synchronous>, transform_indices = @transform_1, window_bounds = array<i64: 3, 9, 128>}, {transform_indices = @transform_2, window_bounds = array<i64: 1, 4, 128>}]} {
    %cst = arith.constant 0.000000e+00 : f32
    %0 = vector.broadcast %cst : f32 to vector<1x128xf32>
    %c0 = arith.constant 0 : index
    %c0_0 = arith.constant 0 : index
    %c0_1 = arith.constant 0 : index
    %1 = vector.load %arg1[%c0, %c0_0, %c0_1] : memref<4x288x9xbf16, #tpu.memory_space<vmem>>, vector<1x64x9xbf16>
    %2 = vector.shape_cast %1 : vector<1x64x9xbf16> to vector<64x9xbf16>
    %c0_2 = arith.constant 0 : index
    %c0_3 = arith.constant 0 : index
    %c0_4 = arith.constant 0 : index
    %3 = vector.load %arg2[%c0_2, %c0_3, %c0_4] : memref<3x9x128xbf16, #tpu.memory_space<vmem>>, vector<1x9x128xbf16>
    %4 = vector.shape_cast %3 : vector<1x9x128xbf16> to vector<9x128xbf16>
    %cst_5 = arith.constant dense<0.000000e+00> : vector<64x128xf32>
    %5 = tpu.matmul %2, %4, %cst_5 {dimension_numbers = #tpu.dot_dimension_numbers<[1], [0], [0], [1], [0, 0, 1, 1], [], []>} : vector<64x9xbf16>, vector<9x128xbf16>, vector<64x128xf32> -> vector<64x128xf32>
    %c0_6 = arith.constant 0 : index
    %c16 = arith.constant 16 : index
    %c0_7 = arith.constant 0 : index
    %6 = vector.load %arg1[%c0_6, %c16, %c0_7] : memref<4x288x9xbf16, #tpu.memory_space<vmem>>, vector<1x64x9xbf16>
    %7 = vector.shape_cast %6 : vector<1x64x9xbf16> to vector<64x9xbf16>
    %c1 = arith.constant 1 : index
    %c0_8 = arith.constant 0 : index
    %c0_9 = arith.constant 0 : index
    %8 = vector.load %arg2[%c1, %c0_8, %c0_9] : memref<3x9x128xbf16, #tpu.memory_space<vmem>>, vector<1x9x128xbf16>
    %9 = vector.shape_cast %8 : vector<1x9x128xbf16> to vector<9x128xbf16>
    %cst_10 = arith.constant dense<0.000000e+00> : vector<64x128xf32>
    %10 = tpu.matmul %7, %9, %cst_10 {dimension_numbers = #tpu.dot_dimension_numbers<[1], [0], [0], [1], [0, 0, 1, 1], [], []>} : vector<64x9xbf16>, vector<9x128xbf16>, vector<64x128xf32> -> vector<64x128xf32>
    %11 = arith.addf %5, %10 : vector<64x128xf32>
    %c0_11 = arith.constant 0 : index
    %c32 = arith.constant 32 : index
    %c0_12 = arith.constant 0 : index
    %12 = vector.load %arg1[%c0_11, %c32, %c0_12] : memref<4x288x9xbf16, #tpu.memory_space<vmem>>, vector<1x64x9xbf16>
    %13 = vector.shape_cast %12 : vector<1x64x9xbf16> to vector<64x9xbf16>
    %c2 = arith.constant 2 : index
    %c0_13 = arith.constant 0 : index
    %c0_14 = arith.constant 0 : index
    %14 = vector.load %arg2[%c2, %c0_13, %c0_14] : memref<3x9x128xbf16, #tpu.memory_space<vmem>>, vector<1x9x128xbf16>
    %15 = vector.shape_cast %14 : vector<1x9x128xbf16> to vector<9x128xbf16>
    %cst_15 = arith.constant dense<0.000000e+00> : vector<64x128xf32>
    %16 = tpu.matmul %13, %15, %cst_15 {dimension_numbers = #tpu.dot_dimension_numbers<[1], [0], [0], [1], [0, 0, 1, 1], [], []>} : vector<64x9xbf16>, vector<9x128xbf16>, vector<64x128xf32> -> vector<64x128xf32>
    %17 = arith.addf %11, %16 : vector<64x128xf32>
    %cst_16 = arith.constant 0.000000e+00 : f32
    %18 = vector.broadcast %cst_16 : f32 to vector<64x128xf32>
    %19 = arith.maximumf %17, %18 : vector<64x128xf32>
    %cst_17 = arith.constant dense<0.000000e+00> : vector<128xf32>
    %20 = vector.multi_reduction <add>, %19, %cst_17 [0] : vector<64x128xf32> to vector<128xf32>
    %21 = vector.shape_cast %20 : vector<128xf32> to vector<1x128xf32>
    %22 = arith.addf %0, %21 : vector<1x128xf32>
    %c0_18 = arith.constant 0 : index
    %c64 = arith.constant 64 : index
    %c0_19 = arith.constant 0 : index
    %23 = vector.load %arg1[%c0_18, %c64, %c0_19] : memref<4x288x9xbf16, #tpu.memory_space<vmem>>, vector<1x64x9xbf16>
    %24 = vector.shape_cast %23 : vector<1x64x9xbf16> to vector<64x9xbf16>
    %c0_20 = arith.constant 0 : index
    %c0_21 = arith.constant 0 : index
    %c0_22 = arith.constant 0 : index
    %25 = vector.load %arg2[%c0_20, %c0_21, %c0_22] : memref<3x9x128xbf16, #tpu.memory_space<vmem>>, vector<1x9x128xbf16>
    %26 = vector.shape_cast %25 : vector<1x9x128xbf16> to vector<9x128xbf16>
    %cst_23 = arith.constant dense<0.000000e+00> : vector<64x128xf32>
    %27 = tpu.matmul %24, %26, %cst_23 {dimension_numbers = #tpu.dot_dimension_numbers<[1], [0], [0], [1], [0, 0, 1, 1], [], []>} : vector<64x9xbf16>, vector<9x128xbf16>, vector<64x128xf32> -> vector<64x128xf32>
    %c0_24 = arith.constant 0 : index
    %c80 = arith.constant 80 : index
    %c0_25 = arith.constant 0 : index
    %28 = vector.load %arg1[%c0_24, %c80, %c0_25] : memref<4x288x9xbf16, #tpu.memory_space<vmem>>, vector<1x64x9xbf16>
    %29 = vector.shape_cast %28 : vector<1x64x9xbf16> to vector<64x9xbf16>
    %c1_26 = arith.constant 1 : index
    %c0_27 = arith.constant 0 : index
    %c0_28 = arith.constant 0 : index
    %30 = vector.load %arg2[%c1_26, %c0_27, %c0_28] : memref<3x9x128xbf16, #tpu.memory_space<vmem>>, vector<1x9x128xbf16>
    %31 = vector.shape_cast %30 : vector<1x9x128xbf16> to vector<9x128xbf16>
    %cst_29 = arith.constant dense<0.000000e+00> : vector<64x128xf32>
    %32 = tpu.matmul %29, %31, %cst_29 {dimension_numbers = #tpu.dot_dimension_numbers<[1], [0], [0], [1], [0, 0, 1, 1], [], []>} : vector<64x9xbf16>, vector<9x128xbf16>, vector<64x128xf32> -> vector<64x128xf32>
    %33 = arith.addf %27, %32 : vector<64x128xf32>
    %c0_30 = arith.constant 0 : index
    %c96 = arith.constant 96 : index
    %c0_31 = arith.constant 0 : index
    %34 = vector.load %arg1[%c0_30, %c96, %c0_31] : memref<4x288x9xbf16, #tpu.memory_space<vmem>>, vector<1x64x9xbf16>
    %35 = vector.shape_cast %34 : vector<1x64x9xbf16> to vector<64x9xbf16>
    %c2_32 = arith.constant 2 : index
    %c0_33 = arith.constant 0 : index
    %c0_34 = arith.constant 0 : index
    %36 = vector.load %arg2[%c2_32, %c0_33, %c0_34] : memref<3x9x128xbf16, #tpu.memory_space<vmem>>, vector<1x9x128xbf16>
    %37 = vector.shape_cast %36 : vector<1x9x128xbf16> to vector<9x128xbf16>
    %cst_35 = arith.constant dense<0.000000e+00> : vector<64x128xf32>
    %38 = tpu.matmul %35, %37, %cst_35 {dimension_numbers = #tpu.dot_dimension_numbers<[1], [0], [0], [1], [0, 0, 1, 1], [], []>} : vector<64x9xbf16>, vector<9x128xbf16>, vector<64x128xf32> -> vector<64x128xf32>
    %39 = arith.addf %33, %38 : vector<64x128xf32>
    %cst_36 = arith.constant 0.000000e+00 : f32
    %40 = vector.broadcast %cst_36 : f32 to vector<64x128xf32>
    %41 = arith.maximumf %39, %40 : vector<64x128xf32>
    %cst_37 = arith.constant dense<0.000000e+00> : vector<128xf32>
    %42 = vector.multi_reduction <add>, %41, %cst_37 [0] : vector<64x128xf32> to vector<128xf32>
    %43 = vector.shape_cast %42 : vector<128xf32> to vector<1x128xf32>
    %44 = arith.addf %22, %43 : vector<1x128xf32>
    %c0_38 = arith.constant 0 : index
    %c128 = arith.constant 128 : index
    %c0_39 = arith.constant 0 : index
    %45 = vector.load %arg1[%c0_38, %c128, %c0_39] : memref<4x288x9xbf16, #tpu.memory_space<vmem>>, vector<1x64x9xbf16>
    %46 = vector.shape_cast %45 : vector<1x64x9xbf16> to vector<64x9xbf16>
    %c0_40 = arith.constant 0 : index
    %c0_41 = arith.constant 0 : index
    %c0_42 = arith.constant 0 : index
    %47 = vector.load %arg2[%c0_40, %c0_41, %c0_42] : memref<3x9x128xbf16, #tpu.memory_space<vmem>>, vector<1x9x128xbf16>
    %48 = vector.shape_cast %47 : vector<1x9x128xbf16> to vector<9x128xbf16>
    %cst_43 = arith.constant dense<0.000000e+00> : vector<64x128xf32>
    %49 = tpu.matmul %46, %48, %cst_43 {dimension_numbers = #tpu.dot_dimension_numbers<[1], [0], [0], [1], [0, 0, 1, 1], [], []>} : vector<64x9xbf16>, vector<9x128xbf16>, vector<64x128xf32> -> vector<64x128xf32>
    %c0_44 = arith.constant 0 : index
    %c144 = arith.constant 144 : index
    %c0_45 = arith.constant 0 : index
    %50 = vector.load %arg1[%c0_44, %c144, %c0_45] : memref<4x288x9xbf16, #tpu.memory_space<vmem>>, vector<1x64x9xbf16>
    %51 = vector.shape_cast %50 : vector<1x64x9xbf16> to vector<64x9xbf16>
    %c1_46 = arith.constant 1 : index
    %c0_47 = arith.constant 0 : index
    %c0_48 = arith.constant 0 : index
    %52 = vector.load %arg2[%c1_46, %c0_47, %c0_48] : memref<3x9x128xbf16, #tpu.memory_space<vmem>>, vector<1x9x128xbf16>
    %53 = vector.shape_cast %52 : vector<1x9x128xbf16> to vector<9x128xbf16>
    %cst_49 = arith.constant dense<0.000000e+00> : vector<64x128xf32>
    %54 = tpu.matmul %51, %53, %cst_49 {dimension_numbers = #tpu.dot_dimension_numbers<[1], [0], [0], [1], [0, 0, 1, 1], [], []>} : vector<64x9xbf16>, vector<9x128xbf16>, vector<64x128xf32> -> vector<64x128xf32>
    %55 = arith.addf %49, %54 : vector<64x128xf32>
    %c0_50 = arith.constant 0 : index
    %c160 = arith.constant 160 : index
    %c0_51 = arith.constant 0 : index
    %56 = vector.load %arg1[%c0_50, %c160, %c0_51] : memref<4x288x9xbf16, #tpu.memory_space<vmem>>, vector<1x64x9xbf16>
    %57 = vector.shape_cast %56 : vector<1x64x9xbf16> to vector<64x9xbf16>
    %c2_52 = arith.constant 2 : index
    %c0_53 = arith.constant 0 : index
    %c0_54 = arith.constant 0 : index
    %58 = vector.load %arg2[%c2_52, %c0_53, %c0_54] : memref<3x9x128xbf16, #tpu.memory_space<vmem>>, vector<1x9x128xbf16>
    %59 = vector.shape_cast %58 : vector<1x9x128xbf16> to vector<9x128xbf16>
    %cst_55 = arith.constant dense<0.000000e+00> : vector<64x128xf32>
    %60 = tpu.matmul %57, %59, %cst_55 {dimension_numbers = #tpu.dot_dimension_numbers<[1], [0], [0], [1], [0, 0, 1, 1], [], []>} : vector<64x9xbf16>, vector<9x128xbf16>, vector<64x128xf32> -> vector<64x128xf32>
    %61 = arith.addf %55, %60 : vector<64x128xf32>
    %cst_56 = arith.constant 0.000000e+00 : f32
    %62 = vector.broadcast %cst_56 : f32 to vector<64x128xf32>
    %63 = arith.maximumf %61, %62 : vector<64x128xf32>
    %cst_57 = arith.constant dense<0.000000e+00> : vector<128xf32>
    %64 = vector.multi_reduction <add>, %63, %cst_57 [0] : vector<64x128xf32> to vector<128xf32>
    %65 = vector.shape_cast %64 : vector<128xf32> to vector<1x128xf32>
    %66 = arith.addf %44, %65 : vector<1x128xf32>
    %c0_58 = arith.constant 0 : index
    %c192 = arith.constant 192 : index
    %c0_59 = arith.constant 0 : index
    %67 = vector.load %arg1[%c0_58, %c192, %c0_59] : memref<4x288x9xbf16, #tpu.memory_space<vmem>>, vector<1x64x9xbf16>
    %68 = vector.shape_cast %67 : vector<1x64x9xbf16> to vector<64x9xbf16>
    %c0_60 = arith.constant 0 : index
    %c0_61 = arith.constant 0 : index
    %c0_62 = arith.constant 0 : index
    %69 = vector.load %arg2[%c0_60, %c0_61, %c0_62] : memref<3x9x128xbf16, #tpu.memory_space<vmem>>, vector<1x9x128xbf16>
    %70 = vector.shape_cast %69 : vector<1x9x128xbf16> to vector<9x128xbf16>
    %cst_63 = arith.constant dense<0.000000e+00> : vector<64x128xf32>
    %71 = tpu.matmul %68, %70, %cst_63 {dimension_numbers = #tpu.dot_dimension_numbers<[1], [0], [0], [1], [0, 0, 1, 1], [], []>} : vector<64x9xbf16>, vector<9x128xbf16>, vector<64x128xf32> -> vector<64x128xf32>
    %c0_64 = arith.constant 0 : index
    %c208 = arith.constant 208 : index
    %c0_65 = arith.constant 0 : index
    %72 = vector.load %arg1[%c0_64, %c208, %c0_65] : memref<4x288x9xbf16, #tpu.memory_space<vmem>>, vector<1x64x9xbf16>
    %73 = vector.shape_cast %72 : vector<1x64x9xbf16> to vector<64x9xbf16>
    %c1_66 = arith.constant 1 : index
    %c0_67 = arith.constant 0 : index
    %c0_68 = arith.constant 0 : index
    %74 = vector.load %arg2[%c1_66, %c0_67, %c0_68] : memref<3x9x128xbf16, #tpu.memory_space<vmem>>, vector<1x9x128xbf16>
    %75 = vector.shape_cast %74 : vector<1x9x128xbf16> to vector<9x128xbf16>
    %cst_69 = arith.constant dense<0.000000e+00> : vector<64x128xf32>
    %76 = tpu.matmul %73, %75, %cst_69 {dimension_numbers = #tpu.dot_dimension_numbers<[1], [0], [0], [1], [0, 0, 1, 1], [], []>} : vector<64x9xbf16>, vector<9x128xbf16>, vector<64x128xf32> -> vector<64x128xf32>
    %77 = arith.addf %71, %76 : vector<64x128xf32>
    %c0_70 = arith.constant 0 : index
    %c224 = arith.constant 224 : index
    %c0_71 = arith.constant 0 : index
    %78 = vector.load %arg1[%c0_70, %c224, %c0_71] : memref<4x288x9xbf16, #tpu.memory_space<vmem>>, vector<1x64x9xbf16>
    %79 = vector.shape_cast %78 : vector<1x64x9xbf16> to vector<64x9xbf16>
    %c2_72 = arith.constant 2 : index
    %c0_73 = arith.constant 0 : index
    %c0_74 = arith.constant 0 : index
    %80 = vector.load %arg2[%c2_72, %c0_73, %c0_74] : memref<3x9x128xbf16, #tpu.memory_space<vmem>>, vector<1x9x128xbf16>
    %81 = vector.shape_cast %80 : vector<1x9x128xbf16> to vector<9x128xbf16>
    %cst_75 = arith.constant dense<0.000000e+00> : vector<64x128xf32>
    %82 = tpu.matmul %79, %81, %cst_75 {dimension_numbers = #tpu.dot_dimension_numbers<[1], [0], [0], [1], [0, 0, 1, 1], [], []>} : vector<64x9xbf16>, vector<9x128xbf16>, vector<64x128xf32> -> vector<64x128xf32>
    %83 = arith.addf %77, %82 : vector<64x128xf32>
    %cst_76 = arith.constant 0.000000e+00 : f32
    %84 = vector.broadcast %cst_76 : f32 to vector<64x128xf32>
    %85 = arith.maximumf %83, %84 : vector<64x128xf32>
    %cst_77 = arith.constant dense<0.000000e+00> : vector<128xf32>
    %86 = vector.multi_reduction <add>, %85, %cst_77 [0] : vector<64x128xf32> to vector<128xf32>
    %87 = vector.shape_cast %86 : vector<128xf32> to vector<1x128xf32>
    %88 = arith.addf %66, %87 : vector<1x128xf32>
    %cst_78 = arith.constant 0.000000e+00 : f32
    %89 = vector.broadcast %cst_78 : f32 to vector<1x128xf32>
    %c1_79 = arith.constant 1 : index
    %c0_80 = arith.constant 0 : index
    %c0_81 = arith.constant 0 : index
    %90 = vector.load %arg1[%c1_79, %c0_80, %c0_81] : memref<4x288x9xbf16, #tpu.memory_space<vmem>>, vector<1x64x9xbf16>
    %91 = vector.shape_cast %90 : vector<1x64x9xbf16> to vector<64x9xbf16>
    %c0_82 = arith.constant 0 : index
    %c0_83 = arith.constant 0 : index
    %c0_84 = arith.constant 0 : index
    %92 = vector.load %arg2[%c0_82, %c0_83, %c0_84] : memref<3x9x128xbf16, #tpu.memory_space<vmem>>, vector<1x9x128xbf16>
    %93 = vector.shape_cast %92 : vector<1x9x128xbf16> to vector<9x128xbf16>
    %cst_85 = arith.constant dense<0.000000e+00> : vector<64x128xf32>
    %94 = tpu.matmul %91, %93, %cst_85 {dimension_numbers = #tpu.dot_dimension_numbers<[1], [0], [0], [1], [0, 0, 1, 1], [], []>} : vector<64x9xbf16>, vector<9x128xbf16>, vector<64x128xf32> -> vector<64x128xf32>
    %c1_86 = arith.constant 1 : index
    %c16_87 = arith.constant 16 : index
    %c0_88 = arith.constant 0 : index
    %95 = vector.load %arg1[%c1_86, %c16_87, %c0_88] : memref<4x288x9xbf16, #tpu.memory_space<vmem>>, vector<1x64x9xbf16>
    %96 = vector.shape_cast %95 : vector<1x64x9xbf16> to vector<64x9xbf16>
    %c1_89 = arith.constant 1 : index
    %c0_90 = arith.constant 0 : index
    %c0_91 = arith.constant 0 : index
    %97 = vector.load %arg2[%c1_89, %c0_90, %c0_91] : memref<3x9x128xbf16, #tpu.memory_space<vmem>>, vector<1x9x128xbf16>
    %98 = vector.shape_cast %97 : vector<1x9x128xbf16> to vector<9x128xbf16>
    %cst_92 = arith.constant dense<0.000000e+00> : vector<64x128xf32>
    %99 = tpu.matmul %96, %98, %cst_92 {dimension_numbers = #tpu.dot_dimension_numbers<[1], [0], [0], [1], [0, 0, 1, 1], [], []>} : vector<64x9xbf16>, vector<9x128xbf16>, vector<64x128xf32> -> vector<64x128xf32>
    %100 = arith.addf %94, %99 : vector<64x128xf32>
    %c1_93 = arith.constant 1 : index
    %c32_94 = arith.constant 32 : index
    %c0_95 = arith.constant 0 : index
    %101 = vector.load %arg1[%c1_93, %c32_94, %c0_95] : memref<4x288x9xbf16, #tpu.memory_space<vmem>>, vector<1x64x9xbf16>
    %102 = vector.shape_cast %101 : vector<1x64x9xbf16> to vector<64x9xbf16>
    %c2_96 = arith.constant 2 : index
    %c0_97 = arith.constant 0 : index
    %c0_98 = arith.constant 0 : index
    %103 = vector.load %arg2[%c2_96, %c0_97, %c0_98] : memref<3x9x128xbf16, #tpu.memory_space<vmem>>, vector<1x9x128xbf16>
    %104 = vector.shape_cast %103 : vector<1x9x128xbf16> to vector<9x128xbf16>
    %cst_99 = arith.constant dense<0.000000e+00> : vector<64x128xf32>
    %105 = tpu.matmul %102, %104, %cst_99 {dimension_numbers = #tpu.dot_dimension_numbers<[1], [0], [0], [1], [0, 0, 1, 1], [], []>} : vector<64x9xbf16>, vector<9x128xbf16>, vector<64x128xf32> -> vector<64x128xf32>
    %106 = arith.addf %100, %105 : vector<64x128xf32>
    %cst_100 = arith.constant 0.000000e+00 : f32
    %107 = vector.broadcast %cst_100 : f32 to vector<64x128xf32>
    %108 = arith.maximumf %106, %107 : vector<64x128xf32>
    %cst_101 = arith.constant dense<0.000000e+00> : vector<128xf32>
    %109 = vector.multi_reduction <add>, %108, %cst_101 [0] : vector<64x128xf32> to vector<128xf32>
    %110 = vector.shape_cast %109 : vector<128xf32> to vector<1x128xf32>
    %111 = arith.addf %89, %110 : vector<1x128xf32>
    %c1_102 = arith.constant 1 : index
    %c64_103 = arith.constant 64 : index
    %c0_104 = arith.constant 0 : index
    %112 = vector.load %arg1[%c1_102, %c64_103, %c0_104] : memref<4x288x9xbf16, #tpu.memory_space<vmem>>, vector<1x64x9xbf16>
    %113 = vector.shape_cast %112 : vector<1x64x9xbf16> to vector<64x9xbf16>
    %c0_105 = arith.constant 0 : index
    %c0_106 = arith.constant 0 : index
    %c0_107 = arith.constant 0 : index
    %114 = vector.load %arg2[%c0_105, %c0_106, %c0_107] : memref<3x9x128xbf16, #tpu.memory_space<vmem>>, vector<1x9x128xbf16>
    %115 = vector.shape_cast %114 : vector<1x9x128xbf16> to vector<9x128xbf16>
    %cst_108 = arith.constant dense<0.000000e+00> : vector<64x128xf32>
    %116 = tpu.matmul %113, %115, %cst_108 {dimension_numbers = #tpu.dot_dimension_numbers<[1], [0], [0], [1], [0, 0, 1, 1], [], []>} : vector<64x9xbf16>, vector<9x128xbf16>, vector<64x128xf32> -> vector<64x128xf32>
    %c1_109 = arith.constant 1 : index
    %c80_110 = arith.constant 80 : index
    %c0_111 = arith.constant 0 : index
    %117 = vector.load %arg1[%c1_109, %c80_110, %c0_111] : memref<4x288x9xbf16, #tpu.memory_space<vmem>>, vector<1x64x9xbf16>
    %118 = vector.shape_cast %117 : vector<1x64x9xbf16> to vector<64x9xbf16>
    %c1_112 = arith.constant 1 : index
    %c0_113 = arith.constant 0 : index
    %c0_114 = arith.constant 0 : index
    %119 = vector.load %arg2[%c1_112, %c0_113, %c0_114] : memref<3x9x128xbf16, #tpu.memory_space<vmem>>, vector<1x9x128xbf16>
    %120 = vector.shape_cast %119 : vector<1x9x128xbf16> to vector<9x128xbf16>
    %cst_115 = arith.constant dense<0.000000e+00> : vector<64x128xf32>
    %121 = tpu.matmul %118, %120, %cst_115 {dimension_numbers = #tpu.dot_dimension_numbers<[1], [0], [0], [1], [0, 0, 1, 1], [], []>} : vector<64x9xbf16>, vector<9x128xbf16>, vector<64x128xf32> -> vector<64x128xf32>
    %122 = arith.addf %116, %121 : vector<64x128xf32>
    %c1_116 = arith.constant 1 : index
    %c96_117 = arith.constant 96 : index
    %c0_118 = arith.constant 0 : index
    %123 = vector.load %arg1[%c1_116, %c96_117, %c0_118] : memref<4x288x9xbf16, #tpu.memory_space<vmem>>, vector<1x64x9xbf16>
    %124 = vector.shape_cast %123 : vector<1x64x9xbf16> to vector<64x9xbf16>
    %c2_119 = arith.constant 2 : index
    %c0_120 = arith.constant 0 : index
    %c0_121 = arith.constant 0 : index
    %125 = vector.load %arg2[%c2_119, %c0_120, %c0_121] : memref<3x9x128xbf16, #tpu.memory_space<vmem>>, vector<1x9x128xbf16>
    %126 = vector.shape_cast %125 : vector<1x9x128xbf16> to vector<9x128xbf16>
    %cst_122 = arith.constant dense<0.000000e+00> : vector<64x128xf32>
    %127 = tpu.matmul %124, %126, %cst_122 {dimension_numbers = #tpu.dot_dimension_numbers<[1], [0], [0], [1], [0, 0, 1, 1], [], []>} : vector<64x9xbf16>, vector<9x128xbf16>, vector<64x128xf32> -> vector<64x128xf32>
    %128 = arith.addf %122, %127 : vector<64x128xf32>
    %cst_123 = arith.constant 0.000000e+00 : f32
    %129 = vector.broadcast %cst_123 : f32 to vector<64x128xf32>
    %130 = arith.maximumf %128, %129 : vector<64x128xf32>
    %cst_124 = arith.constant dense<0.000000e+00> : vector<128xf32>
    %131 = vector.multi_reduction <add>, %130, %cst_124 [0] : vector<64x128xf32> to vector<128xf32>
    %132 = vector.shape_cast %131 : vector<128xf32> to vector<1x128xf32>
    %133 = arith.addf %111, %132 : vector<1x128xf32>
    %c1_125 = arith.constant 1 : index
    %c128_126 = arith.constant 128 : index
    %c0_127 = arith.constant 0 : index
    %134 = vector.load %arg1[%c1_125, %c128_126, %c0_127] : memref<4x288x9xbf16, #tpu.memory_space<vmem>>, vector<1x64x9xbf16>
    %135 = vector.shape_cast %134 : vector<1x64x9xbf16> to vector<64x9xbf16>
    %c0_128 = arith.constant 0 : index
    %c0_129 = arith.constant 0 : index
    %c0_130 = arith.constant 0 : index
    %136 = vector.load %arg2[%c0_128, %c0_129, %c0_130] : memref<3x9x128xbf16, #tpu.memory_space<vmem>>, vector<1x9x128xbf16>
    %137 = vector.shape_cast %136 : vector<1x9x128xbf16> to vector<9x128xbf16>
    %cst_131 = arith.constant dense<0.000000e+00> : vector<64x128xf32>
    %138 = tpu.matmul %135, %137, %cst_131 {dimension_numbers = #tpu.dot_dimension_numbers<[1], [0], [0], [1], [0, 0, 1, 1], [], []>} : vector<64x9xbf16>, vector<9x128xbf16>, vector<64x128xf32> -> vector<64x128xf32>
    %c1_132 = arith.constant 1 : index
    %c144_133 = arith.constant 144 : index
    %c0_134 = arith.constant 0 : index
    %139 = vector.load %arg1[%c1_132, %c144_133, %c0_134] : memref<4x288x9xbf16, #tpu.memory_space<vmem>>, vector<1x64x9xbf16>
    %140 = vector.shape_cast %139 : vector<1x64x9xbf16> to vector<64x9xbf16>
    %c1_135 = arith.constant 1 : index
    %c0_136 = arith.constant 0 : index
    %c0_137 = arith.constant 0 : index
    %141 = vector.load %arg2[%c1_135, %c0_136, %c0_137] : memref<3x9x128xbf16, #tpu.memory_space<vmem>>, vector<1x9x128xbf16>
    %142 = vector.shape_cast %141 : vector<1x9x128xbf16> to vector<9x128xbf16>
    %cst_138 = arith.constant dense<0.000000e+00> : vector<64x128xf32>
    %143 = tpu.matmul %140, %142, %cst_138 {dimension_numbers = #tpu.dot_dimension_numbers<[1], [0], [0], [1], [0, 0, 1, 1], [], []>} : vector<64x9xbf16>, vector<9x128xbf16>, vector<64x128xf32> -> vector<64x128xf32>
    %144 = arith.addf %138, %143 : vector<64x128xf32>
    %c1_139 = arith.constant 1 : index
    %c160_140 = arith.constant 160 : index
    %c0_141 = arith.constant 0 : index
    %145 = vector.load %arg1[%c1_139, %c160_140, %c0_141] : memref<4x288x9xbf16, #tpu.memory_space<vmem>>, vector<1x64x9xbf16>
    %146 = vector.shape_cast %145 : vector<1x64x9xbf16> to vector<64x9xbf16>
    %c2_142 = arith.constant 2 : index
    %c0_143 = arith.constant 0 : index
    %c0_144 = arith.constant 0 : index
    %147 = vector.load %arg2[%c2_142, %c0_143, %c0_144] : memref<3x9x128xbf16, #tpu.memory_space<vmem>>, vector<1x9x128xbf16>
    %148 = vector.shape_cast %147 : vector<1x9x128xbf16> to vector<9x128xbf16>
    %cst_145 = arith.constant dense<0.000000e+00> : vector<64x128xf32>
    %149 = tpu.matmul %146, %148, %cst_145 {dimension_numbers = #tpu.dot_dimension_numbers<[1], [0], [0], [1], [0, 0, 1, 1], [], []>} : vector<64x9xbf16>, vector<9x128xbf16>, vector<64x128xf32> -> vector<64x128xf32>
    %150 = arith.addf %144, %149 : vector<64x128xf32>
    %cst_146 = arith.constant 0.000000e+00 : f32
    %151 = vector.broadcast %cst_146 : f32 to vector<64x128xf32>
    %152 = arith.maximumf %150, %151 : vector<64x128xf32>
    %cst_147 = arith.constant dense<0.000000e+00> : vector<128xf32>
    %153 = vector.multi_reduction <add>, %152, %cst_147 [0] : vector<64x128xf32> to vector<128xf32>
    %154 = vector.shape_cast %153 : vector<128xf32> to vector<1x128xf32>
    %155 = arith.addf %133, %154 : vector<1x128xf32>
    %c1_148 = arith.constant 1 : index
    %c192_149 = arith.constant 192 : index
    %c0_150 = arith.constant 0 : index
    %156 = vector.load %arg1[%c1_148, %c192_149, %c0_150] : memref<4x288x9xbf16, #tpu.memory_space<vmem>>, vector<1x64x9xbf16>
    %157 = vector.shape_cast %156 : vector<1x64x9xbf16> to vector<64x9xbf16>
    %c0_151 = arith.constant 0 : index
    %c0_152 = arith.constant 0 : index
    %c0_153 = arith.constant 0 : index
    %158 = vector.load %arg2[%c0_151, %c0_152, %c0_153] : memref<3x9x128xbf16, #tpu.memory_space<vmem>>, vector<1x9x128xbf16>
    %159 = vector.shape_cast %158 : vector<1x9x128xbf16> to vector<9x128xbf16>
    %cst_154 = arith.constant dense<0.000000e+00> : vector<64x128xf32>
    %160 = tpu.matmul %157, %159, %cst_154 {dimension_numbers = #tpu.dot_dimension_numbers<[1], [0], [0], [1], [0, 0, 1, 1], [], []>} : vector<64x9xbf16>, vector<9x128xbf16>, vector<64x128xf32> -> vector<64x128xf32>
    %c1_155 = arith.constant 1 : index
    %c208_156 = arith.constant 208 : index
    %c0_157 = arith.constant 0 : index
    %161 = vector.load %arg1[%c1_155, %c208_156, %c0_157] : memref<4x288x9xbf16, #tpu.memory_space<vmem>>, vector<1x64x9xbf16>
    %162 = vector.shape_cast %161 : vector<1x64x9xbf16> to vector<64x9xbf16>
    %c1_158 = arith.constant 1 : index
    %c0_159 = arith.constant 0 : index
    %c0_160 = arith.constant 0 : index
    %163 = vector.load %arg2[%c1_158, %c0_159, %c0_160] : memref<3x9x128xbf16, #tpu.memory_space<vmem>>, vector<1x9x128xbf16>
    %164 = vector.shape_cast %163 : vector<1x9x128xbf16> to vector<9x128xbf16>
    %cst_161 = arith.constant dense<0.000000e+00> : vector<64x128xf32>
    %165 = tpu.matmul %162, %164, %cst_161 {dimension_numbers = #tpu.dot_dimension_numbers<[1], [0], [0], [1], [0, 0, 1, 1], [], []>} : vector<64x9xbf16>, vector<9x128xbf16>, vector<64x128xf32> -> vector<64x128xf32>
    %166 = arith.addf %160, %165 : vector<64x128xf32>
    %c1_162 = arith.constant 1 : index
    %c224_163 = arith.constant 224 : index
    %c0_164 = arith.constant 0 : index
    %167 = vector.load %arg1[%c1_162, %c224_163, %c0_164] : memref<4x288x9xbf16, #tpu.memory_space<vmem>>, vector<1x64x9xbf16>
    %168 = vector.shape_cast %167 : vector<1x64x9xbf16> to vector<64x9xbf16>
    %c2_165 = arith.constant 2 : index
    %c0_166 = arith.constant 0 : index
    %c0_167 = arith.constant 0 : index
    %169 = vector.load %arg2[%c2_165, %c0_166, %c0_167] : memref<3x9x128xbf16, #tpu.memory_space<vmem>>, vector<1x9x128xbf16>
    %170 = vector.shape_cast %169 : vector<1x9x128xbf16> to vector<9x128xbf16>
    %cst_168 = arith.constant dense<0.000000e+00> : vector<64x128xf32>
    %171 = tpu.matmul %168, %170, %cst_168 {dimension_numbers = #tpu.dot_dimension_numbers<[1], [0], [0], [1], [0, 0, 1, 1], [], []>} : vector<64x9xbf16>, vector<9x128xbf16>, vector<64x128xf32> -> vector<64x128xf32>
    %172 = arith.addf %166, %171 : vector<64x128xf32>
    %cst_169 = arith.constant 0.000000e+00 : f32
    %173 = vector.broadcast %cst_169 : f32 to vector<64x128xf32>
    %174 = arith.maximumf %172, %173 : vector<64x128xf32>
    %cst_170 = arith.constant dense<0.000000e+00> : vector<128xf32>
    %175 = vector.multi_reduction <add>, %174, %cst_170 [0] : vector<64x128xf32> to vector<128xf32>
    %176 = vector.shape_cast %175 : vector<128xf32> to vector<1x128xf32>
    %177 = arith.addf %155, %176 : vector<1x128xf32>
    %cst_171 = arith.constant 0.000000e+00 : f32
    %178 = vector.broadcast %cst_171 : f32 to vector<1x128xf32>
    %c2_172 = arith.constant 2 : index
    %c0_173 = arith.constant 0 : index
    %c0_174 = arith.constant 0 : index
    %179 = vector.load %arg1[%c2_172, %c0_173, %c0_174] : memref<4x288x9xbf16, #tpu.memory_space<vmem>>, vector<1x64x9xbf16>
    %180 = vector.shape_cast %179 : vector<1x64x9xbf16> to vector<64x9xbf16>
    %c0_175 = arith.constant 0 : index
    %c0_176 = arith.constant 0 : index
    %c0_177 = arith.constant 0 : index
    %181 = vector.load %arg2[%c0_175, %c0_176, %c0_177] : memref<3x9x128xbf16, #tpu.memory_space<vmem>>, vector<1x9x128xbf16>
    %182 = vector.shape_cast %181 : vector<1x9x128xbf16> to vector<9x128xbf16>
    %cst_178 = arith.constant dense<0.000000e+00> : vector<64x128xf32>
    %183 = tpu.matmul %180, %182, %cst_178 {dimension_numbers = #tpu.dot_dimension_numbers<[1], [0], [0], [1], [0, 0, 1, 1], [], []>} : vector<64x9xbf16>, vector<9x128xbf16>, vector<64x128xf32> -> vector<64x128xf32>
    %c2_179 = arith.constant 2 : index
    %c16_180 = arith.constant 16 : index
    %c0_181 = arith.constant 0 : index
    %184 = vector.load %arg1[%c2_179, %c16_180, %c0_181] : memref<4x288x9xbf16, #tpu.memory_space<vmem>>, vector<1x64x9xbf16>
    %185 = vector.shape_cast %184 : vector<1x64x9xbf16> to vector<64x9xbf16>
    %c1_182 = arith.constant 1 : index
    %c0_183 = arith.constant 0 : index
    %c0_184 = arith.constant 0 : index
    %186 = vector.load %arg2[%c1_182, %c0_183, %c0_184] : memref<3x9x128xbf16, #tpu.memory_space<vmem>>, vector<1x9x128xbf16>
    %187 = vector.shape_cast %186 : vector<1x9x128xbf16> to vector<9x128xbf16>
    %cst_185 = arith.constant dense<0.000000e+00> : vector<64x128xf32>
    %188 = tpu.matmul %185, %187, %cst_185 {dimension_numbers = #tpu.dot_dimension_numbers<[1], [0], [0], [1], [0, 0, 1, 1], [], []>} : vector<64x9xbf16>, vector<9x128xbf16>, vector<64x128xf32> -> vector<64x128xf32>
    %189 = arith.addf %183, %188 : vector<64x128xf32>
    %c2_186 = arith.constant 2 : index
    %c32_187 = arith.constant 32 : index
    %c0_188 = arith.constant 0 : index
    %190 = vector.load %arg1[%c2_186, %c32_187, %c0_188] : memref<4x288x9xbf16, #tpu.memory_space<vmem>>, vector<1x64x9xbf16>
    %191 = vector.shape_cast %190 : vector<1x64x9xbf16> to vector<64x9xbf16>
    %c2_189 = arith.constant 2 : index
    %c0_190 = arith.constant 0 : index
    %c0_191 = arith.constant 0 : index
    %192 = vector.load %arg2[%c2_189, %c0_190, %c0_191] : memref<3x9x128xbf16, #tpu.memory_space<vmem>>, vector<1x9x128xbf16>
    %193 = vector.shape_cast %192 : vector<1x9x128xbf16> to vector<9x128xbf16>
    %cst_192 = arith.constant dense<0.000000e+00> : vector<64x128xf32>
    %194 = tpu.matmul %191, %193, %cst_192 {dimension_numbers = #tpu.dot_dimension_numbers<[1], [0], [0], [1], [0, 0, 1, 1], [], []>} : vector<64x9xbf16>, vector<9x128xbf16>, vector<64x128xf32> -> vector<64x128xf32>
    %195 = arith.addf %189, %194 : vector<64x128xf32>
    %cst_193 = arith.constant 0.000000e+00 : f32
    %196 = vector.broadcast %cst_193 : f32 to vector<64x128xf32>
    %197 = arith.maximumf %195, %196 : vector<64x128xf32>
    %cst_194 = arith.constant dense<0.000000e+00> : vector<128xf32>
    %198 = vector.multi_reduction <add>, %197, %cst_194 [0] : vector<64x128xf32> to vector<128xf32>
    %199 = vector.shape_cast %198 : vector<128xf32> to vector<1x128xf32>
    %200 = arith.addf %178, %199 : vector<1x128xf32>
    %c2_195 = arith.constant 2 : index
    %c64_196 = arith.constant 64 : index
    %c0_197 = arith.constant 0 : index
    %201 = vector.load %arg1[%c2_195, %c64_196, %c0_197] : memref<4x288x9xbf16, #tpu.memory_space<vmem>>, vector<1x64x9xbf16>
    %202 = vector.shape_cast %201 : vector<1x64x9xbf16> to vector<64x9xbf16>
    %c0_198 = arith.constant 0 : index
    %c0_199 = arith.constant 0 : index
    %c0_200 = arith.constant 0 : index
    %203 = vector.load %arg2[%c0_198, %c0_199, %c0_200] : memref<3x9x128xbf16, #tpu.memory_space<vmem>>, vector<1x9x128xbf16>
    %204 = vector.shape_cast %203 : vector<1x9x128xbf16> to vector<9x128xbf16>
    %cst_201 = arith.constant dense<0.000000e+00> : vector<64x128xf32>
    %205 = tpu.matmul %202, %204, %cst_201 {dimension_numbers = #tpu.dot_dimension_numbers<[1], [0], [0], [1], [0, 0, 1, 1], [], []>} : vector<64x9xbf16>, vector<9x128xbf16>, vector<64x128xf32> -> vector<64x128xf32>
    %c2_202 = arith.constant 2 : index
    %c80_203 = arith.constant 80 : index
    %c0_204 = arith.constant 0 : index
    %206 = vector.load %arg1[%c2_202, %c80_203, %c0_204] : memref<4x288x9xbf16, #tpu.memory_space<vmem>>, vector<1x64x9xbf16>
    %207 = vector.shape_cast %206 : vector<1x64x9xbf16> to vector<64x9xbf16>
    %c1_205 = arith.constant 1 : index
    %c0_206 = arith.constant 0 : index
    %c0_207 = arith.constant 0 : index
    %208 = vector.load %arg2[%c1_205, %c0_206, %c0_207] : memref<3x9x128xbf16, #tpu.memory_space<vmem>>, vector<1x9x128xbf16>
    %209 = vector.shape_cast %208 : vector<1x9x128xbf16> to vector<9x128xbf16>
    %cst_208 = arith.constant dense<0.000000e+00> : vector<64x128xf32>
    %210 = tpu.matmul %207, %209, %cst_208 {dimension_numbers = #tpu.dot_dimension_numbers<[1], [0], [0], [1], [0, 0, 1, 1], [], []>} : vector<64x9xbf16>, vector<9x128xbf16>, vector<64x128xf32> -> vector<64x128xf32>
    %211 = arith.addf %205, %210 : vector<64x128xf32>
    %c2_209 = arith.constant 2 : index
    %c96_210 = arith.constant 96 : index
    %c0_211 = arith.constant 0 : index
    %212 = vector.load %arg1[%c2_209, %c96_210, %c0_211] : memref<4x288x9xbf16, #tpu.memory_space<vmem>>, vector<1x64x9xbf16>
    %213 = vector.shape_cast %212 : vector<1x64x9xbf16> to vector<64x9xbf16>
    %c2_212 = arith.constant 2 : index
    %c0_213 = arith.constant 0 : index
    %c0_214 = arith.constant 0 : index
    %214 = vector.load %arg2[%c2_212, %c0_213, %c0_214] : memref<3x9x128xbf16, #tpu.memory_space<vmem>>, vector<1x9x128xbf16>
    %215 = vector.shape_cast %214 : vector<1x9x128xbf16> to vector<9x128xbf16>
    %cst_215 = arith.constant dense<0.000000e+00> : vector<64x128xf32>
    %216 = tpu.matmul %213, %215, %cst_215 {dimension_numbers = #tpu.dot_dimension_numbers<[1], [0], [0], [1], [0, 0, 1, 1], [], []>} : vector<64x9xbf16>, vector<9x128xbf16>, vector<64x128xf32> -> vector<64x128xf32>
    %217 = arith.addf %211, %216 : vector<64x128xf32>
    %cst_216 = arith.constant 0.000000e+00 : f32
    %218 = vector.broadcast %cst_216 : f32 to vector<64x128xf32>
    %219 = arith.maximumf %217, %218 : vector<64x128xf32>
    %cst_217 = arith.constant dense<0.000000e+00> : vector<128xf32>
    %220 = vector.multi_reduction <add>, %219, %cst_217 [0] : vector<64x128xf32> to vector<128xf32>
    %221 = vector.shape_cast %220 : vector<128xf32> to vector<1x128xf32>
    %222 = arith.addf %200, %221 : vector<1x128xf32>
    %c2_218 = arith.constant 2 : index
    %c128_219 = arith.constant 128 : index
    %c0_220 = arith.constant 0 : index
    %223 = vector.load %arg1[%c2_218, %c128_219, %c0_220] : memref<4x288x9xbf16, #tpu.memory_space<vmem>>, vector<1x64x9xbf16>
    %224 = vector.shape_cast %223 : vector<1x64x9xbf16> to vector<64x9xbf16>
    %c0_221 = arith.constant 0 : index
    %c0_222 = arith.constant 0 : index
    %c0_223 = arith.constant 0 : index
    %225 = vector.load %arg2[%c0_221, %c0_222, %c0_223] : memref<3x9x128xbf16, #tpu.memory_space<vmem>>, vector<1x9x128xbf16>
    %226 = vector.shape_cast %225 : vector<1x9x128xbf16> to vector<9x128xbf16>
    %cst_224 = arith.constant dense<0.000000e+00> : vector<64x128xf32>
    %227 = tpu.matmul %224, %226, %cst_224 {dimension_numbers = #tpu.dot_dimension_numbers<[1], [0], [0], [1], [0, 0, 1, 1], [], []>} : vector<64x9xbf16>, vector<9x128xbf16>, vector<64x128xf32> -> vector<64x128xf32>
    %c2_225 = arith.constant 2 : index
    %c144_226 = arith.constant 144 : index
    %c0_227 = arith.constant 0 : index
    %228 = vector.load %arg1[%c2_225, %c144_226, %c0_227] : memref<4x288x9xbf16, #tpu.memory_space<vmem>>, vector<1x64x9xbf16>
    %229 = vector.shape_cast %228 : vector<1x64x9xbf16> to vector<64x9xbf16>
    %c1_228 = arith.constant 1 : index
    %c0_229 = arith.constant 0 : index
    %c0_230 = arith.constant 0 : index
    %230 = vector.load %arg2[%c1_228, %c0_229, %c0_230] : memref<3x9x128xbf16, #tpu.memory_space<vmem>>, vector<1x9x128xbf16>
    %231 = vector.shape_cast %230 : vector<1x9x128xbf16> to vector<9x128xbf16>
    %cst_231 = arith.constant dense<0.000000e+00> : vector<64x128xf32>
    %232 = tpu.matmul %229, %231, %cst_231 {dimension_numbers = #tpu.dot_dimension_numbers<[1], [0], [0], [1], [0, 0, 1, 1], [], []>} : vector<64x9xbf16>, vector<9x128xbf16>, vector<64x128xf32> -> vector<64x128xf32>
    %233 = arith.addf %227, %232 : vector<64x128xf32>
    %c2_232 = arith.constant 2 : index
    %c160_233 = arith.constant 160 : index
    %c0_234 = arith.constant 0 : index
    %234 = vector.load %arg1[%c2_232, %c160_233, %c0_234] : memref<4x288x9xbf16, #tpu.memory_space<vmem>>, vector<1x64x9xbf16>
    %235 = vector.shape_cast %234 : vector<1x64x9xbf16> to vector<64x9xbf16>
    %c2_235 = arith.constant 2 : index
    %c0_236 = arith.constant 0 : index
    %c0_237 = arith.constant 0 : index
    %236 = vector.load %arg2[%c2_235, %c0_236, %c0_237] : memref<3x9x128xbf16, #tpu.memory_space<vmem>>, vector<1x9x128xbf16>
    %237 = vector.shape_cast %236 : vector<1x9x128xbf16> to vector<9x128xbf16>
    %cst_238 = arith.constant dense<0.000000e+00> : vector<64x128xf32>
    %238 = tpu.matmul %235, %237, %cst_238 {dimension_numbers = #tpu.dot_dimension_numbers<[1], [0], [0], [1], [0, 0, 1, 1], [], []>} : vector<64x9xbf16>, vector<9x128xbf16>, vector<64x128xf32> -> vector<64x128xf32>
    %239 = arith.addf %233, %238 : vector<64x128xf32>
    %cst_239 = arith.constant 0.000000e+00 : f32
    %240 = vector.broadcast %cst_239 : f32 to vector<64x128xf32>
    %241 = arith.maximumf %239, %240 : vector<64x128xf32>
    %cst_240 = arith.constant dense<0.000000e+00> : vector<128xf32>
    %242 = vector.multi_reduction <add>, %241, %cst_240 [0] : vector<64x128xf32> to vector<128xf32>
    %243 = vector.shape_cast %242 : vector<128xf32> to vector<1x128xf32>
    %244 = arith.addf %222, %243 : vector<1x128xf32>
    %c2_241 = arith.constant 2 : index
    %c192_242 = arith.constant 192 : index
    %c0_243 = arith.constant 0 : index
    %245 = vector.load %arg1[%c2_241, %c192_242, %c0_243] : memref<4x288x9xbf16, #tpu.memory_space<vmem>>, vector<1x64x9xbf16>
    %246 = vector.shape_cast %245 : vector<1x64x9xbf16> to vector<64x9xbf16>
    %c0_244 = arith.constant 0 : index
    %c0_245 = arith.constant 0 : index
    %c0_246 = arith.constant 0 : index
    %247 = vector.load %arg2[%c0_244, %c0_245, %c0_246] : memref<3x9x128xbf16, #tpu.memory_space<vmem>>, vector<1x9x128xbf16>
    %248 = vector.shape_cast %247 : vector<1x9x128xbf16> to vector<9x128xbf16>
    %cst_247 = arith.constant dense<0.000000e+00> : vector<64x128xf32>
    %249 = tpu.matmul %246, %248, %cst_247 {dimension_numbers = #tpu.dot_dimension_numbers<[1], [0], [0], [1], [0, 0, 1, 1], [], []>} : vector<64x9xbf16>, vector<9x128xbf16>, vector<64x128xf32> -> vector<64x128xf32>
    %c2_248 = arith.constant 2 : index
    %c208_249 = arith.constant 208 : index
    %c0_250 = arith.constant 0 : index
    %250 = vector.load %arg1[%c2_248, %c208_249, %c0_250] : memref<4x288x9xbf16, #tpu.memory_space<vmem>>, vector<1x64x9xbf16>
    %251 = vector.shape_cast %250 : vector<1x64x9xbf16> to vector<64x9xbf16>
    %c1_251 = arith.constant 1 : index
    %c0_252 = arith.constant 0 : index
    %c0_253 = arith.constant 0 : index
    %252 = vector.load %arg2[%c1_251, %c0_252, %c0_253] : memref<3x9x128xbf16, #tpu.memory_space<vmem>>, vector<1x9x128xbf16>
    %253 = vector.shape_cast %252 : vector<1x9x128xbf16> to vector<9x128xbf16>
    %cst_254 = arith.constant dense<0.000000e+00> : vector<64x128xf32>
    %254 = tpu.matmul %251, %253, %cst_254 {dimension_numbers = #tpu.dot_dimension_numbers<[1], [0], [0], [1], [0, 0, 1, 1], [], []>} : vector<64x9xbf16>, vector<9x128xbf16>, vector<64x128xf32> -> vector<64x128xf32>
    %255 = arith.addf %249, %254 : vector<64x128xf32>
    %c2_255 = arith.constant 2 : index
    %c224_256 = arith.constant 224 : index
    %c0_257 = arith.constant 0 : index
    %256 = vector.load %arg1[%c2_255, %c224_256, %c0_257] : memref<4x288x9xbf16, #tpu.memory_space<vmem>>, vector<1x64x9xbf16>
    %257 = vector.shape_cast %256 : vector<1x64x9xbf16> to vector<64x9xbf16>
    %c2_258 = arith.constant 2 : index
    %c0_259 = arith.constant 0 : index
    %c0_260 = arith.constant 0 : index
    %258 = vector.load %arg2[%c2_258, %c0_259, %c0_260] : memref<3x9x128xbf16, #tpu.memory_space<vmem>>, vector<1x9x128xbf16>
    %259 = vector.shape_cast %258 : vector<1x9x128xbf16> to vector<9x128xbf16>
    %cst_261 = arith.constant dense<0.000000e+00> : vector<64x128xf32>
    %260 = tpu.matmul %257, %259, %cst_261 {dimension_numbers = #tpu.dot_dimension_numbers<[1], [0], [0], [1], [0, 0, 1, 1], [], []>} : vector<64x9xbf16>, vector<9x128xbf16>, vector<64x128xf32> -> vector<64x128xf32>
    %261 = arith.addf %255, %260 : vector<64x128xf32>
    %cst_262 = arith.constant 0.000000e+00 : f32
    %262 = vector.broadcast %cst_262 : f32 to vector<64x128xf32>
    %263 = arith.maximumf %261, %262 : vector<64x128xf32>
    %cst_263 = arith.constant dense<0.000000e+00> : vector<128xf32>
    %264 = vector.multi_reduction <add>, %263, %cst_263 [0] : vector<64x128xf32> to vector<128xf32>
    %265 = vector.shape_cast %264 : vector<128xf32> to vector<1x128xf32>
    %266 = arith.addf %244, %265 : vector<1x128xf32>
    %cst_264 = arith.constant 0.000000e+00 : f32
    %267 = vector.broadcast %cst_264 : f32 to vector<1x128xf32>
    %c3 = arith.constant 3 : index
    %c0_265 = arith.constant 0 : index
    %c0_266 = arith.constant 0 : index
    %268 = vector.load %arg1[%c3, %c0_265, %c0_266] : memref<4x288x9xbf16, #tpu.memory_space<vmem>>, vector<1x64x9xbf16>
    %269 = vector.shape_cast %268 : vector<1x64x9xbf16> to vector<64x9xbf16>
    %c0_267 = arith.constant 0 : index
    %c0_268 = arith.constant 0 : index
    %c0_269 = arith.constant 0 : index
    %270 = vector.load %arg2[%c0_267, %c0_268, %c0_269] : memref<3x9x128xbf16, #tpu.memory_space<vmem>>, vector<1x9x128xbf16>
    %271 = vector.shape_cast %270 : vector<1x9x128xbf16> to vector<9x128xbf16>
    %cst_270 = arith.constant dense<0.000000e+00> : vector<64x128xf32>
    %272 = tpu.matmul %269, %271, %cst_270 {dimension_numbers = #tpu.dot_dimension_numbers<[1], [0], [0], [1], [0, 0, 1, 1], [], []>} : vector<64x9xbf16>, vector<9x128xbf16>, vector<64x128xf32> -> vector<64x128xf32>
    %c3_271 = arith.constant 3 : index
    %c16_272 = arith.constant 16 : index
    %c0_273 = arith.constant 0 : index
    %273 = vector.load %arg1[%c3_271, %c16_272, %c0_273] : memref<4x288x9xbf16, #tpu.memory_space<vmem>>, vector<1x64x9xbf16>
    %274 = vector.shape_cast %273 : vector<1x64x9xbf16> to vector<64x9xbf16>
    %c1_274 = arith.constant 1 : index
    %c0_275 = arith.constant 0 : index
    %c0_276 = arith.constant 0 : index
    %275 = vector.load %arg2[%c1_274, %c0_275, %c0_276] : memref<3x9x128xbf16, #tpu.memory_space<vmem>>, vector<1x9x128xbf16>
    %276 = vector.shape_cast %275 : vector<1x9x128xbf16> to vector<9x128xbf16>
    %cst_277 = arith.constant dense<0.000000e+00> : vector<64x128xf32>
    %277 = tpu.matmul %274, %276, %cst_277 {dimension_numbers = #tpu.dot_dimension_numbers<[1], [0], [0], [1], [0, 0, 1, 1], [], []>} : vector<64x9xbf16>, vector<9x128xbf16>, vector<64x128xf32> -> vector<64x128xf32>
    %278 = arith.addf %272, %277 : vector<64x128xf32>
    %c3_278 = arith.constant 3 : index
    %c32_279 = arith.constant 32 : index
    %c0_280 = arith.constant 0 : index
    %279 = vector.load %arg1[%c3_278, %c32_279, %c0_280] : memref<4x288x9xbf16, #tpu.memory_space<vmem>>, vector<1x64x9xbf16>
    %280 = vector.shape_cast %279 : vector<1x64x9xbf16> to vector<64x9xbf16>
    %c2_281 = arith.constant 2 : index
    %c0_282 = arith.constant 0 : index
    %c0_283 = arith.constant 0 : index
    %281 = vector.load %arg2[%c2_281, %c0_282, %c0_283] : memref<3x9x128xbf16, #tpu.memory_space<vmem>>, vector<1x9x128xbf16>
    %282 = vector.shape_cast %281 : vector<1x9x128xbf16> to vector<9x128xbf16>
    %cst_284 = arith.constant dense<0.000000e+00> : vector<64x128xf32>
    %283 = tpu.matmul %280, %282, %cst_284 {dimension_numbers = #tpu.dot_dimension_numbers<[1], [0], [0], [1], [0, 0, 1, 1], [], []>} : vector<64x9xbf16>, vector<9x128xbf16>, vector<64x128xf32> -> vector<64x128xf32>
    %284 = arith.addf %278, %283 : vector<64x128xf32>
    %cst_285 = arith.constant 0.000000e+00 : f32
    %285 = vector.broadcast %cst_285 : f32 to vector<64x128xf32>
    %286 = arith.maximumf %284, %285 : vector<64x128xf32>
    %cst_286 = arith.constant dense<0.000000e+00> : vector<128xf32>
    %287 = vector.multi_reduction <add>, %286, %cst_286 [0] : vector<64x128xf32> to vector<128xf32>
    %288 = vector.shape_cast %287 : vector<128xf32> to vector<1x128xf32>
    %289 = arith.addf %267, %288 : vector<1x128xf32>
    %c3_287 = arith.constant 3 : index
    %c64_288 = arith.constant 64 : index
    %c0_289 = arith.constant 0 : index
    %290 = vector.load %arg1[%c3_287, %c64_288, %c0_289] : memref<4x288x9xbf16, #tpu.memory_space<vmem>>, vector<1x64x9xbf16>
    %291 = vector.shape_cast %290 : vector<1x64x9xbf16> to vector<64x9xbf16>
    %c0_290 = arith.constant 0 : index
    %c0_291 = arith.constant 0 : index
    %c0_292 = arith.constant 0 : index
    %292 = vector.load %arg2[%c0_290, %c0_291, %c0_292] : memref<3x9x128xbf16, #tpu.memory_space<vmem>>, vector<1x9x128xbf16>
    %293 = vector.shape_cast %292 : vector<1x9x128xbf16> to vector<9x128xbf16>
    %cst_293 = arith.constant dense<0.000000e+00> : vector<64x128xf32>
    %294 = tpu.matmul %291, %293, %cst_293 {dimension_numbers = #tpu.dot_dimension_numbers<[1], [0], [0], [1], [0, 0, 1, 1], [], []>} : vector<64x9xbf16>, vector<9x128xbf16>, vector<64x128xf32> -> vector<64x128xf32>
    %c3_294 = arith.constant 3 : index
    %c80_295 = arith.constant 80 : index
    %c0_296 = arith.constant 0 : index
    %295 = vector.load %arg1[%c3_294, %c80_295, %c0_296] : memref<4x288x9xbf16, #tpu.memory_space<vmem>>, vector<1x64x9xbf16>
    %296 = vector.shape_cast %295 : vector<1x64x9xbf16> to vector<64x9xbf16>
    %c1_297 = arith.constant 1 : index
    %c0_298 = arith.constant 0 : index
    %c0_299 = arith.constant 0 : index
    %297 = vector.load %arg2[%c1_297, %c0_298, %c0_299] : memref<3x9x128xbf16, #tpu.memory_space<vmem>>, vector<1x9x128xbf16>
    %298 = vector.shape_cast %297 : vector<1x9x128xbf16> to vector<9x128xbf16>
    %cst_300 = arith.constant dense<0.000000e+00> : vector<64x128xf32>
    %299 = tpu.matmul %296, %298, %cst_300 {dimension_numbers = #tpu.dot_dimension_numbers<[1], [0], [0], [1], [0, 0, 1, 1], [], []>} : vector<64x9xbf16>, vector<9x128xbf16>, vector<64x128xf32> -> vector<64x128xf32>
    %300 = arith.addf %294, %299 : vector<64x128xf32>
    %c3_301 = arith.constant 3 : index
    %c96_302 = arith.constant 96 : index
    %c0_303 = arith.constant 0 : index
    %301 = vector.load %arg1[%c3_301, %c96_302, %c0_303] : memref<4x288x9xbf16, #tpu.memory_space<vmem>>, vector<1x64x9xbf16>
    %302 = vector.shape_cast %301 : vector<1x64x9xbf16> to vector<64x9xbf16>
    %c2_304 = arith.constant 2 : index
    %c0_305 = arith.constant 0 : index
    %c0_306 = arith.constant 0 : index
    %303 = vector.load %arg2[%c2_304, %c0_305, %c0_306] : memref<3x9x128xbf16, #tpu.memory_space<vmem>>, vector<1x9x128xbf16>
    %304 = vector.shape_cast %303 : vector<1x9x128xbf16> to vector<9x128xbf16>
    %cst_307 = arith.constant dense<0.000000e+00> : vector<64x128xf32>
    %305 = tpu.matmul %302, %304, %cst_307 {dimension_numbers = #tpu.dot_dimension_numbers<[1], [0], [0], [1], [0, 0, 1, 1], [], []>} : vector<64x9xbf16>, vector<9x128xbf16>, vector<64x128xf32> -> vector<64x128xf32>
    %306 = arith.addf %300, %305 : vector<64x128xf32>
    %cst_308 = arith.constant 0.000000e+00 : f32
    %307 = vector.broadcast %cst_308 : f32 to vector<64x128xf32>
    %308 = arith.maximumf %306, %307 : vector<64x128xf32>
    %cst_309 = arith.constant dense<0.000000e+00> : vector<128xf32>
    %309 = vector.multi_reduction <add>, %308, %cst_309 [0] : vector<64x128xf32> to vector<128xf32>
    %310 = vector.shape_cast %309 : vector<128xf32> to vector<1x128xf32>
    %311 = arith.addf %289, %310 : vector<1x128xf32>
    %c3_310 = arith.constant 3 : index
    %c128_311 = arith.constant 128 : index
    %c0_312 = arith.constant 0 : index
    %312 = vector.load %arg1[%c3_310, %c128_311, %c0_312] : memref<4x288x9xbf16, #tpu.memory_space<vmem>>, vector<1x64x9xbf16>
    %313 = vector.shape_cast %312 : vector<1x64x9xbf16> to vector<64x9xbf16>
    %c0_313 = arith.constant 0 : index
    %c0_314 = arith.constant 0 : index
    %c0_315 = arith.constant 0 : index
    %314 = vector.load %arg2[%c0_313, %c0_314, %c0_315] : memref<3x9x128xbf16, #tpu.memory_space<vmem>>, vector<1x9x128xbf16>
    %315 = vector.shape_cast %314 : vector<1x9x128xbf16> to vector<9x128xbf16>
    %cst_316 = arith.constant dense<0.000000e+00> : vector<64x128xf32>
    %316 = tpu.matmul %313, %315, %cst_316 {dimension_numbers = #tpu.dot_dimension_numbers<[1], [0], [0], [1], [0, 0, 1, 1], [], []>} : vector<64x9xbf16>, vector<9x128xbf16>, vector<64x128xf32> -> vector<64x128xf32>
    %c3_317 = arith.constant 3 : index
    %c144_318 = arith.constant 144 : index
    %c0_319 = arith.constant 0 : index
    %317 = vector.load %arg1[%c3_317, %c144_318, %c0_319] : memref<4x288x9xbf16, #tpu.memory_space<vmem>>, vector<1x64x9xbf16>
    %318 = vector.shape_cast %317 : vector<1x64x9xbf16> to vector<64x9xbf16>
    %c1_320 = arith.constant 1 : index
    %c0_321 = arith.constant 0 : index
    %c0_322 = arith.constant 0 : index
    %319 = vector.load %arg2[%c1_320, %c0_321, %c0_322] : memref<3x9x128xbf16, #tpu.memory_space<vmem>>, vector<1x9x128xbf16>
    %320 = vector.shape_cast %319 : vector<1x9x128xbf16> to vector<9x128xbf16>
    %cst_323 = arith.constant dense<0.000000e+00> : vector<64x128xf32>
    %321 = tpu.matmul %318, %320, %cst_323 {dimension_numbers = #tpu.dot_dimension_numbers<[1], [0], [0], [1], [0, 0, 1, 1], [], []>} : vector<64x9xbf16>, vector<9x128xbf16>, vector<64x128xf32> -> vector<64x128xf32>
    %322 = arith.addf %316, %321 : vector<64x128xf32>
    %c3_324 = arith.constant 3 : index
    %c160_325 = arith.constant 160 : index
    %c0_326 = arith.constant 0 : index
    %323 = vector.load %arg1[%c3_324, %c160_325, %c0_326] : memref<4x288x9xbf16, #tpu.memory_space<vmem>>, vector<1x64x9xbf16>
    %324 = vector.shape_cast %323 : vector<1x64x9xbf16> to vector<64x9xbf16>
    %c2_327 = arith.constant 2 : index
    %c0_328 = arith.constant 0 : index
    %c0_329 = arith.constant 0 : index
    %325 = vector.load %arg2[%c2_327, %c0_328, %c0_329] : memref<3x9x128xbf16, #tpu.memory_space<vmem>>, vector<1x9x128xbf16>
    %326 = vector.shape_cast %325 : vector<1x9x128xbf16> to vector<9x128xbf16>
    %cst_330 = arith.constant dense<0.000000e+00> : vector<64x128xf32>
    %327 = tpu.matmul %324, %326, %cst_330 {dimension_numbers = #tpu.dot_dimension_numbers<[1], [0], [0], [1], [0, 0, 1, 1], [], []>} : vector<64x9xbf16>, vector<9x128xbf16>, vector<64x128xf32> -> vector<64x128xf32>
    %328 = arith.addf %322, %327 : vector<64x128xf32>
    %cst_331 = arith.constant 0.000000e+00 : f32
    %329 = vector.broadcast %cst_331 : f32 to vector<64x128xf32>
    %330 = arith.maximumf %328, %329 : vector<64x128xf32>
    %cst_332 = arith.constant dense<0.000000e+00> : vector<128xf32>
    %331 = vector.multi_reduction <add>, %330, %cst_332 [0] : vector<64x128xf32> to vector<128xf32>
    %332 = vector.shape_cast %331 : vector<128xf32> to vector<1x128xf32>
    %333 = arith.addf %311, %332 : vector<1x128xf32>
    %c3_333 = arith.constant 3 : index
    %c192_334 = arith.constant 192 : index
    %c0_335 = arith.constant 0 : index
    %334 = vector.load %arg1[%c3_333, %c192_334, %c0_335] : memref<4x288x9xbf16, #tpu.memory_space<vmem>>, vector<1x64x9xbf16>
    %335 = vector.shape_cast %334 : vector<1x64x9xbf16> to vector<64x9xbf16>
    %c0_336 = arith.constant 0 : index
    %c0_337 = arith.constant 0 : index
    %c0_338 = arith.constant 0 : index
    %336 = vector.load %arg2[%c0_336, %c0_337, %c0_338] : memref<3x9x128xbf16, #tpu.memory_space<vmem>>, vector<1x9x128xbf16>
    %337 = vector.shape_cast %336 : vector<1x9x128xbf16> to vector<9x128xbf16>
    %cst_339 = arith.constant dense<0.000000e+00> : vector<64x128xf32>
    %338 = tpu.matmul %335, %337, %cst_339 {dimension_numbers = #tpu.dot_dimension_numbers<[1], [0], [0], [1], [0, 0, 1, 1], [], []>} : vector<64x9xbf16>, vector<9x128xbf16>, vector<64x128xf32> -> vector<64x128xf32>
    %c3_340 = arith.constant 3 : index
    %c208_341 = arith.constant 208 : index
    %c0_342 = arith.constant 0 : index
    %339 = vector.load %arg1[%c3_340, %c208_341, %c0_342] : memref<4x288x9xbf16, #tpu.memory_space<vmem>>, vector<1x64x9xbf16>
    %340 = vector.shape_cast %339 : vector<1x64x9xbf16> to vector<64x9xbf16>
    %c1_343 = arith.constant 1 : index
    %c0_344 = arith.constant 0 : index
    %c0_345 = arith.constant 0 : index
    %341 = vector.load %arg2[%c1_343, %c0_344, %c0_345] : memref<3x9x128xbf16, #tpu.memory_space<vmem>>, vector<1x9x128xbf16>
    %342 = vector.shape_cast %341 : vector<1x9x128xbf16> to vector<9x128xbf16>
    %cst_346 = arith.constant dense<0.000000e+00> : vector<64x128xf32>
    %343 = tpu.matmul %340, %342, %cst_346 {dimension_numbers = #tpu.dot_dimension_numbers<[1], [0], [0], [1], [0, 0, 1, 1], [], []>} : vector<64x9xbf16>, vector<9x128xbf16>, vector<64x128xf32> -> vector<64x128xf32>
    %344 = arith.addf %338, %343 : vector<64x128xf32>
    %c3_347 = arith.constant 3 : index
    %c224_348 = arith.constant 224 : index
    %c0_349 = arith.constant 0 : index
    %345 = vector.load %arg1[%c3_347, %c224_348, %c0_349] : memref<4x288x9xbf16, #tpu.memory_space<vmem>>, vector<1x64x9xbf16>
    %346 = vector.shape_cast %345 : vector<1x64x9xbf16> to vector<64x9xbf16>
    %c2_350 = arith.constant 2 : index
    %c0_351 = arith.constant 0 : index
    %c0_352 = arith.constant 0 : index
    %347 = vector.load %arg2[%c2_350, %c0_351, %c0_352] : memref<3x9x128xbf16, #tpu.memory_space<vmem>>, vector<1x9x128xbf16>
    %348 = vector.shape_cast %347 : vector<1x9x128xbf16> to vector<9x128xbf16>
    %cst_353 = arith.constant dense<0.000000e+00> : vector<64x128xf32>
    %349 = tpu.matmul %346, %348, %cst_353 {dimension_numbers = #tpu.dot_dimension_numbers<[1], [0], [0], [1], [0, 0, 1, 1], [], []>} : vector<64x9xbf16>, vector<9x128xbf16>, vector<64x128xf32> -> vector<64x128xf32>
    %350 = arith.addf %344, %349 : vector<64x128xf32>
    %cst_354 = arith.constant 0.000000e+00 : f32
    %351 = vector.broadcast %cst_354 : f32 to vector<64x128xf32>
    %352 = arith.maximumf %350, %351 : vector<64x128xf32>
    %cst_355 = arith.constant dense<0.000000e+00> : vector<128xf32>
    %353 = vector.multi_reduction <add>, %352, %cst_355 [0] : vector<64x128xf32> to vector<128xf32>
    %354 = vector.shape_cast %353 : vector<128xf32> to vector<1x128xf32>
    %355 = arith.addf %333, %354 : vector<1x128xf32>
    %356 = tpu.concatenate %88, %177, %266, %355 in 0 : vector<1x128xf32>, vector<1x128xf32>, vector<1x128xf32>, vector<1x128xf32> -> vector<4x128xf32>
    %cst_356 = arith.constant 3.906250e-03 : f32
    %357 = vector.broadcast %cst_356 : f32 to vector<4x128xf32>
    %358 = arith.mulf %356, %357 : vector<4x128xf32>
    %c0_357 = arith.constant 0 : index
    %c0_358 = arith.constant 0 : index
    %c0_359 = arith.constant 0 : index
    %359 = vector.load %arg3[%c0_357, %c0_358, %c0_359] : memref<1x4x128xf32, #tpu.memory_space<vmem>>, vector<1x4x128xf32>
    %360 = vector.shape_cast %359 : vector<1x4x128xf32> to vector<4x128xf32>
    %361 = vector.shape_cast %358 : vector<4x128xf32> to vector<1x4x128xf32>
    tpu.vector_store %arg3[%c0_357, %c0_358, %c0_359], %361 {strides = array<i32>} : memref<1x4x128xf32, #tpu.memory_space<vmem>>, vector<1x4x128xf32>,
    return
  }
  func.func @transform_0(%arg0: i32) -> (i32, i32, i32) {
    %c0_i32 = arith.constant 0 : i32
    %c0_i32_0 = arith.constant 0 : i32
    %c0_i32_1 = arith.constant 0 : i32
    return %arg0, %c0_i32, %c0_i32_0 : i32, i32, i32
  }
  func.func @transform_1(%arg0: i32) -> (i32, i32, i32) {
    %c0_i32 = arith.constant 0 : i32
    %c0_i32_0 = arith.constant 0 : i32
    %c0_i32_1 = arith.constant 0 : i32
    %c0_i32_2 = arith.constant 0 : i32
    return %c0_i32, %c0_i32_0, %c0_i32_1 : i32, i32, i32
  }
  func.func @transform_2(%arg0: i32) -> (i32, i32, i32) {
    %c0_i32 = arith.constant 0 : i32
    %c0_i32_0 = arith.constant 0 : i32
    %c0_i32_1 = arith.constant 0 : i32
    return %arg0, %c0_i32, %c0_i32_0 : i32, i32, i32
  }
}

module attributes {stable_mosaic.version = 11 : i64} {
  func.func @_view_pool_fc_kernel(%arg0: i32, %arg1: memref<2x4x128xf32, #tpu.memory_space<vmem>>, %arg2: memref<128x128xbf16, #tpu.memory_space<vmem>>, %arg3: memref<1x128xf32, #tpu.memory_space<vmem>>, %arg4: memref<2x128xf32, #tpu.memory_space<vmem>>) attributes {dimension_semantics = [#tpu.dimension_semantics<parallel>], iteration_bounds = array<i64: 1>, scalar_prefetch = 0 : i64, scratch_operands = 0 : i64, tpu.core_type = #tpu.core_type<tc>, window_params = [{transform_indices = @transform_0, window_bounds = array<i64: 2, 4, 128>}, {pipeline_mode = #tpu.pipeline_mode<synchronous>, transform_indices = @transform_1, window_bounds = array<i64: 128, 128>}, {pipeline_mode = #tpu.pipeline_mode<synchronous>, transform_indices = @transform_2, window_bounds = array<i64: 1, 128>}, {transform_indices = @transform_3, window_bounds = array<i64: 2, 128>}]} {
    %c0 = arith.constant 0 : index
    %c0_0 = arith.constant 0 : index
    %c0_1 = arith.constant 0 : index
    %0 = vector.load %arg1[%c0, %c0_0, %c0_1] : memref<2x4x128xf32, #tpu.memory_space<vmem>>, vector<2x4x128xf32>
    %cst = arith.constant dense<0xFF800000> : vector<2x128xf32>
    %1 = vector.multi_reduction <maximumf>, %0, %cst [1] : vector<2x4x128xf32> to vector<2x128xf32>
    %2 = arith.truncf %1 : vector<2x128xf32> to vector<2x128xbf16>
    %c0_2 = arith.constant 0 : index
    %c0_3 = arith.constant 0 : index
    %3 = vector.load %arg2[%c0_2, %c0_3] : memref<128x128xbf16, #tpu.memory_space<vmem>>, vector<128x128xbf16>
    %cst_4 = arith.constant dense<0.000000e+00> : vector<2x128xf32>
    %4 = tpu.matmul %2, %3, %cst_4 {dimension_numbers = #tpu.dot_dimension_numbers<[1], [0], [0], [1], [0, 0, 1, 1], [], []>} : vector<2x128xbf16>, vector<128x128xbf16>, vector<2x128xf32> -> vector<2x128xf32>
    %c0_5 = arith.constant 0 : index
    %c0_6 = arith.constant 0 : index
    %5 = vector.load %arg3[%c0_5, %c0_6] : memref<1x128xf32, #tpu.memory_space<vmem>>, vector<1x128xf32>
    %6 = vector.broadcast %5 : vector<1x128xf32> to vector<2x128xf32>
    %7 = arith.addf %4, %6 : vector<2x128xf32>
    %c0_7 = arith.constant 0 : index
    %c0_8 = arith.constant 0 : index
    %8 = vector.load %arg4[%c0_7, %c0_8] : memref<2x128xf32, #tpu.memory_space<vmem>>, vector<2x128xf32>
    tpu.vector_store %arg4[%c0_7, %c0_8], %7 {strides = array<i32>} : memref<2x128xf32, #tpu.memory_space<vmem>>, vector<2x128xf32>,
    return
  }
  func.func @transform_0(%arg0: i32) -> (i32, i32, i32) {
    %c0_i32 = arith.constant 0 : i32
    %c0_i32_0 = arith.constant 0 : i32
    %c0_i32_1 = arith.constant 0 : i32
    return %arg0, %c0_i32, %c0_i32_0 : i32, i32, i32
  }
  func.func @transform_1(%arg0: i32) -> (i32, i32) {
    %c0_i32 = arith.constant 0 : i32
    %c0_i32_0 = arith.constant 0 : i32
    %c0_i32_1 = arith.constant 0 : i32
    return %c0_i32, %c0_i32_0 : i32, i32
  }
  func.func @transform_2(%arg0: i32) -> (i32, i32) {
    %c0_i32 = arith.constant 0 : i32
    %c0_i32_0 = arith.constant 0 : i32
    %c0_i32_1 = arith.constant 0 : i32
    return %c0_i32, %c0_i32_0 : i32, i32
  }
  func.func @transform_3(%arg0: i32) -> (i32, i32) {
    %c0_i32 = arith.constant 0 : i32
    %c0_i32_0 = arith.constant 0 : i32
    return %arg0, %c0_i32 : i32, i32
  }
}

</mosaic_0001>

<llo_original>
// kernel: _lambda_.3
$region0: #{_lambda_.3}
  #allocation0 [shape = 'u32[]', space=smem, size = 0x4, offset = 0x4, fixed_abs, tag = 'smem constant byte address 0x4 - core index']
  #allocation1 [shape = 'u32[144,128]{1,0:T(1,128)}', space=vmem, size = 0x12000, scoped, tag = 'internal scratch']
  %s0 = inlined_call_operand.vmem [shape: f32[2,4,128], index: 0, kind: input, shape index: {}]
  %s1 = inlined_call_operand.vmem [shape: bf16[128,128], index: 1, kind: input, shape index: {}]
  %s2 = inlined_call_operand.vmem [shape: f32[1,128], index: 2, kind: input, shape index: {}]
  %s3 = inlined_call_operand.hbm [shape: f32[2,128], index: 3, kind: output, shape index: {}]
  %s4 = sld [smem:[#allocation0]]
  $region22: #{_lambda_.3} parent=0
    _
  %s6 = ssub.s32 1, %s4
  %s7 = scalar_select 0, %s6, %s4
  $region1: #{_lambda_.3} parent=0
    #allocation2 [shape = 'u8[1024]{0}', space=vmem, size = 0x400, scoped, tag = 'output window, operand 0, single buffered']
    #allocation3 [shape = 's32[1]{0}', space=sflag, size = 0x4, scoped, tag = 'scoped memory for _lambda_.3']
    %8 = vsyncpa [#allocation3], 0
    // Predicated region
    $region2: #{_lambda_.3} parent=1 // pred_check
      _
    $region3: #{_lambda_.3} parent=1 // pred_check_branch
      %10 = sbr.rel (0) target = $region5
    $region4: #{_lambda_.3} parent=1 // pred_region
      _
    $region5: #{_lambda_.3} parent=1 // pred_fallthru
      _
    // Predicated region
    $region6: #{_lambda_.3} parent=1 // pred_check
      _
    $region7: #{_lambda_.3} parent=1 // pred_check_branch
      %12 = sbr.rel (0) target = $region9
    $region8: #{_lambda_.3} parent=1 // pred_region
      _
    $region9: #{_lambda_.3} parent=1 // pred_fallthru
      _
    // Predicated region
    $region10: #{_lambda_.3} parent=1 // pred_check
      _
    $region11: #{_lambda_.3} parent=1 // pred_check_branch
      %14 = sbr.rel (0) target = $region13
    $region12: #{_lambda_.3} parent=1 // pred_region
      _
    $region13: #{_lambda_.3} parent=1 // pred_fallthru
      _
    %v16 = vld [vmem:[%s0] sm:$0xf]
    %v17 = vld [vmem:[%s0 + $0x4] sm:$0xf]
    %vm18 = vcmask 1043456
    %v19 = vsel %vm18, %v16, -inf
    %v20 = vrot.slane %v19, 4
    %v21 = vmax.f32 %v19, %v20
    %v22 = vrot.slane %v21, 2
    %v23 = vmax.f32 %v21, %v22
    %v24 = vrot.slane %v23, 1
    %v25 = vmax.f32 %v23, %v24
    %v26 = vsel %vm18, %v17, -inf
    %v27 = vrot.slane %v26, 4
    %v28 = vmax.f32 %v26, %v27
    %v29 = vrot.slane %v28, 2
    %v30 = vmax.f32 %v28, %v29
    %v31 = vrot.slane %v30, 1
    %v32 = vmax.f32 %v30, %v31
    %v33 = vpack.c.bf16 %v25, %v25
    %v34 = vpack.c.bf16 %v32, %v32
    %v35 = vld [vmem:[%s1] sm:$0xf]
    %v36 = vld [vmem:[%s1 + $0x4] sm:$0xf]
    %v37 = vld [vmem:[%s1 + $0x8] sm:$0xf]
    %v38 = vld [vmem:[%s1 + $0xc] sm:$0xf]
    %v39 = vld [vmem:[%s1 + $0x10] sm:$0xf]
    %v40 = vld [vmem:[%s1 + $0x14] sm:$0xf]
    %v41 = vld [vmem:[%s1 + $0x18] sm:$0xf]
    %v42 = vld [vmem:[%s1 + $0x1c] sm:$0xf]
    %v43 = vld [vmem:[%s1 + $0x20] sm:$0xf]
    %v44 = vld [vmem:[%s1 + $0x24] sm:$0xf]
    %v45 = vld [vmem:[%s1 + $0x28] sm:$0xf]
    %v46 = vld [vmem:[%s1 + $0x2c] sm:$0xf]
    %v47 = vld [vmem:[%s1 + $0x30] sm:$0xf]
    %v48 = vld [vmem:[%s1 + $0x34] sm:$0xf]
    %v49 = vld [vmem:[%s1 + $0x38] sm:$0xf]
    %v50 = vld [vmem:[%s1 + $0x3c] sm:$0xf]
    %v51 = vld [vmem:[%s2] sm:$0x1]
    %v53 = vlaneseq
    %v54 = vshrl.u32 %v53, 7
    %v55 = vsub.s32 0, %v54
    %v56 = vrot.slane %v51, %v55
    %v60 = vunpack.c.l.b16 %v33
    %v61 = vunpack.c.l.b16 %v34
    %vm62 = vcmask 1041409
    %v63 = vsel %vm62, %v61, %v60
    %v64 = vpack.c.b16 %v63, %v63
    %v82 = vunpack.c.l.b16 %v35
    %v83 = vunpack.c.l.b16 %v36
    %v84 = vunpack.c.l.b16 %v37
    %v85 = vunpack.c.l.b16 %v38
    %v86 = vunpack.c.l.b16 %v39
    %v87 = vunpack.c.l.b16 %v40
    %v88 = vunpack.c.l.b16 %v41
    %v89 = vunpack.c.l.b16 %v42
    %v90 = vunpack.c.l.b16 %v43
    %v91 = vunpack.c.l.b16 %v44
    %v92 = vunpack.c.l.b16 %v45
    %v93 = vunpack.c.l.b16 %v46
    %v94 = vunpack.c.l.b16 %v47
    %v95 = vunpack.c.l.b16 %v48
    %v96 = vunpack.c.l.b16 %v49
    %v97 = vunpack.c.l.b16 %v50
    %v98 = vpack.c.b16 %v83, %v82
    %v99 = vpack.c.b16 %v85, %v84
    %v100 = vpack.c.b16 %v87, %v86
    %v101 = vpack.c.b16 %v89, %v88
    %v102 = vpack.c.b16 %v91, %v90
    %v103 = vpack.c.b16 %v93, %v92
    %v104 = vpack.c.b16 %v95, %v94
    %v105 = vpack.c.b16 %v97, %v96
    %114 = vmatprep.subr.bf16.mxu0 0
    %115 = vmatpush1.bf16.msra.mxu0 %v105
    %116 = vmatprep.subr.bf16.mxu0 0
    %117 = vmatpush1.bf16.msra.mxu0 %v104
    %118 = vmatprep.subr.bf16.mxu0 0
    %119 = vmatpush1.bf16.msra.mxu0 %v103
    %120 = vmatprep.subr.bf16.mxu0 0
    %121 = vmatpush1.bf16.msra.mxu0 %v102
    %122 = vmatprep.subr.bf16.mxu0 0
    %123 = vmatpush1.bf16.msra.mxu0 %v101
    %124 = vmatprep.subr.bf16.mxu0 0
    %125 = vmatpush1.bf16.msra.mxu0 %v100
    %126 = vmatprep.subr.bf16.mxu0 0
    %127 = vmatpush1.bf16.msra.mxu0 %v99
    %128 = vmatprep.subr.bf16.mxu0 0
    %129 = vmatpush1.bf16.msra.mxu0 %v98
    %130 = vmatprep.subr.bf16.mxu0 0
    %131 = vmatpush2.bf16.msra.mxu0 0
    %132 = vmatprep.subr.bf16.mxu0 0
    %133 = vmatpush2.bf16.msra.mxu0 0
    %134 = vmatprep.subr.bf16.mxu0 0
    %135 = vmatpush2.bf16.msra.mxu0 0
    %136 = vmatprep.subr.bf16.mxu0 0
    %137 = vmatpush2.bf16.msra.mxu0 0
    %138 = vmatprep.subr.bf16.mxu0 0
    %139 = vmatpush2.bf16.msra.mxu0 0
    %140 = vmatprep.subr.bf16.mxu0 0
    %141 = vmatpush2.bf16.msra.mxu0 0
    %142 = vmatprep.subr.bf16.mxu0 0
    %143 = vmatpush2.bf16.msra.mxu0 0
    %144 = vmatprep.subr.bf16.mxu0 0
    %145 = vmatpush2.bf16.msra.mxu0 0
    %146 = vmatprep.mubr.bf16.mxu0 0
    %147 = vmatmul.mubr.bf16.gmra.mxu0 %v64
    %v148 = vpop.f32.mrf.mxu0
    %v149 = vadd.f32 %v56, %v148
    %v150 = vpop.f32.mrf.mxu0
    %v151 = vpop.f32.mrf.mxu0
    %v152 = vpop.f32.mrf.mxu0
    %153 = vdwg.mxu0
    %154 = vst [vmem:[#allocation2] sm:$0x3] %v149
    // Predicated region
    $region14: #{_lambda_.3} parent=1 // pred_check
      _
    $region15: #{_lambda_.3} parent=1 // pred_check_branch
      %156 = sbr.rel (0) target = $region17
    $region16: #{_lambda_.3} parent=1 // pred_region
      %s158 = ssub.s32 32, 32
      %159 = vsyncadd [#allocation3], %s158
      %s161 = sshll.u32 [#allocation2], 4
      %s162 = int_to_ptr.vmem [resolvable:$true] %s161
      %164 = dma.vmem_to_hbm [thread:$0]  %s162, 32, %s3, [#allocation3]
    $region17: #{_lambda_.3} parent=1 // pred_fallthru
      _
    // Predicated region
    $region18: #{_lambda_.3} parent=1 // pred_check
      _
    $region19: #{_lambda_.3} parent=1 // pred_check_branch
      %166 = sbr.rel (0) target = $region21
    $region20: #{_lambda_.3} parent=1 // pred_region
      %167 = dma.done [#allocation3], 32
    $region21: #{_lambda_.3} parent=1 // pred_fallthru
      _
    %168 = vsyncpa [#allocation3], 1

// kernel: _lambda_.2
$region0: #{_lambda_.2}
  #allocation0 [shape = 'u32[]', space=smem, size = 0x4, offset = 0x4, fixed_abs, tag = 'smem constant byte address 0x4 - core index']
  #allocation1 [shape = 'u32[144,128]{1,0:T(1,128)}', space=vmem, size = 0x12000, scoped, tag = 'internal scratch']
  %s0 = inlined_call_operand.vmem [shape: bf16[8,288,9], index: 0, kind: input, shape index: {}]
  %s1 = inlined_call_operand.vmem [shape: bf16[3,9,128], index: 1, kind: input, shape index: {}]
  %s2 = inlined_call_operand.vmem [shape: f32[2,4,128], index: 2, kind: output, shape index: {}]
  %s3 = sld [smem:[#allocation0]]
  $region41: #{_lambda_.2} parent=0
    _
  %s5 = ssub.s32 1, %s3
  %s6 = scalar_select 0, %s5, %s3
  loop: start=0, step=1, limit=4
  $region2: #{_lambda_.2} parent=0 // loop_pre_header
    _
  $region3: #{_lambda_.2} parent=0 // loop_header
    %s8 = sphi 0, %s12
    %p9 = scmp.ge.s32.totalorder %s8, 4
    %s18 = sphi 0, %s20
    %s21 = sphi 0, %s18
    %s22 = sphi 0, %s21
    %s38 = sphi 0, %s22
    %s42 = sphi 0, %s42
    %s44 = sphi 0, %s42
    %s45 = sphi 0, %s44
    %s59 = sphi 0, %s45
    %s65 = sphi 0, %s67
    %s68 = sphi 0, %s65
    %s69 = sphi 0, %s68
    %s85 = sphi 0, %s69
  $region4: #{_lambda_.2} parent=0 // loop_header_branch
    %11 = sbr.rel (%p9) target = $region8
  $region5: #{_lambda_.2} parent=0 // loop_body
    %s13 = ssub.s32 %s8, 1
    %s14 = ssub.s32 %s8, 2
    %s15 = sadd.s32 %s8, 1
    %s16 = ssub.s32 %s8, %s15
    %p17 = scmp.eq.s32.totalorder %s16, 0
    %s19 = sadd.s32 %s18, 1
    %s20 = scalar_select %p17, %s18, %s19
    %p23 = pneg %p17
    %p24 = scmp.eq.s32.totalorder %s8, 1
    %p25 = por %p23, %p24
    %p26 = scmp.ne.s32.totalorder %s18, %s21
    %p27 = scmp.eq.s32.totalorder %s8, 0
    %p28 = por %p26, %p27
    %p29 = scmp.ne.s32.totalorder %s18, %s21
    %p30 = scmp.eq.s32.totalorder %s13, 1
    %p31 = por %p29, %p30
    %p32 = scmp.ne.s32.totalorder %s21, %s22
    %p33 = scmp.eq.s32.totalorder %s13, 0
    %p34 = por %p32, %p33
    %p35 = scmp.ne.s32.totalorder %s21, %s22
    %p36 = scmp.eq.s32.totalorder %s14, 1
    %p37 = por %p35, %p36
    %p39 = scmp.ne.s32.totalorder %s22, %s38
    %p40 = scmp.eq.s32.totalorder %s14, 0
    %p41 = por %p39, %p40
    %s43 = sadd.s32 %s42, 1
    %p46 = scmp.eq.s32.totalorder %s8, 1
    %p47 = scmp.ne.s32.totalorder %s42, %s44
    %p48 = scmp.eq.s32.totalorder %s8, 0
    %p49 = por %p47, %p48
    %p50 = scmp.ne.s32.totalorder %s42, %s44
    %p51 = scmp.eq.s32.totalorder %s13, 1
    %p52 = por %p50, %p51
    %p53 = scmp.ne.s32.totalorder %s44, %s45
    %p54 = scmp.eq.s32.totalorder %s13, 0
    %p55 = por %p53, %p54
    %p56 = scmp.ne.s32.totalorder %s44, %s45
    %p57 = scmp.eq.s32.totalorder %s14, 1
    %p58 = por %p56, %p57
    %p60 = scmp.ne.s32.totalorder %s45, %s59
    %p61 = scmp.eq.s32.totalorder %s14, 0
    %p62 = por %p60, %p61
    %s63 = ssub.s32 %s8, %s15
    %p64 = scmp.eq.s32.totalorder %s63, 0
    %s66 = sadd.s32 %s65, 1
    %s67 = scalar_select %p64, %s65, %s66
    %p70 = pneg %p64
    %p71 = scmp.eq.s32.totalorder %s8, 1
    %p72 = por %p70, %p71
    %p73 = scmp.ne.s32.totalorder %s65, %s68
    %p74 = scmp.eq.s32.totalorder %s8, 0
    %p75 = por %p73, %p74
    %p76 = scmp.ne.s32.totalorder %s65, %s68
    %p77 = scmp.eq.s32.totalorder %s13, 1
    %p78 = por %p76, %p77
    %p79 = scmp.ne.s32.totalorder %s68, %s69
    %p80 = scmp.eq.s32.totalorder %s13, 0
    %p81 = por %p79, %p80
    %p82 = scmp.ne.s32.totalorder %s68, %s69
    %p83 = scmp.eq.s32.totalorder %s14, 1
    %p84 = por %p82, %p83
    %p86 = scmp.ne.s32.totalorder %s69, %s85
    %p87 = scmp.eq.s32.totalorder %s14, 0
    %p88 = por %p86, %p87
    %p89 = scmp.le.s32.totalorder 1, %s8
    %p90 = scmp.lt.s32.totalorder %s8, 3
    %p91 = pnand %p89, %p90
    %p92 = pneg %p91
    // Predicated region
    $region9: #{_lambda_.2} parent=5 // pred_check
      _
    $region10: #{_lambda_.2} parent=5 // pred_check_branch
      %94 = sbr.rel (%p91) target = $region12
    $region11: #{_lambda_.2} parent=5 // pred_region
      %s95 = ssub.s32 %s8, 1
      // Predicated region
      $region13: #{_lambda_.2} parent=11 // pred_check
        %p96 = pneg %p55
      $region14: #{_lambda_.2} parent=11 // pred_check_branch
        %98 = sbr.rel (%p96) target = $region16
      $region15: #{_lambda_.2} parent=11 // pred_region
        _
      $region16: #{_lambda_.2} parent=11 // pred_fallthru
        _
    $region12: #{_lambda_.2} parent=5 // pred_fallthru
      _
    %p99 = scmp.lt.s32.totalorder %s8, 2
    // Predicated region
    $region17: #{_lambda_.2} parent=5 // pred_check
      %p100 = pneg %p99
    $region18: #{_lambda_.2} parent=5 // pred_check_branch
      %102 = sbr.rel (%p100) target = $region20
    $region19: #{_lambda_.2} parent=5 // pred_region
      // Predicated region
      $region21: #{_lambda_.2} parent=19 // pred_check
        %p103 = pneg %p28
      $region22: #{_lambda_.2} parent=19 // pred_check_branch
        %105 = sbr.rel (%p103) target = $region24
      $region23: #{_lambda_.2} parent=19 // pred_region
        %s106 = smul.u32 4, %s8
        %p107 = scmp.lt.s32.totalorder %s106, 7
        %s108 = scalar_select %p107, %s106, 7
        %s109 = smul.addr %s108, 36
        %s110 = smul.addr %s109, 4
        %s111 = scalar_lea.vmem %s0, %s110
        %s112 = smul.u32 4, %s8
      $region24: #{_lambda_.2} parent=19 // pred_fallthru
        _
    $region20: #{_lambda_.2} parent=5 // pred_fallthru
      _
    %p113 = scmp.le.s32.totalorder 1, %s8
    %p114 = scmp.lt.s32.totalorder %s8, 3
    %p115 = pnand %p113, %p114
    %p116 = pneg %p115
    // Predicated region
    $region25: #{_lambda_.2} parent=5 // pred_check
      _
    $region26: #{_lambda_.2} parent=5 // pred_check_branch
      %118 = sbr.rel (%p115) target = $region28
    $region27: #{_lambda_.2} parent=5 // pred_region
      %s119 = ssub.s32 %s8, 1
      %s120 = smul.u32 4, %s13
      %p121 = scmp.lt.s32.totalorder %s120, 7
      %s122 = scalar_select %p121, %s120, 7
      %s123 = smul.addr %s122, 36
      %s124 = smul.addr %s123, 4
      %s125 = scalar_lea.vmem %s0, %s124
      %p126 = pneg %p34
      %p127 = pneg %p31
      %p128 = pneg %p55
      %p129 = pneg %p52
      %p130 = pneg %p81
      %p131 = pneg %p78
      %p132 = scmp.lt.s32.totalorder %s13, 1
      %s133 = scalar_select %p132, %s13, 1
      %s134 = smul.addr %s133, 4
      %s135 = scalar_lea.vmem %s2, %s134
      %s136 = smul.u32 4, %s13
      %p137 = scmp.lt.s32.totalorder %s136, 7
      %s138 = scalar_select %p137, %s136, 7
      %s139 = smul.addr %s138, 36
      %s140 = smul.addr %s139, 4
      %s141 = scalar_lea.vmem %s0, %s140
      %s142 = smul.u32 4, %s13
      %p143 = scmp.lt.s32.totalorder %s13, 1
      %s144 = scalar_select %p143, %s13, 1
      %s145 = smul.addr %s144, 4
      %s146 = scalar_lea.vmem %s2, %s145
      %v148 = vld [vmem:[%s141] sm:$0xf]
      %v149 = vld [vmem:[%s141 + $0x4] sm:$0xf]
      %v150 = vld [vmem:[%s141 + $0x8] sm:$0xf]
      %v151 = vld [vmem:[%s141 + $0xc] sm:$0xf]
      %v152 = vld [vmem:[%s141 + $0x10] sm:$0xf]
      %v153 = vld [vmem:[%s141 + $0x14] sm:$0xf]
      %v154 = vld [vmem:[%s141 + $0x18] sm:$0xf]
      %v155 = vld [vmem:[%s141 + $0x1c] sm:$0xf]
      %v156 = vld [vmem:[%s1] sm:$0xf]
      %v157 = vld [vmem:[%s1 + $0x4] sm:$0x1]
      %v158 = vld [vmem:[%s141 + $0x20] sm:$0xf]
      %v159 = vld [vmem:[%s141 + $0x24] sm:$0xf]
      %s160 = scalar_lea.vmem %s1, 8
      %v161 = vld [vmem:[%s160] sm:$0xf]
      %v162 = vld [vmem:[%s160 + $0x4] sm:$0x1]
      %v171 = vunpack.c.l.b16 %v150
      %v172 = vunpack.c.l.b16 %v151
      %v173 = vunpack.c.l.b16 %v152
      %v174 = vunpack.c.l.b16 %v153
      %v175 = vunpack.c.l.b16 %v154
      %v176 = vunpack.c.l.b16 %v155
      %v177 = vunpack.c.l.b16 %v158
      %v178 = vunpack.c.l.b16 %v159
      %v179 = vpack.c.b16 %v172, %v171
      %v180 = vpack.c.b16 %v174, %v173
      %v181 = vpack.c.b16 %v176, %v175
      %v182 = vpack.c.b16 %v178, %v177
      %v185 = vunpack.c.l.b16 %v161
      %v186 = vunpack.c.l.b16 %v162
      %v187 = vpack.c.b16 %v186, %v185
      %vm188 = vcmask 72704
      %v190 = vsel %vm188, %v179, 0
      %v193 = vsel %vm188, %v180, 0
      %v196 = vsel %vm188, %v181, 0
      %v199 = vsel %vm188, %v182, 0
      %vm201 = vcmask 1043456
      %vm202 = vcmask 1044480
      %v203 = vsel %vm201, 4294967295, 65535
      %v204 = vsel %vm202, %v203, 0
      %v206 = vand.u32 %v187, %v204
      %208 = vmatprep.subr.bf16.mxu0 0
      %209 = vmatpush1.bf16.msra.mxu0 0
      %210 = vmatprep.subr.bf16.mxu0 0
      %211 = vmatpush1.bf16.msra.mxu0 0
      %212 = vmatprep.subr.bf16.mxu0 0
      %213 = vmatpush1.bf16.msra.mxu0 0
      %214 = vmatprep.subr.bf16.mxu0 0
      %215 = vmatpush1.bf16.msra.mxu0 0
      %216 = vmatprep.subr.bf16.mxu0 0
      %217 = vmatpush1.bf16.msra.mxu0 0
      %218 = vmatprep.subr.bf16.mxu0 0
      %219 = vmatpush1.bf16.msra.mxu0 0
      %220 = vmatprep.subr.bf16.mxu0 0
      %221 = vmatpush1.bf16.msra.mxu0 0
      %222 = vmatprep.subr.bf16.mxu0 0
      %223 = vmatpush1.bf16.msra.mxu0 %v206
      %224 = vmatprep.subr.bf16.mxu0 0
      %225 = vmatpush2.bf16.msra.mxu0 0
      %226 = vmatprep.subr.bf16.mxu0 0
      %227 = vmatpush2.bf16.msra.mxu0 0
      %228 = vmatprep.subr.bf16.mxu0 0
      %229 = vmatpush2.bf16.msra.mxu0 0
      %230 = vmatprep.subr.bf16.mxu0 0
      %231 = vmatpush2.bf16.msra.mxu0 0
      %232 = vmatprep.subr.bf16.mxu0 0
      %233 = vmatpush2.bf16.msra.mxu0 0
      %234 = vmatprep.subr.bf16.mxu0 0
      %235 = vmatpush2.bf16.msra.mxu0 0
      %236 = vmatprep.subr.bf16.mxu0 0
      %237 = vmatpush2.bf16.msra.mxu0 0
      %238 = vmatprep.subr.bf16.mxu0 0
      %239 = vmatpush2.bf16.msra.mxu0 0
      %240 = vmatprep.mubr.bf16.mxu0 0
      %241 = vmatmul.mubr.bf16.gmra.mxu0 %v190
      %v242 = vpop.f32.mrf.mxu0
      %v243 = vadd.f32 0.0, %v242
      %v244 = vpop.f32.mrf.mxu0
      %v245 = vpop.f32.mrf.mxu0
      %v246 = vadd.f32 0.0, %v245
      %v247 = vpop.f32.mrf.mxu0
      %248 = vmatprep.mubr.bf16.mxu0 0
      %249 = vmatmul.mubr.bf16.gmra.mxu0 %v193
      %v250 = vpop.f32.mrf.mxu0
      %v251 = vadd.f32 0.0, %v250
      %v252 = vpop.f32.mrf.mxu0
      %v253 = vpop.f32.mrf.mxu0
      %v254 = vadd.f32 0.0, %v253
      %v255 = vpop.f32.mrf.mxu0
      %256 = vmatprep.mubr.bf16.mxu0 0
      %257 = vmatmul.mubr.bf16.gmra.mxu0 %v196
      %v258 = vpop.f32.mrf.mxu0
      %v259 = vadd.f32 0.0, %v258
      %v260 = vpop.f32.mrf.mxu0
      %v261 = vpop.f32.mrf.mxu0
      %v262 = vadd.f32 0.0, %v261
      %v263 = vpop.f32.mrf.mxu0
      %264 = vmatprep.mubr.bf16.mxu0 0
      %265 = vmatmul.mubr.bf16.gmra.mxu0 %v199
      %v266 = vpop.f32.mrf.mxu0
      %v267 = vadd.f32 0.0, %v266
      %v268 = vpop.f32.mrf.mxu0
      %v269 = vpop.f32.mrf.mxu0
      %v270 = vadd.f32 0.0, %v269
      %v271 = vpop.f32.mrf.mxu0
      %272 = vdwg.mxu0
      %v275 = vunpack.c.l.b16 %v148
      %v276 = vunpack.c.l.b16 %v149
      %v277 = vpack.c.b16 %v276, %v275
      %v280 = vunpack.c.l.b16 %v156
      %v281 = vunpack.c.l.b16 %v157
      %v282 = vpack.c.b16 %v281, %v280
      %v284 = vsel %vm188, %v277, 0
      %v287 = vand.u32 %v282, %v204
      %289 = vmatprep.subr.bf16.mxu0 0
      %290 = vmatpush1.bf16.msra.mxu0 0
      %291 = vmatprep.subr.bf16.mxu0 0
      %292 = vmatpush1.bf16.msra.mxu0 0
      %293 = vmatprep.subr.bf16.mxu0 0
      %294 = vmatpush1.bf16.msra.mxu0 0
      %295 = vmatprep.subr.bf16.mxu0 0
      %296 = vmatpush1.bf16.msra.mxu0 0
      %297 = vmatprep.subr.bf16.mxu0 0
      %298 = vmatpush1.bf16.msra.mxu0 0
      %299 = vmatprep.subr.bf16.mxu0 0
      %300 = vmatpush1.bf16.msra.mxu0 0
      %301 = vmatprep.subr.bf16.mxu0 0
      %302 = vmatpush1.bf16.msra.mxu0 0
      %303 = vmatprep.subr.bf16.mxu0 0
      %304 = vmatpush1.bf16.msra.mxu0 %v287
      %305 = vmatprep.subr.bf16.mxu0 0
      %306 = vmatpush2.bf16.msra.mxu0 0
      %307 = vmatprep.subr.bf16.mxu0 0
      %308 = vmatpush2.bf16.msra.mxu0 0
      %309 = vmatprep.subr.bf16.mxu0 0
      %310 = vmatpush2.bf16.msra.mxu0 0
      %311 = vmatprep.subr.bf16.mxu0 0
      %312 = vmatpush2.bf16.msra.mxu0 0
      %313 = vmatprep.subr.bf16.mxu0 0
      %314 = vmatpush2.bf16.msra.mxu0 0
      %315 = vmatprep.subr.bf16.mxu0 0
      %316 = vmatpush2.bf16.msra.mxu0 0
      %317 = vmatprep.subr.bf16.mxu0 0
      %318 = vmatpush2.bf16.msra.mxu0 0
      %319 = vmatprep.subr.bf16.mxu0 0
      %320 = vmatpush2.bf16.msra.mxu0 0
      %321 = vmatprep.mubr.bf16.mxu0 0
      %322 = vmatmul.mubr.bf16.gmra.mxu0 %v284
      %v323 = vpop.f32.mrf.mxu0
      %v324 = vadd.f32 %v243, %v323
      %v325 = vpop.f32.mrf.mxu0
      %v326 = vpop.f32.mrf.mxu0
      %v327 = vadd.f32 %v246, %v326
      %v328 = vpop.f32.mrf.mxu0
      %329 = vmatprep.mubr.bf16.mxu0 0
      %330 = vmatmul.mubr.bf16.gmra.mxu0 %v190
      %v331 = vpop.f32.mrf.mxu0
      %v332 = vadd.f32 %v251, %v331
      %v333 = vpop.f32.mrf.mxu0
      %v334 = vpop.f32.mrf.mxu0
      %v335 = vadd.f32 %v254, %v334
      %v336 = vpop.f32.mrf.mxu0
      %337 = vmatprep.mubr.bf16.mxu0 0
      %338 = vmatmul.mubr.bf16.gmra.mxu0 %v193
      %v339 = vpop.f32.mrf.mxu0
      %v340 = vadd.f32 %v259, %v339
      %v341 = vpop.f32.mrf.mxu0
      %v342 = vpop.f32.mrf.mxu0
      %v343 = vadd.f32 %v262, %v342
      %v344 = vpop.f32.mrf.mxu0
      %345 = vmatprep.mubr.bf16.mxu0 0
      %346 = vmatmul.mubr.bf16.gmra.mxu0 %v196
      %v347 = vpop.f32.mrf.mxu0
      %v348 = vadd.f32 %v267, %v347
      %v349 = vpop.f32.mrf.mxu0
      %v350 = vpop.f32.mrf.mxu0
      %v351 = vadd.f32 %v270, %v350
      %v352 = vpop.f32.mrf.mxu0
      %353 = vdwg.mxu0
      %v354 = vld [vmem:[%s141 + $0x10] sm:$0xf]
      %v355 = vld [vmem:[%s141 + $0x14] sm:$0xf]
      %v356 = vld [vmem:[%s141 + $0x18] sm:$0xf]
      %v357 = vld [vmem:[%s141 + $0x1c] sm:$0xf]
      %v358 = vld [vmem:[%s141 + $0x20] sm:$0xf]
      %v359 = vld [vmem:[%s141 + $0x24] sm:$0xf]
      %v360 = vld [vmem:[%s141 + $0x28] sm:$0xf]
      %v361 = vld [vmem:[%s141 + $0x2c] sm:$0xf]
      %s362 = scalar_lea.vmem %s1, 16
      %v363 = vld [vmem:[%s362] sm:$0xf]
      %v364 = vld [vmem:[%s362 + $0x4] sm:$0x1]
      %v373 = vunpack.c.l.b16 %v354
      %v374 = vunpack.c.l.b16 %v355
      %v375 = vunpack.c.l.b16 %v356
      %v376 = vunpack.c.l.b16 %v357
      %v377 = vunpack.c.l.b16 %v358
      %v378 = vunpack.c.l.b16 %v359
      %v379 = vunpack.c.l.b16 %v360
      %v380 = vunpack.c.l.b16 %v361
      %v381 = vpack.c.b16 %v374, %v373
      %v382 = vpack.c.b16 %v376, %v375
      %v383 = vpack.c.b16 %v378, %v377
      %v384 = vpack.c.b16 %v380, %v379
      %v387 = vunpack.c.l.b16 %v363
      %v388 = vunpack.c.l.b16 %v364
      %v389 = vpack.c.b16 %v388, %v387
      %v391 = vsel %vm188, %v381, 0
      %v394 = vsel %vm188, %v382, 0
      %v397 = vsel %vm188, %v383, 0
      %v400 = vsel %vm188, %v384, 0
      %v403 = vand.u32 %v389, %v204
      %405 = vmatprep.subr.bf16.mxu0 0
      %406 = vmatpush1.bf16.msra.mxu0 0
      %407 = vmatprep.subr.bf16.mxu0 0
      %408 = vmatpush1.bf16.msra.mxu0 0
      %409 = vmatprep.subr.bf16.mxu0 0
      %410 = vmatpush1.bf16.msra.mxu0 0
      %411 = vmatprep.subr.bf16.mxu0 0
      %412 = vmatpush1.bf16.msra.mxu0 0
      %413 = vmatprep.subr.bf16.mxu0 0
      %414 = vmatpush1.bf16.msra.mxu0 0
      %415 = vmatprep.subr.bf16.mxu0 0
      %416 = vmatpush1.bf16.msra.mxu0 0
      %417 = vmatprep.subr.bf16.mxu0 0
      %418 = vmatpush1.bf16.msra.mxu0 0
      %419 = vmatprep.subr.bf16.mxu0 0
      %420 = vmatpush1.bf16.msra.mxu0 %v403
      %421 = vmatprep.subr.bf16.mxu0 0
      %422 = vmatpush2.bf16.msra.mxu0 0
      %423 = vmatprep.subr.bf16.mxu0 0
      %424 = vmatpush2.bf16.msra.mxu0 0
      %425 = vmatprep.subr.bf16.mxu0 0
      %426 = vmatpush2.bf16.msra.mxu0 0
      %427 = vmatprep.subr.bf16.mxu0 0
      %428 = vmatpush2.bf16.msra.mxu0 0
      %429 = vmatprep.subr.bf16.mxu0 0
      %430 = vmatpush2.bf16.msra.mxu0 0
      %431 = vmatprep.subr.bf16.mxu0 0
      %432 = vmatpush2.bf16.msra.mxu0 0
      %433 = vmatprep.subr.bf16.mxu0 0
      %434 = vmatpush2.bf16.msra.mxu0 0
      %435 = vmatprep.subr.bf16.mxu0 0
      %436 = vmatpush2.bf16.msra.mxu0 0
      %437 = vmatprep.mubr.bf16.mxu0 0
      %438 = vmatmul.mubr.bf16.gmra.mxu0 %v391
      %v439 = vpop.f32.mrf.mxu0
      %v440 = vadd.f32 0.0, %v439
      %v441 = vpop.f32.mrf.mxu0
      %v442 = vpop.f32.mrf.mxu0
      %v443 = vadd.f32 0.0, %v442
      %v444 = vpop.f32.mrf.mxu0
      %445 = vmatprep.mubr.bf16.mxu0 0
      %446 = vmatmul.mubr.bf16.gmra.mxu0 %v394
      %v447 = vpop.f32.mrf.mxu0
      %v448 = vadd.f32 0.0, %v447
      %v449 = vpop.f32.mrf.mxu0
      %v450 = vpop.f32.mrf.mxu0
      %v451 = vadd.f32 0.0, %v450
      %v452 = vpop.f32.mrf.mxu0
      %453 = vmatprep.mubr.bf16.mxu0 0
      %454 = vmatmul.mubr.bf16.gmra.mxu0 %v397
      %v455 = vpop.f32.mrf.mxu0
      %v456 = vadd.f32 0.0, %v455
      %v457 = vpop.f32.mrf.mxu0
      %v458 = vpop.f32.mrf.mxu0
      %v459 = vadd.f32 0.0, %v458
      %v460 = vpop.f32.mrf.mxu0
      %461 = vmatprep.mubr.bf16.mxu0 0
      %462 = vmatmul.mubr.bf16.gmra.mxu0 %v400
      %v463 = vpop.f32.mrf.mxu0
      %v464 = vadd.f32 0.0, %v463
      %v465 = vpop.f32.mrf.mxu0
      %v466 = vpop.f32.mrf.mxu0
      %v467 = vadd.f32 0.0, %v466
      %v468 = vpop.f32.mrf.mxu0
      %469 = vdwg.mxu0
      %v470 = vadd.f32 %v324, %v440
      %v471 = vadd.f32 %v327, %v443
      %v472 = vadd.f32 %v332, %v448
      %v473 = vadd.f32 %v335, %v451
      %v474 = vadd.f32 %v340, %v456
      %v475 = vadd.f32 %v343, %v459
      %v476 = vadd.f32 %v348, %v464
      %v477 = vadd.f32 %v351, %v467
      %v478 = vmax.f32 %v470, 0.0
      %v479 = vmax.f32 %v471, 0.0
      %v480 = vmax.f32 %v472, 0.0
      %v481 = vmax.f32 %v473, 0.0
      %v482 = vmax.f32 %v474, 0.0
      %v483 = vmax.f32 %v475, 0.0
      %v484 = vmax.f32 %v476, 0.0
      %v485 = vmax.f32 %v477, 0.0
      %v486 = vadd.f32 %v478, %v479
      %v487 = vadd.f32 %v486, %v480
      %v488 = vadd.f32 %v487, %v481
      %v489 = vadd.f32 %v488, %v482
      %v490 = vadd.f32 %v489, %v483
      %v491 = vadd.f32 %v490, %v484
      %v492 = vadd.f32 %v491, %v485
      %v493 = vrot.slane %v492, 4
      %v494 = vadd.f32 %v492, %v493
      %v495 = vrot.slane %v494, 2
      %v496 = vadd.f32 %v494, %v495
      %v497 = vrot.slane %v496, 1
      %v498 = vadd.f32 %v496, %v497
      %v499 = vadd.f32 %v498, 0.0
      %v500 = vld [vmem:[%s141 + $0x20] sm:$0xf]
      %v501 = vld [vmem:[%s141 + $0x24] sm:$0xf]
      %v502 = vld [vmem:[%s141 + $0x28] sm:$0xf]
      %v503 = vld [vmem:[%s141 + $0x2c] sm:$0xf]
      %v504 = vld [vmem:[%s141 + $0x30] sm:$0xf]
      %v505 = vld [vmem:[%s141 + $0x34] sm:$0xf]
      %v506 = vld [vmem:[%s141 + $0x38] sm:$0xf]
      %v507 = vld [vmem:[%s141 + $0x3c] sm:$0xf]
      %v508 = vld [vmem:[%s141 + $0x40] sm:$0xf]
      %v509 = vld [vmem:[%s141 + $0x44] sm:$0xf]
      %v518 = vunpack.c.l.b16 %v502
      %v519 = vunpack.c.l.b16 %v503
      %v520 = vunpack.c.l.b16 %v504
      %v521 = vunpack.c.l.b16 %v505
      %v522 = vunpack.c.l.b16 %v506
      %v523 = vunpack.c.l.b16 %v507
      %v524 = vunpack.c.l.b16 %v508
      %v525 = vunpack.c.l.b16 %v509
      %v526 = vpack.c.b16 %v519, %v518
      %v527 = vpack.c.b16 %v521, %v520
      %v528 = vpack.c.b16 %v523, %v522
      %v529 = vpack.c.b16 %v525, %v524
      %v531 = vsel %vm188, %v526, 0
      %v534 = vsel %vm188, %v527, 0
      %v537 = vsel %vm188, %v528, 0
      %v540 = vsel %vm188, %v529, 0
      %542 = vmatprep.subr.bf16.mxu0 0
      %543 = vmatpush1.bf16.msra.mxu0 0
      %544 = vmatprep.subr.bf16.mxu0 0
      %545 = vmatpush1.bf16.msra.mxu0 0
      %546 = vmatprep.subr.bf16.mxu0 0
      %547 = vmatpush1.bf16.msra.mxu0 0
      %548 = vmatprep.subr.bf16.mxu0 0
      %549 = vmatpush1.bf16.msra.mxu0 0
      %550 = vmatprep.subr.bf16.mxu0 0
      %551 = vmatpush1.bf16.msra.mxu0 0
      %552 = vmatprep.subr.bf16.mxu0 0
      %553 = vmatpush1.bf16.msra.mxu0 0
      %554 = vmatprep.subr.bf16.mxu0 0
      %555 = vmatpush1.bf16.msra.mxu0 0
      %556 = vmatprep.subr.bf16.mxu0 0
      %557 = vmatpush1.bf16.msra.mxu0 %v206
      %558 = vmatprep.subr.bf16.mxu0 0
      %559 = vmatpush2.bf16.msra.mxu0 0
      %560 = vmatprep.subr.bf16.mxu0 0
      %561 = vmatpush2.bf16.msra.mxu0 0
      %562 = vmatprep.subr.bf16.mxu0 0
      %563 = vmatpush2.bf16.msra.mxu0 0
      %564 = vmatprep.subr.bf16.mxu0 0
      %565 = vmatpush2.bf16.msra.mxu0 0
      %566 = vmatprep.subr.bf16.mxu0 0
      %567 = vmatpush2.bf16.msra.mxu0 0
      %568 = vmatprep.subr.bf16.mxu0 0
      %569 = vmatpush2.bf16.msra.mxu0 0
      %570 = vmatprep.subr.bf16.mxu0 0
      %571 = vmatpush2.bf16.msra.mxu0 0
      %572 = vmatprep.subr.bf16.mxu0 0
      %573 = vmatpush2.bf16.msra.mxu0 0
      %574 = vmatprep.mubr.bf16.mxu0 0
      %575 = vmatmul.mubr.bf16.gmra.mxu0 %v531
      %v576 = vpop.f32.mrf.mxu0
      %v577 = vadd.f32 0.0, %v576
      %v578 = vpop.f32.mrf.mxu0
      %v579 = vpop.f32.mrf.mxu0
      %v580 = vadd.f32 0.0, %v579
      %v581 = vpop.f32.mrf.mxu0
      %582 = vmatprep.mubr.bf16.mxu0 0
      %583 = vmatmul.mubr.bf16.gmra.mxu0 %v534
      %v584 = vpop.f32.mrf.mxu0
      %v585 = vadd.f32 0.0, %v584
      %v586 = vpop.f32.mrf.mxu0
      %v587 = vpop.f32.mrf.mxu0
      %v588 = vadd.f32 0.0, %v587
      %v589 = vpop.f32.mrf.mxu0
      %590 = vmatprep.mubr.bf16.mxu0 0
      %591 = vmatmul.mubr.bf16.gmra.mxu0 %v537
      %v592 = vpop.f32.mrf.mxu0
      %v593 = vadd.f32 0.0, %v592
      %v594 = vpop.f32.mrf.mxu0
      %v595 = vpop.f32.mrf.mxu0
      %v596 = vadd.f32 0.0, %v595
      %v597 = vpop.f32.mrf.mxu0
      %598 = vmatprep.mubr.bf16.mxu0 0
      %599 = vmatmul.mubr.bf16.gmra.mxu0 %v540
      %v600 = vpop.f32.mrf.mxu0
      %v601 = vadd.f32 0.0, %v600
      %v602 = vpop.f32.mrf.mxu0
      %v603 = vpop.f32.mrf.mxu0
      %v604 = vadd.f32 0.0, %v603
      %v605 = vpop.f32.mrf.mxu0
      %606 = vdwg.mxu0
      %v609 = vunpack.c.l.b16 %v500
      %v610 = vunpack.c.l.b16 %v501
      %v611 = vpack.c.b16 %v610, %v609
      %v613 = vsel %vm188, %v611, 0
      %615 = vmatprep.subr.bf16.mxu0 0
      %616 = vmatpush1.bf16.msra.mxu0 0
      %617 = vmatprep.subr.bf16.mxu0 0
      %618 = vmatpush1.bf16.msra.mxu0 0
      %619 = vmatprep.subr.bf16.mxu0 0
      %620 = vmatpush1.bf16.msra.mxu0 0
      %621 = vmatprep.subr.bf16.mxu0 0
      %622 = vmatpush1.bf16.msra.mxu0 0
      %623 = vmatprep.subr.bf16.mxu0 0
      %624 = vmatpush1.bf16.msra.mxu0 0
      %625 = vmatprep.subr.bf16.mxu0 0
      %626 = vmatpush1.bf16.msra.mxu0 0
      %627 = vmatprep.subr.bf16.mxu0 0
      %628 = vmatpush1.bf16.msra.mxu0 0
      %629 = vmatprep.subr.bf16.mxu0 0
      %630 = vmatpush1.bf16.msra.mxu0 %v287
      %631 = vmatprep.subr.bf16.mxu0 0
      %632 = vmatpush2.bf16.msra.mxu0 0
      %633 = vmatprep.subr.bf16.mxu0 0
      %634 = vmatpush2.bf16.msra.mxu0 0
      %635 = vmatprep.subr.bf16.mxu0 0
      %636 = vmatpush2.bf16.msra.mxu0 0
      %637 = vmatprep.subr.bf16.mxu0 0
      %638 = vmatpush2.bf16.msra.mxu0 0
      %639 = vmatprep.subr.bf16.mxu0 0
      %640 = vmatpush2.bf16.msra.mxu0 0
      %641 = vmatprep.subr.bf16.mxu0 0
      %642 = vmatpush2.bf16.msra.mxu0 0
      %643 = vmatprep.subr.bf16.mxu0 0
      %644 = vmatpush2.bf16.msra.mxu0 0
      %645 = vmatprep.subr.bf16.mxu0 0
      %646 = vmatpush2.bf16.msra.mxu0 0
      %647 = vmatprep.mubr.bf16.mxu0 0
      %648 = vmatmul.mubr.bf16.gmra.mxu0 %v613
      %v649 = vpop.f32.mrf.mxu0
      %v650 = vadd.f32 %v577, %v649
      %v651 = vpop.f32.mrf.mxu0
      %v652 = vpop.f32.mrf.mxu0
      %v653 = vadd.f32 %v580, %v652
      %v654 = vpop.f32.mrf.mxu0
      %655 = vmatprep.mubr.bf16.mxu0 0
      %656 = vmatmul.mubr.bf16.gmra.mxu0 %v531
      %v657 = vpop.f32.mrf.mxu0
      %v658 = vadd.f32 %v585, %v657
      %v659 = vpop.f32.mrf.mxu0
      %v660 = vpop.f32.mrf.mxu0
      %v661 = vadd.f32 %v588, %v660
      %v662 = vpop.f32.mrf.mxu0
      %663 = vmatprep.mubr.bf16.mxu0 0
      %664 = vmatmul.mubr.bf16.gmra.mxu0 %v534
      %v665 = vpop.f32.mrf.mxu0
      %v666 = vadd.f32 %v593, %v665
      %v667 = vpop.f32.mrf.mxu0
      %v668 = vpop.f32.mrf.mxu0
      %v669 = vadd.f32 %v596, %v668
      %v670 = vpop.f32.mrf.mxu0
      %671 = vmatprep.mubr.bf16.mxu0 0
      %672 = vmatmul.mubr.bf16.gmra.mxu0 %v537
      %v673 = vpop.f32.mrf.mxu0
      %v674 = vadd.f32 %v601, %v673
      %v675 = vpop.f32.mrf.mxu0
      %v676 = vpop.f32.mrf.mxu0
      %v677 = vadd.f32 %v604, %v676
      %v678 = vpop.f32.mrf.mxu0
      %679 = vdwg.mxu0
      %v680 = vld [vmem:[%s141 + $0x30] sm:$0xf]
      %v681 = vld [vmem:[%s141 + $0x34] sm:$0xf]
      %v682 = vld [vmem:[%s141 + $0x38] sm:$0xf]
      %v683 = vld [vmem:[%s141 + $0x3c] sm:$0xf]
      %v684 = vld [vmem:[%s141 + $0x40] sm:$0xf]
      %v685 = vld [vmem:[%s141 + $0x44] sm:$0xf]
      %v686 = vld [vmem:[%s141 + $0x48] sm:$0xf]
      %v687 = vld [vmem:[%s141 + $0x4c] sm:$0xf]
      %v696 = vunpack.c.l.b16 %v680
      %v697 = vunpack.c.l.b16 %v681
      %v698 = vunpack.c.l.b16 %v682
      %v699 = vunpack.c.l.b16 %v683
      %v700 = vunpack.c.l.b16 %v684
      %v701 = vunpack.c.l.b16 %v685
      %v702 = vunpack.c.l.b16 %v686
      %v703 = vunpack.c.l.b16 %v687
      %v704 = vpack.c.b16 %v697, %v696
      %v705 = vpack.c.b16 %v699, %v698
      %v706 = vpack.c.b16 %v701, %v700
      %v707 = vpack.c.b16 %v703, %v702
      %v709 = vsel %vm188, %v704, 0
      %v712 = vsel %vm188, %v705, 0
      %v715 = vsel %vm188, %v706, 0
      %v718 = vsel %vm188, %v707, 0
      %720 = vmatprep.subr.bf16.mxu0 0
      %721 = vmatpush1.bf16.msra.mxu0 0
      %722 = vmatprep.subr.bf16.mxu0 0
      %723 = vmatpush1.bf16.msra.mxu0 0
      %724 = vmatprep.subr.bf16.mxu0 0
      %725 = vmatpush1.bf16.msra.mxu0 0
      %726 = vmatprep.subr.bf16.mxu0 0
      %727 = vmatpush1.bf16.msra.mxu0 0
      %728 = vmatprep.subr.bf16.mxu0 0
      %729 = vmatpush1.bf16.msra.mxu0 0
      %730 = vmatprep.subr.bf16.mxu0 0
      %731 = vmatpush1.bf16.msra.mxu0 0
      %732 = vmatprep.subr.bf16.mxu0 0
      %733 = vmatpush1.bf16.msra.mxu0 0
      %734 = vmatprep.subr.bf16.mxu0 0
      %735 = vmatpush1.bf16.msra.mxu0 %v403
      %736 = vmatprep.subr.bf16.mxu0 0
      %737 = vmatpush2.bf16.msra.mxu0 0
      %738 = vmatprep.subr.bf16.mxu0 0
      %739 = vmatpush2.bf16.msra.mxu0 0
      %740 = vmatprep.subr.bf16.mxu0 0
      %741 = vmatpush2.bf16.msra.mxu0 0
      %742 = vmatprep.subr.bf16.mxu0 0
      %743 = vmatpush2.bf16.msra.mxu0 0
      %744 = vmatprep.subr.bf16.mxu0 0
      %745 = vmatpush2.bf16.msra.mxu0 0
      %746 = vmatprep.subr.bf16.mxu0 0
      %747 = vmatpush2.bf16.msra.mxu0 0
      %748 = vmatprep.subr.bf16.mxu0 0
      %749 = vmatpush2.bf16.msra.mxu0 0
      %750 = vmatprep.subr.bf16.mxu0 0
      %751 = vmatpush2.bf16.msra.mxu0 0
      %752 = vmatprep.mubr.bf16.mxu0 0
      %753 = vmatmul.mubr.bf16.gmra.mxu0 %v709
      %v754 = vpop.f32.mrf.mxu0
      %v755 = vadd.f32 0.0, %v754
      %v756 = vpop.f32.mrf.mxu0
      %v757 = vpop.f32.mrf.mxu0
      %v758 = vadd.f32 0.0, %v757
      %v759 = vpop.f32.mrf.mxu0
      %760 = vmatprep.mubr.bf16.mxu0 0
      %761 = vmatmul.mubr.bf16.gmra.mxu0 %v712
      %v762 = vpop.f32.mrf.mxu0
      %v763 = vadd.f32 0.0, %v762
      %v764 = vpop.f32.mrf.mxu0
      %v765 = vpop.f32.mrf.mxu0
      %v766 = vadd.f32 0.0, %v765
      %v767 = vpop.f32.mrf.mxu0
      %768 = vmatprep.mubr.bf16.mxu0 0
      %769 = vmatmul.mubr.bf16.gmra.mxu0 %v715
      %v770 = vpop.f32.mrf.mxu0
      %v771 = vadd.f32 0.0, %v770
      %v772 = vpop.f32.mrf.mxu0
      %v773 = vpop.f32.mrf.mxu0
      %v774 = vadd.f32 0.0, %v773
      %v775 = vpop.f32.mrf.mxu0
      %776 = vmatprep.mubr.bf16.mxu0 0
      %777 = vmatmul.mubr.bf16.gmra.mxu0 %v718
      %v778 = vpop.f32.mrf.mxu0
      %v779 = vadd.f32 0.0, %v778
      %v780 = vpop.f32.mrf.mxu0
      %v781 = vpop.f32.mrf.mxu0
      %v782 = vadd.f32 0.0, %v781
      %v783 = vpop.f32.mrf.mxu0
      %784 = vdwg.mxu0
      %v785 = vadd.f32 %v650, %v755
      %v786 = vadd.f32 %v653, %v758
      %v787 = vadd.f32 %v658, %v763
      %v788 = vadd.f32 %v661, %v766
      %v789 = vadd.f32 %v666, %v771
      %v790 = vadd.f32 %v669, %v774
      %v791 = vadd.f32 %v674, %v779
      %v792 = vadd.f32 %v677, %v782
      %v793 = vmax.f32 %v785, 0.0
      %v794 = vmax.f32 %v786, 0.0
      %v795 = vmax.f32 %v787, 0.0
      %v796 = vmax.f32 %v788, 0.0
      %v797 = vmax.f32 %v789, 0.0
      %v798 = vmax.f32 %v790, 0.0
      %v799 = vmax.f32 %v791, 0.0
      %v800 = vmax.f32 %v792, 0.0
      %v801 = vadd.f32 %v793, %v794
      %v802 = vadd.f32 %v801, %v795
      %v803 = vadd.f32 %v802, %v796
      %v804 = vadd.f32 %v803, %v797
      %v805 = vadd.f32 %v804, %v798
      %v806 = vadd.f32 %v805, %v799
      %v807 = vadd.f32 %v806, %v800
      %v808 = vrot.slane %v807, 4
      %v809 = vadd.f32 %v807, %v808
      %v810 = vrot.slane %v809, 2
      %v811 = vadd.f32 %v809, %v810
      %v812 = vrot.slane %v811, 1
      %v813 = vadd.f32 %v811, %v812
      %v814 = vadd.f32 %v499, %v813
      %v815 = vld [vmem:[%s141 + $0x40] sm:$0xf]
      %v816 = vld [vmem:[%s141 + $0x44] sm:$0xf]
      %v817 = vld [vmem:[%s141 + $0x48] sm:$0xf]
      %v818 = vld [vmem:[%s141 + $0x4c] sm:$0xf]
      %v819 = vld [vmem:[%s141 + $0x50] sm:$0xf]
      %v820 = vld [vmem:[%s141 + $0x54] sm:$0xf]
      %v821 = vld [vmem:[%s141 + $0x58] sm:$0xf]
      %v822 = vld [vmem:[%s141 + $0x5c] sm:$0xf]
      %v823 = vld [vmem:[%s141 + $0x60] sm:$0xf]
      %v824 = vld [vmem:[%s141 + $0x64] sm:$0xf]
      %v833 = vunpack.c.l.b16 %v817
      %v834 = vunpack.c.l.b16 %v818
      %v835 = vunpack.c.l.b16 %v819
      %v836 = vunpack.c.l.b16 %v820
      %v837 = vunpack.c.l.b16 %v821
      %v838 = vunpack.c.l.b16 %v822
      %v839 = vunpack.c.l.b16 %v823
      %v840 = vunpack.c.l.b16 %v824
      %v841 = vpack.c.b16 %v834, %v833
      %v842 = vpack.c.b16 %v836, %v835
      %v843 = vpack.c.b16 %v838, %v837
      %v844 = vpack.c.b16 %v840, %v839
      %v846 = vsel %vm188, %v841, 0
      %v849 = vsel %vm188, %v842, 0
      %v852 = vsel %vm188, %v843, 0
      %v855 = vsel %vm188, %v844, 0
      %857 = vmatprep.subr.bf16.mxu0 0
      %858 = vmatpush1.bf16.msra.mxu0 0
      %859 = vmatprep.subr.bf16.mxu0 0
      %860 = vmatpush1.bf16.msra.mxu0 0
      %861 = vmatprep.subr.bf16.mxu0 0
      %862 = vmatpush1.bf16.msra.mxu0 0
      %863 = vmatprep.subr.bf16.mxu0 0
      %864 = vmatpush1.bf16.msra.mxu0 0
      %865 = vmatprep.subr.bf16.mxu0 0
      %866 = vmatpush1.bf16.msra.mxu0 0
      %867 = vmatprep.subr.bf16.mxu0 0
      %868 = vmatpush1.bf16.msra.mxu0 0
      %869 = vmatprep.subr.bf16.mxu0 0
      %870 = vmatpush1.bf16.msra.mxu0 0
      %871 = vmatprep.subr.bf16.mxu0 0
      %872 = vmatpush1.bf16.msra.mxu0 %v206
      %873 = vmatprep.subr.bf16.mxu0 0
      %874 = vmatpush2.bf16.msra.mxu0 0
      %875 = vmatprep.subr.bf16.mxu0 0
      %876 = vmatpush2.bf16.msra.mxu0 0
      %877 = vmatprep.subr.bf16.mxu0 0
      %878 = vmatpush2.bf16.msra.mxu0 0
      %879 = vmatprep.subr.bf16.mxu0 0
      %880 = vmatpush2.bf16.msra.mxu0 0
      %881 = vmatprep.subr.bf16.mxu0 0
      %882 = vmatpush2.bf16.msra.mxu0 0
      %883 = vmatprep.subr.bf16.mxu0 0
      %884 = vmatpush2.bf16.msra.mxu0 0
      %885 = vmatprep.subr.bf16.mxu0 0
      %886 = vmatpush2.bf16.msra.mxu0 0
      %887 = vmatprep.subr.bf16.mxu0 0
      %888 = vmatpush2.bf16.msra.mxu0 0
      %889 = vmatprep.mubr.bf16.mxu0 0
      %890 = vmatmul.mubr.bf16.gmra.mxu0 %v846
      %v891 = vpop.f32.mrf.mxu0
      %v892 = vadd.f32 0.0, %v891
      %v893 = vpop.f32.mrf.mxu0
      %v894 = vpop.f32.mrf.mxu0
      %v895 = vadd.f32 0.0, %v894
      %v896 = vpop.f32.mrf.mxu0
      %897 = vmatprep.mubr.bf16.mxu0 0
      %898 = vmatmul.mubr.bf16.gmra.mxu0 %v849
      %v899 = vpop.f32.mrf.mxu0
      %v900 = vadd.f32 0.0, %v899
      %v901 = vpop.f32.mrf.mxu0
      %v902 = vpop.f32.mrf.mxu0
      %v903 = vadd.f32 0.0, %v902
      %v904 = vpop.f32.mrf.mxu0
      %905 = vmatprep.mubr.bf16.mxu0 0
      %906 = vmatmul.mubr.bf16.gmra.mxu0 %v852
      %v907 = vpop.f32.mrf.mxu0
      %v908 = vadd.f32 0.0, %v907
      %v909 = vpop.f32.mrf.mxu0
      %v910 = vpop.f32.mrf.mxu0
      %v911 = vadd.f32 0.0, %v910
      %v912 = vpop.f32.mrf.mxu0
      %913 = vmatprep.mubr.bf16.mxu0 0
      %914 = vmatmul.mubr.bf16.gmra.mxu0 %v855
      %v915 = vpop.f32.mrf.mxu0
      %v916 = vadd.f32 0.0, %v915
      %v917 = vpop.f32.mrf.mxu0
      %v918 = vpop.f32.mrf.mxu0
      %v919 = vadd.f32 0.0, %v918
      %v920 = vpop.f32.mrf.mxu0
      %921 = vdwg.mxu0
      %v924 = vunpack.c.l.b16 %v815
      %v925 = vunpack.c.l.b16 %v816
      %v926 = vpack.c.b16 %v925, %v924
      %v928 = vsel %vm188, %v926, 0
      %930 = vmatprep.subr.bf16.mxu0 0
      %931 = vmatpush1.bf16.msra.mxu0 0
      %932 = vmatprep.subr.bf16.mxu0 0
      %933 = vmatpush1.bf16.msra.mxu0 0
      %934 = vmatprep.subr.bf16.mxu0 0
      %935 = vmatpush1.bf16.msra.mxu0 0
      %936 = vmatprep.subr.bf16.mxu0 0
      %937 = vmatpush1.bf16.msra.mxu0 0
      %938 = vmatprep.subr.bf16.mxu0 0
      %939 = vmatpush1.bf16.msra.mxu0 0
      %940 = vmatprep.subr.bf16.mxu0 0
      %941 = vmatpush1.bf16.msra.mxu0 0
      %942 = vmatprep.subr.bf16.mxu0 0
      %943 = vmatpush1.bf16.msra.mxu0 0
      %944 = vmatprep.subr.bf16.mxu0 0
      %945 = vmatpush1.bf16.msra.mxu0 %v287
      %946 = vmatprep.subr.bf16.mxu0 0
      %947 = vmatpush2.bf16.msra.mxu0 0
      %948 = vmatprep.subr.bf16.mxu0 0
      %949 = vmatpush2.bf16.msra.mxu0 0
      %950 = vmatprep.subr.bf16.mxu0 0
      %951 = vmatpush2.bf16.msra.mxu0 0
      %952 = vmatprep.subr.bf16.mxu0 0
      %953 = vmatpush2.bf16.msra.mxu0 0
      %954 = vmatprep.subr.bf16.mxu0 0
      %955 = vmatpush2.bf16.msra.mxu0 0
      %956 = vmatprep.subr.bf16.mxu0 0
      %957 = vmatpush2.bf16.msra.mxu0 0
      %958 = vmatprep.subr.bf16.mxu0 0
      %959 = vmatpush2.bf16.msra.mxu0 0
      %960 = vmatprep.subr.bf16.mxu0 0
      %961 = vmatpush2.bf16.msra.mxu0 0
      %962 = vmatprep.mubr.bf16.mxu0 0
      %963 = vmatmul.mubr.bf16.gmra.mxu0 %v928
      %v964 = vpop.f32.mrf.mxu0
      %v965 = vadd.f32 %v892, %v964
      %v966 = vpop.f32.mrf.mxu0
      %v967 = vpop.f32.mrf.mxu0
      %v968 = vadd.f32 %v895, %v967
      %v969 = vpop.f32.mrf.mxu0
      %970 = vmatprep.mubr.bf16.mxu0 0
      %971 = vmatmul.mubr.bf16.gmra.mxu0 %v846
      %v972 = vpop.f32.mrf.mxu0
      %v973 = vadd.f32 %v900, %v972
      %v974 = vpop.f32.mrf.mxu0
      %v975 = vpop.f32.mrf.mxu0
      %v976 = vadd.f32 %v903, %v975
      %v977 = vpop.f32.mrf.mxu0
      %978 = vmatprep.mubr.bf16.mxu0 0
      %979 = vmatmul.mubr.bf16.gmra.mxu0 %v849
      %v980 = vpop.f32.mrf.mxu0
      %v981 = vadd.f32 %v908, %v980
      %v982 = vpop.f32.mrf.mxu0
      %v983 = vpop.f32.mrf.mxu0
      %v984 = vadd.f32 %v911, %v983
      %v985 = vpop.f32.mrf.mxu0
      %986 = vmatprep.mubr.bf16.mxu0 0
      %987 = vmatmul.mubr.bf16.gmra.mxu0 %v852
      %v988 = vpop.f32.mrf.mxu0
      %v989 = vadd.f32 %v916, %v988
      %v990 = vpop.f32.mrf.mxu0
      %v991 = vpop.f32.mrf.mxu0
      %v992 = vadd.f32 %v919, %v991
      %v993 = vpop.f32.mrf.mxu0
      %994 = vdwg.mxu0
      %v995 = vld [vmem:[%s141 + $0x50] sm:$0xf]
      %v996 = vld [vmem:[%s141 + $0x54] sm:$0xf]
      %v997 = vld [vmem:[%s141 + $0x58] sm:$0xf]
      %v998 = vld [vmem:[%s141 + $0x5c] sm:$0xf]
      %v999 = vld [vmem:[%s141 + $0x60] sm:$0xf]
      %v1000 = vld [vmem:[%s141 + $0x64] sm:$0xf]
      %v1001 = vld [vmem:[%s141 + $0x68] sm:$0xf]
      %v1002 = vld [vmem:[%s141 + $0x6c] sm:$0xf]
      %v1011 = vunpack.c.l.b16 %v995
      %v1012 = vunpack.c.l.b16 %v996
      %v1013 = vunpack.c.l.b16 %v997
      %v1014 = vunpack.c.l.b16 %v998
      %v1015 = vunpack.c.l.b16 %v999
      %v1016 = vunpack.c.l.b16 %v1000
      %v1017 = vunpack.c.l.b16 %v1001
      %v1018 = vunpack.c.l.b16 %v1002
      %v1019 = vpack.c.b16 %v1012, %v1011
      %v1020 = vpack.c.b16 %v1014, %v1013
      %v1021 = vpack.c.b16 %v1016, %v1015
      %v1022 = vpack.c.b16 %v1018, %v1017
      %v1024 = vsel %vm188, %v1019, 0
      %v1027 = vsel %vm188, %v1020, 0
      %v1030 = vsel %vm188, %v1021, 0
      %v1033 = vsel %vm188, %v1022, 0
      %1035 = vmatprep.subr.bf16.mxu0 0
      %1036 = vmatpush1.bf16.msra.mxu0 0
      %1037 = vmatprep.subr.bf16.mxu0 0
      %1038 = vmatpush1.bf16.msra.mxu0 0
      %1039 = vmatprep.subr.bf16.mxu0 0
      %1040 = vmatpush1.bf16.msra.mxu0 0
      %1041 = vmatprep.subr.bf16.mxu0 0
      %1042 = vmatpush1.bf16.msra.mxu0 0
      %1043 = vmatprep.subr.bf16.mxu0 0
      %1044 = vmatpush1.bf16.msra.mxu0 0
      %1045 = vmatprep.subr.bf16.mxu0 0
      %1046 = vmatpush1.bf16.msra.mxu0 0
      %1047 = vmatprep.subr.bf16.mxu0 0
      %1048 = vmatpush1.bf16.msra.mxu0 0
      %1049 = vmatprep.subr.bf16.mxu0 0
      %1050 = vmatpush1.bf16.msra.mxu0 %v403
      %1051 = vmatprep.subr.bf16.mxu0 0
      %1052 = vmatpush2.bf16.msra.mxu0 0
      %1053 = vmatprep.subr.bf16.mxu0 0
      %1054 = vmatpush2.bf16.msra.mxu0 0
      %1055 = vmatprep.subr.bf16.mxu0 0
      %1056 = vmatpush2.bf16.msra.mxu0 0
      %1057 = vmatprep.subr.bf16.mxu0 0
      %1058 = vmatpush2.bf16.msra.mxu0 0
      %1059 = vmatprep.subr.bf16.mxu0 0
      %1060 = vmatpush2.bf16.msra.mxu0 0
      %1061 = vmatprep.subr.bf16.mxu0 0
      %1062 = vmatpush2.bf16.msra.mxu0 0
      %1063 = vmatprep.subr.bf16.mxu0 0
      %1064 = vmatpush2.bf16.msra.mxu0 0
      %1065 = vmatprep.subr.bf16.mxu0 0
      %1066 = vmatpush2.bf16.msra.mxu0 0
      %1067 = vmatprep.mubr.bf16.mxu0 0
      %1068 = vmatmul.mubr.bf16.gmra.mxu0 %v1024
      %v1069 = vpop.f32.mrf.mxu0
      %v1070 = vadd.f32 0.0, %v1069
      %v1071 = vpop.f32.mrf.mxu0
      %v1072 = vpop.f32.mrf.mxu0
      %v1073 = vadd.f32 0.0, %v1072
      %v1074 = vpop.f32.mrf.mxu0
      %1075 = vmatprep.mubr.bf16.mxu0 0
      %1076 = vmatmul.mubr.bf16.gmra.mxu0 %v1027
      %v1077 = vpop.f32.mrf.mxu0
      %v1078 = vadd.f32 0.0, %v1077
      %v1079 = vpop.f32.mrf.mxu0
      %v1080 = vpop.f32.mrf.mxu0
      %v1081 = vadd.f32 0.0, %v1080
      %v1082 = vpop.f32.mrf.mxu0
      %1083 = vmatprep.mubr.bf16.mxu0 0
      %1084 = vmatmul.mubr.bf16.gmra.mxu0 %v1030
      %v1085 = vpop.f32.mrf.mxu0
      %v1086 = vadd.f32 0.0, %v1085
      %v1087 = vpop.f32.mrf.mxu0
      %v1088 = vpop.f32.mrf.mxu0
      %v1089 = vadd.f32 0.0, %v1088
      %v1090 = vpop.f32.mrf.mxu0
      %1091 = vmatprep.mubr.bf16.mxu0 0
      %1092 = vmatmul.mubr.bf16.gmra.mxu0 %v1033
      %v1093 = vpop.f32.mrf.mxu0
      %v1094 = vadd.f32 0.0, %v1093
      %v1095 = vpop.f32.mrf.mxu0
      %v1096 = vpop.f32.mrf.mxu0
      %v1097 = vadd.f32 0.0, %v1096
      %v1098 = vpop.f32.mrf.mxu0
      %1099 = vdwg.mxu0
      %v1100 = vadd.f32 %v965, %v1070
      %v1101 = vadd.f32 %v968, %v1073
      %v1102 = vadd.f32 %v973, %v1078
      %v1103 = vadd.f32 %v976, %v1081
      %v1104 = vadd.f32 %v981, %v1086
      %v1105 = vadd.f32 %v984, %v1089
      %v1106 = vadd.f32 %v989, %v1094
      %v1107 = vadd.f32 %v992, %v1097
      %v1108 = vmax.f32 %v1100, 0.0
      %v1109 = vmax.f32 %v1101, 0.0
      %v1110 = vmax.f32 %v1102, 0.0
      %v1111 = vmax.f32 %v1103, 0.0
      %v1112 = vmax.f32 %v1104, 0.0
      %v1113 = vmax.f32 %v1105, 0.0
      %v1114 = vmax.f32 %v1106, 0.0
      %v1115 = vmax.f32 %v1107, 0.0
      %v1116 = vadd.f32 %v1108, %v1109
      %v1117 = vadd.f32 %v1116, %v1110
      %v1118 = vadd.f32 %v1117, %v1111
      %v1119 = vadd.f32 %v1118, %v1112
      %v1120 = vadd.f32 %v1119, %v1113
      %v1121 = vadd.f32 %v1120, %v1114
      %v1122 = vadd.f32 %v1121, %v1115
      %v1123 = vrot.slane %v1122, 4
      %v1124 = vadd.f32 %v1122, %v1123
      %v1125 = vrot.slane %v1124, 2
      %v1126 = vadd.f32 %v1124, %v1125
      %v1127 = vrot.slane %v1126, 1
      %v1128 = vadd.f32 %v1126, %v1127
      %v1129 = vadd.f32 %v814, %v1128
      %v1130 = vld [vmem:[%s141 + $0x60] sm:$0xf]
      %v1131 = vld [vmem:[%s141 + $0x64] sm:$0xf]
      %v1132 = vld [vmem:[%s141 + $0x68] sm:$0xf]
      %v1133 = vld [vmem:[%s141 + $0x6c] sm:$0xf]
      %v1134 = vld [vmem:[%s141 + $0x70] sm:$0xf]
      %v1135 = vld [vmem:[%s141 + $0x74] sm:$0xf]
      %v1136 = vld [vmem:[%s141 + $0x78] sm:$0xf]
      %v1137 = vld [vmem:[%s141 + $0x7c] sm:$0xf]
      %v1138 = vld [vmem:[%s141 + $0x80] sm:$0xf]
      %v1139 = vld [vmem:[%s141 + $0x84] sm:$0xf]
      %v1148 = vunpack.c.l.b16 %v1132
      %v1149 = vunpack.c.l.b16 %v1133
      %v1150 = vunpack.c.l.b16 %v1134
      %v1151 = vunpack.c.l.b16 %v1135
      %v1152 = vunpack.c.l.b16 %v1136
      %v1153 = vunpack.c.l.b16 %v1137
      %v1154 = vunpack.c.l.b16 %v1138
      %v1155 = vunpack.c.l.b16 %v1139
      %v1156 = vpack.c.b16 %v1149, %v1148
      %v1157 = vpack.c.b16 %v1151, %v1150
      %v1158 = vpack.c.b16 %v1153, %v1152
      %v1159 = vpack.c.b16 %v1155, %v1154
      %v1161 = vsel %vm188, %v1156, 0
      %v1164 = vsel %vm188, %v1157, 0
      %v1167 = vsel %vm188, %v1158, 0
      %v1170 = vsel %vm188, %v1159, 0
      %1172 = vmatprep.subr.bf16.mxu0 0
      %1173 = vmatpush1.bf16.msra.mxu0 0
      %1174 = vmatprep.subr.bf16.mxu0 0
      %1175 = vmatpush1.bf16.msra.mxu0 0
      %1176 = vmatprep.subr.bf16.mxu0 0
      %1177 = vmatpush1.bf16.msra.mxu0 0
      %1178 = vmatprep.subr.bf16.mxu0 0
      %1179 = vmatpush1.bf16.msra.mxu0 0
      %1180 = vmatprep.subr.bf16.mxu0 0
      %1181 = vmatpush1.bf16.msra.mxu0 0
      %1182 = vmatprep.subr.bf16.mxu0 0
      %1183 = vmatpush1.bf16.msra.mxu0 0
      %1184 = vmatprep.subr.bf16.mxu0 0
      %1185 = vmatpush1.bf16.msra.mxu0 0
      %1186 = vmatprep.subr.bf16.mxu0 0
      %1187 = vmatpush1.bf16.msra.mxu0 %v206
      %1188 = vmatprep.subr.bf16.mxu0 0
      %1189 = vmatpush2.bf16.msra.mxu0 0
      %1190 = vmatprep.subr.bf16.mxu0 0
      %1191 = vmatpush2.bf16.msra.mxu0 0
      %1192 = vmatprep.subr.bf16.mxu0 0
      %1193 = vmatpush2.bf16.msra.mxu0 0
      %1194 = vmatprep.subr.bf16.mxu0 0
      %1195 = vmatpush2.bf16.msra.mxu0 0
      %1196 = vmatprep.subr.bf16.mxu0 0
      %1197 = vmatpush2.bf16.msra.mxu0 0
      %1198 = vmatprep.subr.bf16.mxu0 0
      %1199 = vmatpush2.bf16.msra.mxu0 0
      %1200 = vmatprep.subr.bf16.mxu0 0
      %1201 = vmatpush2.bf16.msra.mxu0 0
      %1202 = vmatprep.subr.bf16.mxu0 0
      %1203 = vmatpush2.bf16.msra.mxu0 0
      %1204 = vmatprep.mubr.bf16.mxu0 0
      %1205 = vmatmul.mubr.bf16.gmra.mxu0 %v1161
      %v1206 = vpop.f32.mrf.mxu0
      %v1207 = vadd.f32 0.0, %v1206
      %v1208 = vpop.f32.mrf.mxu0
      %v1209 = vpop.f32.mrf.mxu0
      %v1210 = vadd.f32 0.0, %v1209
      %v1211 = vpop.f32.mrf.mxu0
      %1212 = vmatprep.mubr.bf16.mxu0 0
      %1213 = vmatmul.mubr.bf16.gmra.mxu0 %v1164
      %v1214 = vpop.f32.mrf.mxu0
      %v1215 = vadd.f32 0.0, %v1214
      %v1216 = vpop.f32.mrf.mxu0
      %v1217 = vpop.f32.mrf.mxu0
      %v1218 = vadd.f32 0.0, %v1217
      %v1219 = vpop.f32.mrf.mxu0
      %1220 = vmatprep.mubr.bf16.mxu0 0
      %1221 = vmatmul.mubr.bf16.gmra.mxu0 %v1167
      %v1222 = vpop.f32.mrf.mxu0
      %v1223 = vadd.f32 0.0, %v1222
      %v1224 = vpop.f32.mrf.mxu0
      %v1225 = vpop.f32.mrf.mxu0
      %v1226 = vadd.f32 0.0, %v1225
      %v1227 = vpop.f32.mrf.mxu0
      %1228 = vmatprep.mubr.bf16.mxu0 0
      %1229 = vmatmul.mubr.bf16.gmra.mxu0 %v1170
      %v1230 = vpop.f32.mrf.mxu0
      %v1231 = vadd.f32 0.0, %v1230
      %v1232 = vpop.f32.mrf.mxu0
      %v1233 = vpop.f32.mrf.mxu0
      %v1234 = vadd.f32 0.0, %v1233
      %v1235 = vpop.f32.mrf.mxu0
      %1236 = vdwg.mxu0
      %v1239 = vunpack.c.l.b16 %v1130
      %v1240 = vunpack.c.l.b16 %v1131
      %v1241 = vpack.c.b16 %v1240, %v1239
      %v1243 = vsel %vm188, %v1241, 0
      %1245 = vmatprep.subr.bf16.mxu0 0
      %1246 = vmatpush1.bf16.msra.mxu0 0
      %1247 = vmatprep.subr.bf16.mxu0 0
      %1248 = vmatpush1.bf16.msra.mxu0 0
      %1249 = vmatprep.subr.bf16.mxu0 0
      %1250 = vmatpush1.bf16.msra.mxu0 0
      %1251 = vmatprep.subr.bf16.mxu0 0
      %1252 = vmatpush1.bf16.msra.mxu0 0
      %1253 = vmatprep.subr.bf16.mxu0 0
      %1254 = vmatpush1.bf16.msra.mxu0 0
      %1255 = vmatprep.subr.bf16.mxu0 0
      %1256 = vmatpush1.bf16.msra.mxu0 0
      %1257 = vmatprep.subr.bf16.mxu0 0
      %1258 = vmatpush1.bf16.msra.mxu0 0
      %1259 = vmatprep.subr.bf16.mxu0 0
      %1260 = vmatpush1.bf16.msra.mxu0 %v287
      %1261 = vmatprep.subr.bf16.mxu0 0
      %1262 = vmatpush2.bf16.msra.mxu0 0
      %1263 = vmatprep.subr.bf16.mxu0 0
      %1264 = vmatpush2.bf16.msra.mxu0 0
      %1265 = vmatprep.subr.bf16.mxu0 0
      %1266 = vmatpush2.bf16.msra.mxu0 0
      %1267 = vmatprep.subr.bf16.mxu0 0
      %1268 = vmatpush2.bf16.msra.mxu0 0
      %1269 = vmatprep.subr.bf16.mxu0 0
      %1270 = vmatpush2.bf16.msra.mxu0 0
      %1271 = vmatprep.subr.bf16.mxu0 0
      %1272 = vmatpush2.bf16.msra.mxu0 0
      %1273 = vmatprep.subr.bf16.mxu0 0
      %1274 = vmatpush2.bf16.msra.mxu0 0
      %1275 = vmatprep.subr.bf16.mxu0 0
      %1276 = vmatpush2.bf16.msra.mxu0 0
      %1277 = vmatprep.mubr.bf16.mxu0 0
      %1278 = vmatmul.mubr.bf16.gmra.mxu0 %v1243
      %v1279 = vpop.f32.mrf.mxu0
      %v1280 = vadd.f32 %v1207, %v1279
      %v1281 = vpop.f32.mrf.mxu0
      %v1282 = vpop.f32.mrf.mxu0
      %v1283 = vadd.f32 %v1210, %v1282
      %v1284 = vpop.f32.mrf.mxu0
      %1285 = vmatprep.mubr.bf16.mxu0 0
      %1286 = vmatmul.mubr.bf16.gmra.mxu0 %v1161
      %v1287 = vpop.f32.mrf.mxu0
      %v1288 = vadd.f32 %v1215, %v1287
      %v1289 = vpop.f32.mrf.mxu0
      %v1290 = vpop.f32.mrf.mxu0
      %v1291 = vadd.f32 %v1218, %v1290
      %v1292 = vpop.f32.mrf.mxu0
      %1293 = vmatprep.mubr.bf16.mxu0 0
      %1294 = vmatmul.mubr.bf16.gmra.mxu0 %v1164
      %v1295 = vpop.f32.mrf.mxu0
      %v1296 = vadd.f32 %v1223, %v1295
      %v1297 = vpop.f32.mrf.mxu0
      %v1298 = vpop.f32.mrf.mxu0
      %v1299 = vadd.f32 %v1226, %v1298
      %v1300 = vpop.f32.mrf.mxu0
      %1301 = vmatprep.mubr.bf16.mxu0 0
      %1302 = vmatmul.mubr.bf16.gmra.mxu0 %v1167
      %v1303 = vpop.f32.mrf.mxu0
      %v1304 = vadd.f32 %v1231, %v1303
      %v1305 = vpop.f32.mrf.mxu0
      %v1306 = vpop.f32.mrf.mxu0
      %v1307 = vadd.f32 %v1234, %v1306
      %v1308 = vpop.f32.mrf.mxu0
      %1309 = vdwg.mxu0
      %v1310 = vld [vmem:[%s141 + $0x70] sm:$0xf]
      %v1311 = vld [vmem:[%s141 + $0x74] sm:$0xf]
      %v1312 = vld [vmem:[%s141 + $0x78] sm:$0xf]
      %v1313 = vld [vmem:[%s141 + $0x7c] sm:$0xf]
      %v1314 = vld [vmem:[%s141 + $0x80] sm:$0xf]
      %v1315 = vld [vmem:[%s141 + $0x84] sm:$0xf]
      %v1316 = vld [vmem:[%s141 + $0x88] sm:$0xf]
      %v1317 = vld [vmem:[%s141 + $0x8c] sm:$0xf]
      %v1326 = vunpack.c.l.b16 %v1310
      %v1327 = vunpack.c.l.b16 %v1311
      %v1328 = vunpack.c.l.b16 %v1312
      %v1329 = vunpack.c.l.b16 %v1313
      %v1330 = vunpack.c.l.b16 %v1314
      %v1331 = vunpack.c.l.b16 %v1315
      %v1332 = vunpack.c.l.b16 %v1316
      %v1333 = vunpack.c.l.b16 %v1317
      %v1334 = vpack.c.b16 %v1327, %v1326
      %v1335 = vpack.c.b16 %v1329, %v1328
      %v1336 = vpack.c.b16 %v1331, %v1330
      %v1337 = vpack.c.b16 %v1333, %v1332
      %v1339 = vsel %vm188, %v1334, 0
      %v1342 = vsel %vm188, %v1335, 0
      %v1345 = vsel %vm188, %v1336, 0
      %v1348 = vsel %vm188, %v1337, 0
      %1350 = vmatprep.subr.bf16.mxu0 0
      %1351 = vmatpush1.bf16.msra.mxu0 0
      %1352 = vmatprep.subr.bf16.mxu0 0
      %1353 = vmatpush1.bf16.msra.mxu0 0
      %1354 = vmatprep.subr.bf16.mxu0 0
      %1355 = vmatpush1.bf16.msra.mxu0 0
      %1356 = vmatprep.subr.bf16.mxu0 0
      %1357 = vmatpush1.bf16.msra.mxu0 0
      %1358 = vmatprep.subr.bf16.mxu0 0
      %1359 = vmatpush1.bf16.msra.mxu0 0
      %1360 = vmatprep.subr.bf16.mxu0 0
      %1361 = vmatpush1.bf16.msra.mxu0 0
      %1362 = vmatprep.subr.bf16.mxu0 0
      %1363 = vmatpush1.bf16.msra.mxu0 0
      %1364 = vmatprep.subr.bf16.mxu0 0
      %1365 = vmatpush1.bf16.msra.mxu0 %v403
      %1366 = vmatprep.subr.bf16.mxu0 0
      %1367 = vmatpush2.bf16.msra.mxu0 0
      %1368 = vmatprep.subr.bf16.mxu0 0
      %1369 = vmatpush2.bf16.msra.mxu0 0
      %1370 = vmatprep.subr.bf16.mxu0 0
      %1371 = vmatpush2.bf16.msra.mxu0 0
      %1372 = vmatprep.subr.bf16.mxu0 0
      %1373 = vmatpush2.bf16.msra.mxu0 0
      %1374 = vmatprep.subr.bf16.mxu0 0
      %1375 = vmatpush2.bf16.msra.mxu0 0
      %1376 = vmatprep.subr.bf16.mxu0 0
      %1377 = vmatpush2.bf16.msra.mxu0 0
      %1378 = vmatprep.subr.bf16.mxu0 0
      %1379 = vmatpush2.bf16.msra.mxu0 0
      %1380 = vmatprep.subr.bf16.mxu0 0
      %1381 = vmatpush2.bf16.msra.mxu0 0
      %1382 = vmatprep.mubr.bf16.mxu0 0
      %1383 = vmatmul.mubr.bf16.gmra.mxu0 %v1339
      %v1384 = vpop.f32.mrf.mxu0
      %v1385 = vadd.f32 0.0, %v1384
      %v1386 = vpop.f32.mrf.mxu0
      %v1387 = vpop.f32.mrf.mxu0
      %v1388 = vadd.f32 0.0, %v1387
      %v1389 = vpop.f32.mrf.mxu0
      %1390 = vmatprep.mubr.bf16.mxu0 0
      %1391 = vmatmul.mubr.bf16.gmra.mxu0 %v1342
      %v1392 = vpop.f32.mrf.mxu0
      %v1393 = vadd.f32 0.0, %v1392
      %v1394 = vpop.f32.mrf.mxu0
      %v1395 = vpop.f32.mrf.mxu0
      %v1396 = vadd.f32 0.0, %v1395
      %v1397 = vpop.f32.mrf.mxu0
      %1398 = vmatprep.mubr.bf16.mxu0 0
      %1399 = vmatmul.mubr.bf16.gmra.mxu0 %v1345
      %v1400 = vpop.f32.mrf.mxu0
      %v1401 = vadd.f32 0.0, %v1400
      %v1402 = vpop.f32.mrf.mxu0
      %v1403 = vpop.f32.mrf.mxu0
      %v1404 = vadd.f32 0.0, %v1403
      %v1405 = vpop.f32.mrf.mxu0
      %1406 = vmatprep.mubr.bf16.mxu0 0
      %1407 = vmatmul.mubr.bf16.gmra.mxu0 %v1348
      %v1408 = vpop.f32.mrf.mxu0
      %v1409 = vadd.f32 0.0, %v1408
      %v1410 = vpop.f32.mrf.mxu0
      %v1411 = vpop.f32.mrf.mxu0
      %v1412 = vadd.f32 0.0, %v1411
      %v1413 = vpop.f32.mrf.mxu0
      %1414 = vdwg.mxu0
      %v1415 = vadd.f32 %v1280, %v1385
      %v1416 = vadd.f32 %v1283, %v1388
      %v1417 = vadd.f32 %v1288, %v1393
      %v1418 = vadd.f32 %v1291, %v1396
      %v1419 = vadd.f32 %v1296, %v1401
      %v1420 = vadd.f32 %v1299, %v1404
      %v1421 = vadd.f32 %v1304, %v1409
      %v1422 = vadd.f32 %v1307, %v1412
      %v1423 = vmax.f32 %v1415, 0.0
      %v1424 = vmax.f32 %v1416, 0.0
      %v1425 = vmax.f32 %v1417, 0.0
      %v1426 = vmax.f32 %v1418, 0.0
      %v1427 = vmax.f32 %v1419, 0.0
      %v1428 = vmax.f32 %v1420, 0.0
      %v1429 = vmax.f32 %v1421, 0.0
      %v1430 = vmax.f32 %v1422, 0.0
      %v1431 = vadd.f32 %v1423, %v1424
      %v1432 = vadd.f32 %v1431, %v1425
      %v1433 = vadd.f32 %v1432, %v1426
      %v1434 = vadd.f32 %v1433, %v1427
      %v1435 = vadd.f32 %v1434, %v1428
      %v1436 = vadd.f32 %v1435, %v1429
      %v1437 = vadd.f32 %v1436, %v1430
      %v1438 = vrot.slane %v1437, 4
      %v1439 = vadd.f32 %v1437, %v1438
      %v1440 = vrot.slane %v1439, 2
      %v1441 = vadd.f32 %v1439, %v1440
      %v1442 = vrot.slane %v1441, 1
      %v1443 = vadd.f32 %v1441, %v1442
      %v1444 = vadd.f32 %v1129, %v1443
      %s1445 = scalar_lea.vmem %s141, 144
      %v1446 = vld [vmem:[%s1445] sm:$0xf]
      %v1447 = vld [vmem:[%s1445 + $0x4] sm:$0xf]
      %v1448 = vld [vmem:[%s1445 + $0x8] sm:$0xf]
      %v1449 = vld [vmem:[%s1445 + $0xc] sm:$0xf]
      %v1450 = vld [vmem:[%s1445 + $0x10] sm:$0xf]
      %v1451 = vld [vmem:[%s1445 + $0x14] sm:$0xf]
      %v1452 = vld [vmem:[%s1445 + $0x18] sm:$0xf]
      %v1453 = vld [vmem:[%s1445 + $0x1c] sm:$0xf]
      %v1454 = vld [vmem:[%s1445 + $0x20] sm:$0xf]
      %v1455 = vld [vmem:[%s1445 + $0x24] sm:$0xf]
      %v1464 = vunpack.c.l.b16 %v1448
      %v1465 = vunpack.c.l.b16 %v1449
      %v1466 = vunpack.c.l.b16 %v1450
      %v1467 = vunpack.c.l.b16 %v1451
      %v1468 = vunpack.c.l.b16 %v1452
      %v1469 = vunpack.c.l.b16 %v1453
      %v1470 = vunpack.c.l.b16 %v1454
      %v1471 = vunpack.c.l.b16 %v1455
      %v1472 = vpack.c.b16 %v1465, %v1464
      %v1473 = vpack.c.b16 %v1467, %v1466
      %v1474 = vpack.c.b16 %v1469, %v1468
      %v1475 = vpack.c.b16 %v1471, %v1470
      %v1477 = vsel %vm188, %v1472, 0
      %v1480 = vsel %vm188, %v1473, 0
      %v1483 = vsel %vm188, %v1474, 0
      %v1486 = vsel %vm188, %v1475, 0
      %1488 = vmatprep.subr.bf16.mxu0 0
      %1489 = vmatpush1.bf16.msra.mxu0 0
      %1490 = vmatprep.subr.bf16.mxu0 0
      %1491 = vmatpush1.bf16.msra.mxu0 0
      %1492 = vmatprep.subr.bf16.mxu0 0
      %1493 = vmatpush1.bf16.msra.mxu0 0
      %1494 = vmatprep.subr.bf16.mxu0 0
      %1495 = vmatpush1.bf16.msra.mxu0 0
      %1496 = vmatprep.subr.bf16.mxu0 0
      %1497 = vmatpush1.bf16.msra.mxu0 0
      %1498 = vmatprep.subr.bf16.mxu0 0
      %1499 = vmatpush1.bf16.msra.mxu0 0
      %1500 = vmatprep.subr.bf16.mxu0 0
      %1501 = vmatpush1.bf16.msra.mxu0 0
      %1502 = vmatprep.subr.bf16.mxu0 0
      %1503 = vmatpush1.bf16.msra.mxu0 %v206
      %1504 = vmatprep.subr.bf16.mxu0 0
      %1505 = vmatpush2.bf16.msra.mxu0 0
      %1506 = vmatprep.subr.bf16.mxu0 0
      %1507 = vmatpush2.bf16.msra.mxu0 0
      %1508 = vmatprep.subr.bf16.mxu0 0
      %1509 = vmatpush2.bf16.msra.mxu0 0
      %1510 = vmatprep.subr.bf16.mxu0 0
      %1511 = vmatpush2.bf16.msra.mxu0 0
      %1512 = vmatprep.subr.bf16.mxu0 0
      %1513 = vmatpush2.bf16.msra.mxu0 0
      %1514 = vmatprep.subr.bf16.mxu0 0
      %1515 = vmatpush2.bf16.msra.mxu0 0
      %1516 = vmatprep.subr.bf16.mxu0 0
      %1517 = vmatpush2.bf16.msra.mxu0 0
      %1518 = vmatprep.subr.bf16.mxu0 0
      %1519 = vmatpush2.bf16.msra.mxu0 0
      %1520 = vmatprep.mubr.bf16.mxu0 0
      %1521 = vmatmul.mubr.bf16.gmra.mxu0 %v1477
      %v1522 = vpop.f32.mrf.mxu0
      %v1523 = vadd.f32 0.0, %v1522
      %v1524 = vpop.f32.mrf.mxu0
      %v1525 = vpop.f32.mrf.mxu0
      %v1526 = vadd.f32 0.0, %v1525
      %v1527 = vpop.f32.mrf.mxu0
      %1528 = vmatprep.mubr.bf16.mxu0 0
      %1529 = vmatmul.mubr.bf16.gmra.mxu0 %v1480
      %v1530 = vpop.f32.mrf.mxu0
      %v1531 = vadd.f32 0.0, %v1530
      %v1532 = vpop.f32.mrf.mxu0
      %v1533 = vpop.f32.mrf.mxu0
      %v1534 = vadd.f32 0.0, %v1533
      %v1535 = vpop.f32.mrf.mxu0
      %1536 = vmatprep.mubr.bf16.mxu0 0
      %1537 = vmatmul.mubr.bf16.gmra.mxu0 %v1483
      %v1538 = vpop.f32.mrf.mxu0
      %v1539 = vadd.f32 0.0, %v1538
      %v1540 = vpop.f32.mrf.mxu0
      %v1541 = vpop.f32.mrf.mxu0
      %v1542 = vadd.f32 0.0, %v1541
      %v1543 = vpop.f32.mrf.mxu0
      %1544 = vmatprep.mubr.bf16.mxu0 0
      %1545 = vmatmul.mubr.bf16.gmra.mxu0 %v1486
      %v1546 = vpop.f32.mrf.mxu0
      %v1547 = vadd.f32 0.0, %v1546
      %v1548 = vpop.f32.mrf.mxu0
      %v1549 = vpop.f32.mrf.mxu0
      %v1550 = vadd.f32 0.0, %v1549
      %v1551 = vpop.f32.mrf.mxu0
      %1552 = vdwg.mxu0
      %v1555 = vunpack.c.l.b16 %v1446
      %v1556 = vunpack.c.l.b16 %v1447
      %v1557 = vpack.c.b16 %v1556, %v1555
      %v1559 = vsel %vm188, %v1557, 0
      %1561 = vmatprep.subr.bf16.mxu0 0
      %1562 = vmatpush1.bf16.msra.mxu0 0
      %1563 = vmatprep.subr.bf16.mxu0 0
      %1564 = vmatpush1.bf16.msra.mxu0 0
      %1565 = vmatprep.subr.bf16.mxu0 0
      %1566 = vmatpush1.bf16.msra.mxu0 0
      %1567 = vmatprep.subr.bf16.mxu0 0
      %1568 = vmatpush1.bf16.msra.mxu0 0
      %1569 = vmatprep.subr.bf16.mxu0 0
      %1570 = vmatpush1.bf16.msra.mxu0 0
      %1571 = vmatprep.subr.bf16.mxu0 0
      %1572 = vmatpush1.bf16.msra.mxu0 0
      %1573 = vmatprep.subr.bf16.mxu0 0
      %1574 = vmatpush1.bf16.msra.mxu0 0
      %1575 = vmatprep.subr.bf16.mxu0 0
      %1576 = vmatpush1.bf16.msra.mxu0 %v287
      %1577 = vmatprep.subr.bf16.mxu0 0
      %1578 = vmatpush2.bf16.msra.mxu0 0
      %1579 = vmatprep.subr.bf16.mxu0 0
      %1580 = vmatpush2.bf16.msra.mxu0 0
      %1581 = vmatprep.subr.bf16.mxu0 0
      %1582 = vmatpush2.bf16.msra.mxu0 0
      %1583 = vmatprep.subr.bf16.mxu0 0
      %1584 = vmatpush2.bf16.msra.mxu0 0
      %1585 = vmatprep.subr.bf16.mxu0 0
      %1586 = vmatpush2.bf16.msra.mxu0 0
      %1587 = vmatprep.subr.bf16.mxu0 0
      %1588 = vmatpush2.bf16.msra.mxu0 0
      %1589 = vmatprep.subr.bf16.mxu0 0
      %1590 = vmatpush2.bf16.msra.mxu0 0
      %1591 = vmatprep.subr.bf16.mxu0 0
      %1592 = vmatpush2.bf16.msra.mxu0 0
      %1593 = vmatprep.mubr.bf16.mxu0 0
      %1594 = vmatmul.mubr.bf16.gmra.mxu0 %v1559
      %v1595 = vpop.f32.mrf.mxu0
      %v1596 = vadd.f32 %v1523, %v1595
      %v1597 = vpop.f32.mrf.mxu0
      %v1598 = vpop.f32.mrf.mxu0
      %v1599 = vadd.f32 %v1526, %v1598
      %v1600 = vpop.f32.mrf.mxu0
      %1601 = vmatprep.mubr.bf16.mxu0 0
      %1602 = vmatmul.mubr.bf16.gmra.mxu0 %v1477
      %v1603 = vpop.f32.mrf.mxu0
      %v1604 = vadd.f32 %v1531, %v1603
      %v1605 = vpop.f32.mrf.mxu0
      %v1606 = vpop.f32.mrf.mxu0
      %v1607 = vadd.f32 %v1534, %v1606
      %v1608 = vpop.f32.mrf.mxu0
      %1609 = vmatprep.mubr.bf16.mxu0 0
      %1610 = vmatmul.mubr.bf16.gmra.mxu0 %v1480
      %v1611 = vpop.f32.mrf.mxu0
      %v1612 = vadd.f32 %v1539, %v1611
      %v1613 = vpop.f32.mrf.mxu0
      %v1614 = vpop.f32.mrf.mxu0
      %v1615 = vadd.f32 %v1542, %v1614
      %v1616 = vpop.f32.mrf.mxu0
      %1617 = vmatprep.mubr.bf16.mxu0 0
      %1618 = vmatmul.mubr.bf16.gmra.mxu0 %v1483
      %v1619 = vpop.f32.mrf.mxu0
      %v1620 = vadd.f32 %v1547, %v1619
      %v1621 = vpop.f32.mrf.mxu0
      %v1622 = vpop.f32.mrf.mxu0
      %v1623 = vadd.f32 %v1550, %v1622
      %v1624 = vpop.f32.mrf.mxu0
      %1625 = vdwg.mxu0
      %v1626 = vld [vmem:[%s1445 + $0x10] sm:$0xf]
      %v1627 = vld [vmem:[%s1445 + $0x14] sm:$0xf]
      %v1628 = vld [vmem:[%s1445 + $0x18] sm:$0xf]
      %v1629 = vld [vmem:[%s1445 + $0x1c] sm:$0xf]
      %v1630 = vld [vmem:[%s1445 + $0x20] sm:$0xf]
      %v1631 = vld [vmem:[%s1445 + $0x24] sm:$0xf]
      %v1632 = vld [vmem:[%s1445 + $0x28] sm:$0xf]
      %v1633 = vld [vmem:[%s1445 + $0x2c] sm:$0xf]
      %v1642 = vunpack.c.l.b16 %v1626
      %v1643 = vunpack.c.l.b16 %v1627
      %v1644 = vunpack.c.l.b16 %v1628
      %v1645 = vunpack.c.l.b16 %v1629
      %v1646 = vunpack.c.l.b16 %v1630
      %v1647 = vunpack.c.l.b16 %v1631
      %v1648 = vunpack.c.l.b16 %v1632
      %v1649 = vunpack.c.l.b16 %v1633
      %v1650 = vpack.c.b16 %v1643, %v1642
      %v1651 = vpack.c.b16 %v1645, %v1644
      %v1652 = vpack.c.b16 %v1647, %v1646
      %v1653 = vpack.c.b16 %v1649, %v1648
      %v1655 = vsel %vm188, %v1650, 0
      %v1658 = vsel %vm188, %v1651, 0
      %v1661 = vsel %vm188, %v1652, 0
      %v1664 = vsel %vm188, %v1653, 0
      %1666 = vmatprep.subr.bf16.mxu0 0
      %1667 = vmatpush1.bf16.msra.mxu0 0
      %1668 = vmatprep.subr.bf16.mxu0 0
      %1669 = vmatpush1.bf16.msra.mxu0 0
      %1670 = vmatprep.subr.bf16.mxu0 0
      %1671 = vmatpush1.bf16.msra.mxu0 0
      %1672 = vmatprep.subr.bf16.mxu0 0
      %1673 = vmatpush1.bf16.msra.mxu0 0
      %1674 = vmatprep.subr.bf16.mxu0 0
      %1675 = vmatpush1.bf16.msra.mxu0 0
      %1676 = vmatprep.subr.bf16.mxu0 0
      %1677 = vmatpush1.bf16.msra.mxu0 0
      %1678 = vmatprep.subr.bf16.mxu0 0
      %1679 = vmatpush1.bf16.msra.mxu0 0
      %1680 = vmatprep.subr.bf16.mxu0 0
      %1681 = vmatpush1.bf16.msra.mxu0 %v403
      %1682 = vmatprep.subr.bf16.mxu0 0
      %1683 = vmatpush2.bf16.msra.mxu0 0
      %1684 = vmatprep.subr.bf16.mxu0 0
      %1685 = vmatpush2.bf16.msra.mxu0 0
      %1686 = vmatprep.subr.bf16.mxu0 0
      %1687 = vmatpush2.bf16.msra.mxu0 0
      %1688 = vmatprep.subr.bf16.mxu0 0
      %1689 = vmatpush2.bf16.msra.mxu0 0
      %1690 = vmatprep.subr.bf16.mxu0 0
      %1691 = vmatpush2.bf16.msra.mxu0 0
      %1692 = vmatprep.subr.bf16.mxu0 0
      %1693 = vmatpush2.bf16.msra.mxu0 0
      %1694 = vmatprep.subr.bf16.mxu0 0
      %1695 = vmatpush2.bf16.msra.mxu0 0
      %1696 = vmatprep.subr.bf16.mxu0 0
      %1697 = vmatpush2.bf16.msra.mxu0 0
      %1698 = vmatprep.mubr.bf16.mxu0 0
      %1699 = vmatmul.mubr.bf16.gmra.mxu0 %v1655
      %v1700 = vpop.f32.mrf.mxu0
      %v1701 = vadd.f32 0.0, %v1700
      %v1702 = vpop.f32.mrf.mxu0
      %v1703 = vpop.f32.mrf.mxu0
      %v1704 = vadd.f32 0.0, %v1703
      %v1705 = vpop.f32.mrf.mxu0
      %1706 = vmatprep.mubr.bf16.mxu0 0
      %1707 = vmatmul.mubr.bf16.gmra.mxu0 %v1658
      %v1708 = vpop.f32.mrf.mxu0
      %v1709 = vadd.f32 0.0, %v1708
      %v1710 = vpop.f32.mrf.mxu0
      %v1711 = vpop.f32.mrf.mxu0
      %v1712 = vadd.f32 0.0, %v1711
      %v1713 = vpop.f32.mrf.mxu0
      %1714 = vmatprep.mubr.bf16.mxu0 0
      %1715 = vmatmul.mubr.bf16.gmra.mxu0 %v1661
      %v1716 = vpop.f32.mrf.mxu0
      %v1717 = vadd.f32 0.0, %v1716
      %v1718 = vpop.f32.mrf.mxu0
      %v1719 = vpop.f32.mrf.mxu0
      %v1720 = vadd.f32 0.0, %v1719
      %v1721 = vpop.f32.mrf.mxu0
      %1722 = vmatprep.mubr.bf16.mxu0 0
      %1723 = vmatmul.mubr.bf16.gmra.mxu0 %v1664
      %v1724 = vpop.f32.mrf.mxu0
      %v1725 = vadd.f32 0.0, %v1724
      %v1726 = vpop.f32.mrf.mxu0
      %v1727 = vpop.f32.mrf.mxu0
      %v1728 = vadd.f32 0.0, %v1727
      %v1729 = vpop.f32.mrf.mxu0
      %1730 = vdwg.mxu0
      %v1731 = vadd.f32 %v1596, %v1701
      %v1732 = vadd.f32 %v1599, %v1704
      %v1733 = vadd.f32 %v1604, %v1709
      %v1734 = vadd.f32 %v1607, %v1712
      %v1735 = vadd.f32 %v1612, %v1717
      %v1736 = vadd.f32 %v1615, %v1720
      %v1737 = vadd.f32 %v1620, %v1725
      %v1738 = vadd.f32 %v1623, %v1728
      %v1739 = vmax.f32 %v1731, 0.0
      %v1740 = vmax.f32 %v1732, 0.0
      %v1741 = vmax.f32 %v1733, 0.0
      %v1742 = vmax.f32 %v1734, 0.0
      %v1743 = vmax.f32 %v1735, 0.0
      %v1744 = vmax.f32 %v1736, 0.0
      %v1745 = vmax.f32 %v1737, 0.0
      %v1746 = vmax.f32 %v1738, 0.0
      %v1747 = vadd.f32 %v1739, %v1740
      %v1748 = vadd.f32 %v1747, %v1741
      %v1749 = vadd.f32 %v1748, %v1742
      %v1750 = vadd.f32 %v1749, %v1743
      %v1751 = vadd.f32 %v1750, %v1744
      %v1752 = vadd.f32 %v1751, %v1745
      %v1753 = vadd.f32 %v1752, %v1746
      %v1754 = vrot.slane %v1753, 4
      %v1755 = vadd.f32 %v1753, %v1754
      %v1756 = vrot.slane %v1755, 2
      %v1757 = vadd.f32 %v1755, %v1756
      %v1758 = vrot.slane %v1757, 1
      %v1759 = vadd.f32 %v1757, %v1758
      %v1760 = vadd.f32 %v1759, 0.0
      %v1761 = vld [vmem:[%s1445 + $0x20] sm:$0xf]
      %v1762 = vld [vmem:[%s1445 + $0x24] sm:$0xf]
      %v1763 = vld [vmem:[%s1445 + $0x28] sm:$0xf]
      %v1764 = vld [vmem:[%s1445 + $0x2c] sm:$0xf]
      %v1765 = vld [vmem:[%s1445 + $0x30] sm:$0xf]
      %v1766 = vld [vmem:[%s1445 + $0x34] sm:$0xf]
      %v1767 = vld [vmem:[%s1445 + $0x38] sm:$0xf]
      %v1768 = vld [vmem:[%s1445 + $0x3c] sm:$0xf]
      %v1769 = vld [vmem:[%s1445 + $0x40] sm:$0xf]
      %v1770 = vld [vmem:[%s1445 + $0x44] sm:$0xf]
      %v1779 = vunpack.c.l.b16 %v1763
      %v1780 = vunpack.c.l.b16 %v1764
      %v1781 = vunpack.c.l.b16 %v1765
      %v1782 = vunpack.c.l.b16 %v1766
      %v1783 = vunpack.c.l.b16 %v1767
      %v1784 = vunpack.c.l.b16 %v1768
      %v1785 = vunpack.c.l.b16 %v1769
      %v1786 = vunpack.c.l.b16 %v1770
      %v1787 = vpack.c.b16 %v1780, %v1779
      %v1788 = vpack.c.b16 %v1782, %v1781
      %v1789 = vpack.c.b16 %v1784, %v1783
      %v1790 = vpack.c.b16 %v1786, %v1785
      %v1792 = vsel %vm188, %v1787, 0
      %v1795 = vsel %vm188, %v1788, 0
      %v1798 = vsel %vm188, %v1789, 0
      %v1801 = vsel %vm188, %v1790, 0
      %1803 = vmatprep.subr.bf16.mxu0 0
      %1804 = vmatpush1.bf16.msra.mxu0 0
      %1805 = vmatprep.subr.bf16.mxu0 0
      %1806 = vmatpush1.bf16.msra.mxu0 0
      %1807 = vmatprep.subr.bf16.mxu0 0
      %1808 = vmatpush1.bf16.msra.mxu0 0
      %1809 = vmatprep.subr.bf16.mxu0 0
      %1810 = vmatpush1.bf16.msra.mxu0 0
      %1811 = vmatprep.subr.bf16.mxu0 0
      %1812 = vmatpush1.bf16.msra.mxu0 0
      %1813 = vmatprep.subr.bf16.mxu0 0
      %1814 = vmatpush1.bf16.msra.mxu0 0
      %1815 = vmatprep.subr.bf16.mxu0 0
      %1816 = vmatpush1.bf16.msra.mxu0 0
      %1817 = vmatprep.subr.bf16.mxu0 0
      %1818 = vmatpush1.bf16.msra.mxu0 %v206
      %1819 = vmatprep.subr.bf16.mxu0 0
      %1820 = vmatpush2.bf16.msra.mxu0 0
      %1821 = vmatprep.subr.bf16.mxu0 0
      %1822 = vmatpush2.bf16.msra.mxu0 0
      %1823 = vmatprep.subr.bf16.mxu0 0
      %1824 = vmatpush2.bf16.msra.mxu0 0
      %1825 = vmatprep.subr.bf16.mxu0 0
      %1826 = vmatpush2.bf16.msra.mxu0 0
      %1827 = vmatprep.subr.bf16.mxu0 0
      %1828 = vmatpush2.bf16.msra.mxu0 0
      %1829 = vmatprep.subr.bf16.mxu0 0
      %1830 = vmatpush2.bf16.msra.mxu0 0
      %1831 = vmatprep.subr.bf16.mxu0 0
      %1832 = vmatpush2.bf16.msra.mxu0 0
      %1833 = vmatprep.subr.bf16.mxu0 0
      %1834 = vmatpush2.bf16.msra.mxu0 0
      %1835 = vmatprep.mubr.bf16.mxu0 0
      %1836 = vmatmul.mubr.bf16.gmra.mxu0 %v1792
      %v1837 = vpop.f32.mrf.mxu0
      %v1838 = vadd.f32 0.0, %v1837
      %v1839 = vpop.f32.mrf.mxu0
      %v1840 = vpop.f32.mrf.mxu0
      %v1841 = vadd.f32 0.0, %v1840
      %v1842 = vpop.f32.mrf.mxu0
      %1843 = vmatprep.mubr.bf16.mxu0 0
      %1844 = vmatmul.mubr.bf16.gmra.mxu0 %v1795
      %v1845 = vpop.f32.mrf.mxu0
      %v1846 = vadd.f32 0.0, %v1845
      %v1847 = vpop.f32.mrf.mxu0
      %v1848 = vpop.f32.mrf.mxu0
      %v1849 = vadd.f32 0.0, %v1848
      %v1850 = vpop.f32.mrf.mxu0
      %1851 = vmatprep.mubr.bf16.mxu0 0
      %1852 = vmatmul.mubr.bf16.gmra.mxu0 %v1798
      %v1853 = vpop.f32.mrf.mxu0
      %v1854 = vadd.f32 0.0, %v1853
      %v1855 = vpop.f32.mrf.mxu0
      %v1856 = vpop.f32.mrf.mxu0
      %v1857 = vadd.f32 0.0, %v1856
      %v1858 = vpop.f32.mrf.mxu0
      %1859 = vmatprep.mubr.bf16.mxu0 0
      %1860 = vmatmul.mubr.bf16.gmra.mxu0 %v1801
      %v1861 = vpop.f32.mrf.mxu0
      %v1862 = vadd.f32 0.0, %v1861
      %v1863 = vpop.f32.mrf.mxu0
      %v1864 = vpop.f32.mrf.mxu0
      %v1865 = vadd.f32 0.0, %v1864
      %v1866 = vpop.f32.mrf.mxu0
      %1867 = vdwg.mxu0
      %v1870 = vunpack.c.l.b16 %v1761
      %v1871 = vunpack.c.l.b16 %v1762
      %v1872 = vpack.c.b16 %v1871, %v1870
      %v1874 = vsel %vm188, %v1872, 0
      %1876 = vmatprep.subr.bf16.mxu0 0
      %1877 = vmatpush1.bf16.msra.mxu0 0
      %1878 = vmatprep.subr.bf16.mxu0 0
      %1879 = vmatpush1.bf16.msra.mxu0 0
      %1880 = vmatprep.subr.bf16.mxu0 0
      %1881 = vmatpush1.bf16.msra.mxu0 0
      %1882 = vmatprep.subr.bf16.mxu0 0
      %1883 = vmatpush1.bf16.msra.mxu0 0
      %1884 = vmatprep.subr.bf16.mxu0 0
      %1885 = vmatpush1.bf16.msra.mxu0 0
      %1886 = vmatprep.subr.bf16.mxu0 0
      %1887 = vmatpush1.bf16.msra.mxu0 0
      %1888 = vmatprep.subr.bf16.mxu0 0
      %1889 = vmatpush1.bf16.msra.mxu0 0
      %1890 = vmatprep.subr.bf16.mxu0 0
      %1891 = vmatpush1.bf16.msra.mxu0 %v287
      %1892 = vmatprep.subr.bf16.mxu0 0
      %1893 = vmatpush2.bf16.msra.mxu0 0
      %1894 = vmatprep.subr.bf16.mxu0 0
      %1895 = vmatpush2.bf16.msra.mxu0 0
      %1896 = vmatprep.subr.bf16.mxu0 0
      %1897 = vmatpush2.bf16.msra.mxu0 0
      %1898 = vmatprep.subr.bf16.mxu0 0
      %1899 = vmatpush2.bf16.msra.mxu0 0
      %1900 = vmatprep.subr.bf16.mxu0 0
      %1901 = vmatpush2.bf16.msra.mxu0 0
      %1902 = vmatprep.subr.bf16.mxu0 0
      %1903 = vmatpush2.bf16.msra.mxu0 0
      %1904 = vmatprep.subr.bf16.mxu0 0
      %1905 = vmatpush2.bf16.msra.mxu0 0
      %1906 = vmatprep.subr.bf16.mxu0 0
      %1907 = vmatpush2.bf16.msra.mxu0 0
      %1908 = vmatprep.mubr.bf16.mxu0 0
      %1909 = vmatmul.mubr.bf16.gmra.mxu0 %v1874
      %v1910 = vpop.f32.mrf.mxu0
      %v1911 = vadd.f32 %v1838, %v1910
      %v1912 = vpop.f32.mrf.mxu0
      %v1913 = vpop.f32.mrf.mxu0
      %v1914 = vadd.f32 %v1841, %v1913
      %v1915 = vpop.f32.mrf.mxu0
      %1916 = vmatprep.mubr.bf16.mxu0 0
      %1917 = vmatmul.mubr.bf16.gmra.mxu0 %v1792
      %v1918 = vpop.f32.mrf.mxu0
      %v1919 = vadd.f32 %v1846, %v1918
      %v1920 = vpop.f32.mrf.mxu0
      %v1921 = vpop.f32.mrf.mxu0
      %v1922 = vadd.f32 %v1849, %v1921
      %v1923 = vpop.f32.mrf.mxu0
      %1924 = vmatprep.mubr.bf16.mxu0 0
      %1925 = vmatmul.mubr.bf16.gmra.mxu0 %v1795
      %v1926 = vpop.f32.mrf.mxu0
      %v1927 = vadd.f32 %v1854, %v1926
      %v1928 = vpop.f32.mrf.mxu0
      %v1929 = vpop.f32.mrf.mxu0
      %v1930 = vadd.f32 %v1857, %v1929
      %v1931 = vpop.f32.mrf.mxu0
      %1932 = vmatprep.mubr.bf16.mxu0 0
      %1933 = vmatmul.mubr.bf16.gmra.mxu0 %v1798
      %v1934 = vpop.f32.mrf.mxu0
      %v1935 = vadd.f32 %v1862, %v1934
      %v1936 = vpop.f32.mrf.mxu0
      %v1937 = vpop.f32.mrf.mxu0
      %v1938 = vadd.f32 %v1865, %v1937
      %v1939 = vpop.f32.mrf.mxu0
      %1940 = vdwg.mxu0
      %v1941 = vld [vmem:[%s1445 + $0x30] sm:$0xf]
      %v1942 = vld [vmem:[%s1445 + $0x34] sm:$0xf]
      %v1943 = vld [vmem:[%s1445 + $0x38] sm:$0xf]
      %v1944 = vld [vmem:[%s1445 + $0x3c] sm:$0xf]
      %v1945 = vld [vmem:[%s1445 + $0x40] sm:$0xf]
      %v1946 = vld [vmem:[%s1445 + $0x44] sm:$0xf]
      %v1947 = vld [vmem:[%s1445 + $0x48] sm:$0xf]
      %v1948 = vld [vmem:[%s1445 + $0x4c] sm:$0xf]
      %v1957 = vunpack.c.l.b16 %v1941
      %v1958 = vunpack.c.l.b16 %v1942
      %v1959 = vunpack.c.l.b16 %v1943
      %v1960 = vunpack.c.l.b16 %v1944
      %v1961 = vunpack.c.l.b16 %v1945
      %v1962 = vunpack.c.l.b16 %v1946
      %v1963 = vunpack.c.l.b16 %v1947
      %v1964 = vunpack.c.l.b16 %v1948
      %v1965 = vpack.c.b16 %v1958, %v1957
      %v1966 = vpack.c.b16 %v1960, %v1959
      %v1967 = vpack.c.b16 %v1962, %v1961
      %v1968 = vpack.c.b16 %v1964, %v1963
      %v1970 = vsel %vm188, %v1965, 0
      %v1973 = vsel %vm188, %v1966, 0
      %v1976 = vsel %vm188, %v1967, 0
      %v1979 = vsel %vm188, %v1968, 0
      %1981 = vmatprep.subr.bf16.mxu0 0
      %1982 = vmatpush1.bf16.msra.mxu0 0
      %1983 = vmatprep.subr.bf16.mxu0 0
      %1984 = vmatpush1.bf16.msra.mxu0 0
      %1985 = vmatprep.subr.bf16.mxu0 0
      %1986 = vmatpush1.bf16.msra.mxu0 0
      %1987 = vmatprep.subr.bf16.mxu0 0
      %1988 = vmatpush1.bf16.msra.mxu0 0
      %1989 = vmatprep.subr.bf16.mxu0 0
      %1990 = vmatpush1.bf16.msra.mxu0 0
      %1991 = vmatprep.subr.bf16.mxu0 0
      %1992 = vmatpush1.bf16.msra.mxu0 0
      %1993 = vmatprep.subr.bf16.mxu0 0
      %1994 = vmatpush1.bf16.msra.mxu0 0
      %1995 = vmatprep.subr.bf16.mxu0 0
      %1996 = vmatpush1.bf16.msra.mxu0 %v403
      %1997 = vmatprep.subr.bf16.mxu0 0
      %1998 = vmatpush2.bf16.msra.mxu0 0
      %1999 = vmatprep.subr.bf16.mxu0 0
      %2000 = vmatpush2.bf16.msra.mxu0 0
      %2001 = vmatprep.subr.bf16.mxu0 0
      %2002 = vmatpush2.bf16.msra.mxu0 0
      %2003 = vmatprep.subr.bf16.mxu0 0
      %2004 = vmatpush2.bf16.msra.mxu0 0
      %2005 = vmatprep.subr.bf16.mxu0 0
      %2006 = vmatpush2.bf16.msra.mxu0 0
      %2007 = vmatprep.subr.bf16.mxu0 0
      %2008 = vmatpush2.bf16.msra.mxu0 0
      %2009 = vmatprep.subr.bf16.mxu0 0
      %2010 = vmatpush2.bf16.msra.mxu0 0
      %2011 = vmatprep.subr.bf16.mxu0 0
      %2012 = vmatpush2.bf16.msra.mxu0 0
      %2013 = vmatprep.mubr.bf16.mxu0 0
      %2014 = vmatmul.mubr.bf16.gmra.mxu0 %v1970
      %v2015 = vpop.f32.mrf.mxu0
      %v2016 = vadd.f32 0.0, %v2015
      %v2017 = vpop.f32.mrf.mxu0
      %v2018 = vpop.f32.mrf.mxu0
      %v2019 = vadd.f32 0.0, %v2018
      %v2020 = vpop.f32.mrf.mxu0
      %2021 = vmatprep.mubr.bf16.mxu0 0
      %2022 = vmatmul.mubr.bf16.gmra.mxu0 %v1973
      %v2023 = vpop.f32.mrf.mxu0
      %v2024 = vadd.f32 0.0, %v2023
      %v2025 = vpop.f32.mrf.mxu0
      %v2026 = vpop.f32.mrf.mxu0
      %v2027 = vadd.f32 0.0, %v2026
      %v2028 = vpop.f32.mrf.mxu0
      %2029 = vmatprep.mubr.bf16.mxu0 0
      %2030 = vmatmul.mubr.bf16.gmra.mxu0 %v1976
      %v2031 = vpop.f32.mrf.mxu0
      %v2032 = vadd.f32 0.0, %v2031
      %v2033 = vpop.f32.mrf.mxu0
      %v2034 = vpop.f32.mrf.mxu0
      %v2035 = vadd.f32 0.0, %v2034
      %v2036 = vpop.f32.mrf.mxu0
      %2037 = vmatprep.mubr.bf16.mxu0 0
      %2038 = vmatmul.mubr.bf16.gmra.mxu0 %v1979
      %v2039 = vpop.f32.mrf.mxu0
      %v2040 = vadd.f32 0.0, %v2039
      %v2041 = vpop.f32.mrf.mxu0
      %v2042 = vpop.f32.mrf.mxu0
      %v2043 = vadd.f32 0.0, %v2042
      %v2044 = vpop.f32.mrf.mxu0
      %2045 = vdwg.mxu0
      %v2046 = vadd.f32 %v1911, %v2016
      %v2047 = vadd.f32 %v1914, %v2019
      %v2048 = vadd.f32 %v1919, %v2024
      %v2049 = vadd.f32 %v1922, %v2027
      %v2050 = vadd.f32 %v1927, %v2032
      %v2051 = vadd.f32 %v1930, %v2035
      %v2052 = vadd.f32 %v1935, %v2040
      %v2053 = vadd.f32 %v1938, %v2043
      %v2054 = vmax.f32 %v2046, 0.0
      %v2055 = vmax.f32 %v2047, 0.0
      %v2056 = vmax.f32 %v2048, 0.0
      %v2057 = vmax.f32 %v2049, 0.0
      %v2058 = vmax.f32 %v2050, 0.0
      %v2059 = vmax.f32 %v2051, 0.0
      %v2060 = vmax.f32 %v2052, 0.0
      %v2061 = vmax.f32 %v2053, 0.0
      %v2062 = vadd.f32 %v2054, %v2055
      %v2063 = vadd.f32 %v2062, %v2056
      %v2064 = vadd.f32 %v2063, %v2057
      %v2065 = vadd.f32 %v2064, %v2058
      %v2066 = vadd.f32 %v2065, %v2059
      %v2067 = vadd.f32 %v2066, %v2060
      %v2068 = vadd.f32 %v2067, %v2061
      %v2069 = vrot.slane %v2068, 4
      %v2070 = vadd.f32 %v2068, %v2069
      %v2071 = vrot.slane %v2070, 2
      %v2072 = vadd.f32 %v2070, %v2071
      %v2073 = vrot.slane %v2072, 1
      %v2074 = vadd.f32 %v2072, %v2073
      %v2075 = vadd.f32 %v1760, %v2074
      %v2076 = vld [vmem:[%s1445 + $0x40] sm:$0xf]
      %v2077 = vld [vmem:[%s1445 + $0x44] sm:$0xf]
      %v2078 = vld [vmem:[%s1445 + $0x48] sm:$0xf]
      %v2079 = vld [vmem:[%s1445 + $0x4c] sm:$0xf]
      %v2080 = vld [vmem:[%s1445 + $0x50] sm:$0xf]
      %v2081 = vld [vmem:[%s1445 + $0x54] sm:$0xf]
      %v2082 = vld [vmem:[%s1445 + $0x58] sm:$0xf]
      %v2083 = vld [vmem:[%s1445 + $0x5c] sm:$0xf]
      %v2084 = vld [vmem:[%s1445 + $0x60] sm:$0xf]
      %v2085 = vld [vmem:[%s1445 + $0x64] sm:$0xf]
      %v2094 = vunpack.c.l.b16 %v2078
      %v2095 = vunpack.c.l.b16 %v2079
      %v2096 = vunpack.c.l.b16 %v2080
      %v2097 = vunpack.c.l.b16 %v2081
      %v2098 = vunpack.c.l.b16 %v2082
      %v2099 = vunpack.c.l.b16 %v2083
      %v2100 = vunpack.c.l.b16 %v2084
      %v2101 = vunpack.c.l.b16 %v2085
      %v2102 = vpack.c.b16 %v2095, %v2094
      %v2103 = vpack.c.b16 %v2097, %v2096
      %v2104 = vpack.c.b16 %v2099, %v2098
      %v2105 = vpack.c.b16 %v2101, %v2100
      %v2107 = vsel %vm188, %v2102, 0
      %v2110 = vsel %vm188, %v2103, 0
      %v2113 = vsel %vm188, %v2104, 0
      %v2116 = vsel %vm188, %v2105, 0
      %2118 = vmatprep.subr.bf16.mxu0 0
      %2119 = vmatpush1.bf16.msra.mxu0 0
      %2120 = vmatprep.subr.bf16.mxu0 0
      %2121 = vmatpush1.bf16.msra.mxu0 0
      %2122 = vmatprep.subr.bf16.mxu0 0
      %2123 = vmatpush1.bf16.msra.mxu0 0
      %2124 = vmatprep.subr.bf16.mxu0 0
      %2125 = vmatpush1.bf16.msra.mxu0 0
      %2126 = vmatprep.subr.bf16.mxu0 0
      %2127 = vmatpush1.bf16.msra.mxu0 0
      %2128 = vmatprep.subr.bf16.mxu0 0
      %2129 = vmatpush1.bf16.msra.mxu0 0
      %2130 = vmatprep.subr.bf16.mxu0 0
      %2131 = vmatpush1.bf16.msra.mxu0 0
      %2132 = vmatprep.subr.bf16.mxu0 0
      %2133 = vmatpush1.bf16.msra.mxu0 %v206
      %2134 = vmatprep.subr.bf16.mxu0 0
      %2135 = vmatpush2.bf16.msra.mxu0 0
      %2136 = vmatprep.subr.bf16.mxu0 0
      %2137 = vmatpush2.bf16.msra.mxu0 0
      %2138 = vmatprep.subr.bf16.mxu0 0
      %2139 = vmatpush2.bf16.msra.mxu0 0
      %2140 = vmatprep.subr.bf16.mxu0 0
      %2141 = vmatpush2.bf16.msra.mxu0 0
      %2142 = vmatprep.subr.bf16.mxu0 0
      %2143 = vmatpush2.bf16.msra.mxu0 0
      %2144 = vmatprep.subr.bf16.mxu0 0
      %2145 = vmatpush2.bf16.msra.mxu0 0
      %2146 = vmatprep.subr.bf16.mxu0 0
      %2147 = vmatpush2.bf16.msra.mxu0 0
      %2148 = vmatprep.subr.bf16.mxu0 0
      %2149 = vmatpush2.bf16.msra.mxu0 0
      %2150 = vmatprep.mubr.bf16.mxu0 0
      %2151 = vmatmul.mubr.bf16.gmra.mxu0 %v2107
      %v2152 = vpop.f32.mrf.mxu0
      %v2153 = vadd.f32 0.0, %v2152
      %v2154 = vpop.f32.mrf.mxu0
      %v2155 = vpop.f32.mrf.mxu0
      %v2156 = vadd.f32 0.0, %v2155
      %v2157 = vpop.f32.mrf.mxu0
      %2158 = vmatprep.mubr.bf16.mxu0 0
      %2159 = vmatmul.mubr.bf16.gmra.mxu0 %v2110
      %v2160 = vpop.f32.mrf.mxu0
      %v2161 = vadd.f32 0.0, %v2160
      %v2162 = vpop.f32.mrf.mxu0
      %v2163 = vpop.f32.mrf.mxu0
      %v2164 = vadd.f32 0.0, %v2163
      %v2165 = vpop.f32.mrf.mxu0
      %2166 = vmatprep.mubr.bf16.mxu0 0
      %2167 = vmatmul.mubr.bf16.gmra.mxu0 %v2113
      %v2168 = vpop.f32.mrf.mxu0
      %v2169 = vadd.f32 0.0, %v2168
      %v2170 = vpop.f32.mrf.mxu0
      %v2171 = vpop.f32.mrf.mxu0
      %v2172 = vadd.f32 0.0, %v2171
      %v2173 = vpop.f32.mrf.mxu0
      %2174 = vmatprep.mubr.bf16.mxu0 0
      %2175 = vmatmul.mubr.bf16.gmra.mxu0 %v2116
      %v2176 = vpop.f32.mrf.mxu0
      %v2177 = vadd.f32 0.0, %v2176
      %v2178 = vpop.f32.mrf.mxu0
      %v2179 = vpop.f32.mrf.mxu0
      %v2180 = vadd.f32 0.0, %v2179
      %v2181 = vpop.f32.mrf.mxu0
      %2182 = vdwg.mxu0
      %v2185 = vunpack.c.l.b16 %v2076
      %v2186 = vunpack.c.l.b16 %v2077
      %v2187 = vpack.c.b16 %v2186, %v2185
      %v2189 = vsel %vm188, %v2187, 0
      %2191 = vmatprep.subr.bf16.mxu0 0
      %2192 = vmatpush1.bf16.msra.mxu0 0
      %2193 = vmatprep.subr.bf16.mxu0 0
      %2194 = vmatpush1.bf16.msra.mxu0 0
      %2195 = vmatprep.subr.bf16.mxu0 0
      %2196 = vmatpush1.bf16.msra.mxu0 0
      %2197 = vmatprep.subr.bf16.mxu0 0
      %2198 = vmatpush1.bf16.msra.mxu0 0
      %2199 = vmatprep.subr.bf16.mxu0 0
      %2200 = vmatpush1.bf16.msra.mxu0 0
      %2201 = vmatprep.subr.bf16.mxu0 0
      %2202 = vmatpush1.bf16.msra.mxu0 0
      %2203 = vmatprep.subr.bf16.mxu0 0
      %2204 = vmatpush1.bf16.msra.mxu0 0
      %2205 = vmatprep.subr.bf16.mxu0 0
      %2206 = vmatpush1.bf16.msra.mxu0 %v287
      %2207 = vmatprep.subr.bf16.mxu0 0
      %2208 = vmatpush2.bf16.msra.mxu0 0
      %2209 = vmatprep.subr.bf16.mxu0 0
      %2210 = vmatpush2.bf16.msra.mxu0 0
      %2211 = vmatprep.subr.bf16.mxu0 0
      %2212 = vmatpush2.bf16.msra.mxu0 0
      %2213 = vmatprep.subr.bf16.mxu0 0
      %2214 = vmatpush2.bf16.msra.mxu0 0
      %2215 = vmatprep.subr.bf16.mxu0 0
      %2216 = vmatpush2.bf16.msra.mxu0 0
      %2217 = vmatprep.subr.bf16.mxu0 0
      %2218 = vmatpush2.bf16.msra.mxu0 0
      %2219 = vmatprep.subr.bf16.mxu0 0
      %2220 = vmatpush2.bf16.msra.mxu0 0
      %2221 = vmatprep.subr.bf16.mxu0 0
      %2222 = vmatpush2.bf16.msra.mxu0 0
      %2223 = vmatprep.mubr.bf16.mxu0 0
      %2224 = vmatmul.mubr.bf16.gmra.mxu0 %v2189
      %v2225 = vpop.f32.mrf.mxu0
      %v2226 = vadd.f32 %v2153, %v2225
      %v2227 = vpop.f32.mrf.mxu0
      %v2228 = vpop.f32.mrf.mxu0
      %v2229 = vadd.f32 %v2156, %v2228
      %v2230 = vpop.f32.mrf.mxu0
      %2231 = vmatprep.mubr.bf16.mxu0 0
      %2232 = vmatmul.mubr.bf16.gmra.mxu0 %v2107
      %v2233 = vpop.f32.mrf.mxu0
      %v2234 = vadd.f32 %v2161, %v2233
      %v2235 = vpop.f32.mrf.mxu0
      %v2236 = vpop.f32.mrf.mxu0
      %v2237 = vadd.f32 %v2164, %v2236
      %v2238 = vpop.f32.mrf.mxu0
      %2239 = vmatprep.mubr.bf16.mxu0 0
      %2240 = vmatmul.mubr.bf16.gmra.mxu0 %v2110
      %v2241 = vpop.f32.mrf.mxu0
      %v2242 = vadd.f32 %v2169, %v2241
      %v2243 = vpop.f32.mrf.mxu0
      %v2244 = vpop.f32.mrf.mxu0
      %v2245 = vadd.f32 %v2172, %v2244
      %v2246 = vpop.f32.mrf.mxu0
      %2247 = vmatprep.mubr.bf16.mxu0 0
      %2248 = vmatmul.mubr.bf16.gmra.mxu0 %v2113
      %v2249 = vpop.f32.mrf.mxu0
      %v2250 = vadd.f32 %v2177, %v2249
      %v2251 = vpop.f32.mrf.mxu0
      %v2252 = vpop.f32.mrf.mxu0
      %v2253 = vadd.f32 %v2180, %v2252
      %v2254 = vpop.f32.mrf.mxu0
      %2255 = vdwg.mxu0
      %v2256 = vld [vmem:[%s1445 + $0x50] sm:$0xf]
      %v2257 = vld [vmem:[%s1445 + $0x54] sm:$0xf]
      %v2258 = vld [vmem:[%s1445 + $0x58] sm:$0xf]
      %v2259 = vld [vmem:[%s1445 + $0x5c] sm:$0xf]
      %v2260 = vld [vmem:[%s1445 + $0x60] sm:$0xf]
      %v2261 = vld [vmem:[%s1445 + $0x64] sm:$0xf]
      %v2262 = vld [vmem:[%s1445 + $0x68] sm:$0xf]
      %v2263 = vld [vmem:[%s1445 + $0x6c] sm:$0xf]
      %v2272 = vunpack.c.l.b16 %v2256
      %v2273 = vunpack.c.l.b16 %v2257
      %v2274 = vunpack.c.l.b16 %v2258
      %v2275 = vunpack.c.l.b16 %v2259
      %v2276 = vunpack.c.l.b16 %v2260
      %v2277 = vunpack.c.l.b16 %v2261
      %v2278 = vunpack.c.l.b16 %v2262
      %v2279 = vunpack.c.l.b16 %v2263
      %v2280 = vpack.c.b16 %v2273, %v2272
      %v2281 = vpack.c.b16 %v2275, %v2274
      %v2282 = vpack.c.b16 %v2277, %v2276
      %v2283 = vpack.c.b16 %v2279, %v2278
      %v2285 = vsel %vm188, %v2280, 0
      %v2288 = vsel %vm188, %v2281, 0
      %v2291 = vsel %vm188, %v2282, 0
      %v2294 = vsel %vm188, %v2283, 0
      %2296 = vmatprep.subr.bf16.mxu0 0
      %2297 = vmatpush1.bf16.msra.mxu0 0
      %2298 = vmatprep.subr.bf16.mxu0 0
      %2299 = vmatpush1.bf16.msra.mxu0 0
      %2300 = vmatprep.subr.bf16.mxu0 0
      %2301 = vmatpush1.bf16.msra.mxu0 0
      %2302 = vmatprep.subr.bf16.mxu0 0
      %2303 = vmatpush1.bf16.msra.mxu0 0
      %2304 = vmatprep.subr.bf16.mxu0 0
      %2305 = vmatpush1.bf16.msra.mxu0 0
      %2306 = vmatprep.subr.bf16.mxu0 0
      %2307 = vmatpush1.bf16.msra.mxu0 0
      %2308 = vmatprep.subr.bf16.mxu0 0
      %2309 = vmatpush1.bf16.msra.mxu0 0
      %2310 = vmatprep.subr.bf16.mxu0 0
      %2311 = vmatpush1.bf16.msra.mxu0 %v403
      %2312 = vmatprep.subr.bf16.mxu0 0
      %2313 = vmatpush2.bf16.msra.mxu0 0
      %2314 = vmatprep.subr.bf16.mxu0 0
      %2315 = vmatpush2.bf16.msra.mxu0 0
      %2316 = vmatprep.subr.bf16.mxu0 0
      %2317 = vmatpush2.bf16.msra.mxu0 0
      %2318 = vmatprep.subr.bf16.mxu0 0
      %2319 = vmatpush2.bf16.msra.mxu0 0
      %2320 = vmatprep.subr.bf16.mxu0 0
      %2321 = vmatpush2.bf16.msra.mxu0 0
      %2322 = vmatprep.subr.bf16.mxu0 0
      %2323 = vmatpush2.bf16.msra.mxu0 0
      %2324 = vmatprep.subr.bf16.mxu0 0
      %2325 = vmatpush2.bf16.msra.mxu0 0
      %2326 = vmatprep.subr.bf16.mxu0 0
      %2327 = vmatpush2.bf16.msra.mxu0 0
      %2328 = vmatprep.mubr.bf16.mxu0 0
      %2329 = vmatmul.mubr.bf16.gmra.mxu0 %v2285
      %v2330 = vpop.f32.mrf.mxu0
      %v2331 = vadd.f32 0.0, %v2330
      %v2332 = vpop.f32.mrf.mxu0
      %v2333 = vpop.f32.mrf.mxu0
      %v2334 = vadd.f32 0.0, %v2333
      %v2335 = vpop.f32.mrf.mxu0
      %2336 = vmatprep.mubr.bf16.mxu0 0
      %2337 = vmatmul.mubr.bf16.gmra.mxu0 %v2288
      %v2338 = vpop.f32.mrf.mxu0
      %v2339 = vadd.f32 0.0, %v2338
      %v2340 = vpop.f32.mrf.mxu0
      %v2341 = vpop.f32.mrf.mxu0
      %v2342 = vadd.f32 0.0, %v2341
      %v2343 = vpop.f32.mrf.mxu0
      %2344 = vmatprep.mubr.bf16.mxu0 0
      %2345 = vmatmul.mubr.bf16.gmra.mxu0 %v2291
      %v2346 = vpop.f32.mrf.mxu0
      %v2347 = vadd.f32 0.0, %v2346
      %v2348 = vpop.f32.mrf.mxu0
      %v2349 = vpop.f32.mrf.mxu0
      %v2350 = vadd.f32 0.0, %v2349
      %v2351 = vpop.f32.mrf.mxu0
      %2352 = vmatprep.mubr.bf16.mxu0 0
      %2353 = vmatmul.mubr.bf16.gmra.mxu0 %v2294
      %v2354 = vpop.f32.mrf.mxu0
      %v2355 = vadd.f32 0.0, %v2354
      %v2356 = vpop.f32.mrf.mxu0
      %v2357 = vpop.f32.mrf.mxu0
      %v2358 = vadd.f32 0.0, %v2357
      %v2359 = vpop.f32.mrf.mxu0
      %2360 = vdwg.mxu0
      %v2361 = vadd.f32 %v2226, %v2331
      %v2362 = vadd.f32 %v2229, %v2334
      %v2363 = vadd.f32 %v2234, %v2339
      %v2364 = vadd.f32 %v2237, %v2342
      %v2365 = vadd.f32 %v2242, %v2347
      %v2366 = vadd.f32 %v2245, %v2350
      %v2367 = vadd.f32 %v2250, %v2355
      %v2368 = vadd.f32 %v2253, %v2358
      %v2369 = vmax.f32 %v2361, 0.0
      %v2370 = vmax.f32 %v2362, 0.0
      %v2371 = vmax.f32 %v2363, 0.0
      %v2372 = vmax.f32 %v2364, 0.0
      %v2373 = vmax.f32 %v2365, 0.0
      %v2374 = vmax.f32 %v2366, 0.0
      %v2375 = vmax.f32 %v2367, 0.0
      %v2376 = vmax.f32 %v2368, 0.0
      %v2377 = vadd.f32 %v2369, %v2370
      %v2378 = vadd.f32 %v2377, %v2371
      %v2379 = vadd.f32 %v2378, %v2372
      %v2380 = vadd.f32 %v2379, %v2373
      %v2381 = vadd.f32 %v2380, %v2374
      %v2382 = vadd.f32 %v2381, %v2375
      %v2383 = vadd.f32 %v2382, %v2376
      %v2384 = vrot.slane %v2383, 4
      %v2385 = vadd.f32 %v2383, %v2384
      %v2386 = vrot.slane %v2385, 2
      %v2387 = vadd.f32 %v2385, %v2386
      %v2388 = vrot.slane %v2387, 1
      %v2389 = vadd.f32 %v2387, %v2388
      %v2390 = vadd.f32 %v2075, %v2389
      %v2391 = vld [vmem:[%s1445 + $0x60] sm:$0xf]
      %v2392 = vld [vmem:[%s1445 + $0x64] sm:$0xf]
      %v2393 = vld [vmem:[%s1445 + $0x68] sm:$0xf]
      %v2394 = vld [vmem:[%s1445 + $0x6c] sm:$0xf]
      %v2395 = vld [vmem:[%s1445 + $0x70] sm:$0xf]
      %v2396 = vld [vmem:[%s1445 + $0x74] sm:$0xf]
      %v2397 = vld [vmem:[%s1445 + $0x78] sm:$0xf]
      %v2398 = vld [vmem:[%s1445 + $0x7c] sm:$0xf]
      %v2399 = vld [vmem:[%s1445 + $0x80] sm:$0xf]
      %v2400 = vld [vmem:[%s1445 + $0x84] sm:$0xf]
      %v2409 = vunpack.c.l.b16 %v2393
      %v2410 = vunpack.c.l.b16 %v2394
      %v2411 = vunpack.c.l.b16 %v2395
      %v2412 = vunpack.c.l.b16 %v2396
      %v2413 = vunpack.c.l.b16 %v2397
      %v2414 = vunpack.c.l.b16 %v2398
      %v2415 = vunpack.c.l.b16 %v2399
      %v2416 = vunpack.c.l.b16 %v2400
      %v2417 = vpack.c.b16 %v2410, %v2409
      %v2418 = vpack.c.b16 %v2412, %v2411
      %v2419 = vpack.c.b16 %v2414, %v2413
      %v2420 = vpack.c.b16 %v2416, %v2415
      %v2422 = vsel %vm188, %v2417, 0
      %v2425 = vsel %vm188, %v2418, 0
      %v2428 = vsel %vm188, %v2419, 0
      %v2431 = vsel %vm188, %v2420, 0
      %2433 = vmatprep.subr.bf16.mxu0 0
      %2434 = vmatpush1.bf16.msra.mxu0 0
      %2435 = vmatprep.subr.bf16.mxu0 0
      %2436 = vmatpush1.bf16.msra.mxu0 0
      %2437 = vmatprep.subr.bf16.mxu0 0
      %2438 = vmatpush1.bf16.msra.mxu0 0
      %2439 = vmatprep.subr.bf16.mxu0 0
      %2440 = vmatpush1.bf16.msra.mxu0 0
      %2441 = vmatprep.subr.bf16.mxu0 0
      %2442 = vmatpush1.bf16.msra.mxu0 0
      %2443 = vmatprep.subr.bf16.mxu0 0
      %2444 = vmatpush1.bf16.msra.mxu0 0
      %2445 = vmatprep.subr.bf16.mxu0 0
      %2446 = vmatpush1.bf16.msra.mxu0 0
      %2447 = vmatprep.subr.bf16.mxu0 0
      %2448 = vmatpush1.bf16.msra.mxu0 %v206
      %2449 = vmatprep.subr.bf16.mxu0 0
      %2450 = vmatpush2.bf16.msra.mxu0 0
      %2451 = vmatprep.subr.bf16.mxu0 0
      %2452 = vmatpush2.bf16.msra.mxu0 0
      %2453 = vmatprep.subr.bf16.mxu0 0
      %2454 = vmatpush2.bf16.msra.mxu0 0
      %2455 = vmatprep.subr.bf16.mxu0 0
      %2456 = vmatpush2.bf16.msra.mxu0 0
      %2457 = vmatprep.subr.bf16.mxu0 0
      %2458 = vmatpush2.bf16.msra.mxu0 0
      %2459 = vmatprep.subr.bf16.mxu0 0
      %2460 = vmatpush2.bf16.msra.mxu0 0
      %2461 = vmatprep.subr.bf16.mxu0 0
      %2462 = vmatpush2.bf16.msra.mxu0 0
      %2463 = vmatprep.subr.bf16.mxu0 0
      %2464 = vmatpush2.bf16.msra.mxu0 0
      %2465 = vmatprep.mubr.bf16.mxu0 0
      %2466 = vmatmul.mubr.bf16.gmra.mxu0 %v2422
      %v2467 = vpop.f32.mrf.mxu0
      %v2468 = vadd.f32 0.0, %v2467
      %v2469 = vpop.f32.mrf.mxu0
      %v2470 = vpop.f32.mrf.mxu0
      %v2471 = vadd.f32 0.0, %v2470
      %v2472 = vpop.f32.mrf.mxu0
      %2473 = vmatprep.mubr.bf16.mxu0 0
      %2474 = vmatmul.mubr.bf16.gmra.mxu0 %v2425
      %v2475 = vpop.f32.mrf.mxu0
      %v2476 = vadd.f32 0.0, %v2475
      %v2477 = vpop.f32.mrf.mxu0
      %v2478 = vpop.f32.mrf.mxu0
      %v2479 = vadd.f32 0.0, %v2478
      %v2480 = vpop.f32.mrf.mxu0
      %2481 = vmatprep.mubr.bf16.mxu0 0
      %2482 = vmatmul.mubr.bf16.gmra.mxu0 %v2428
      %v2483 = vpop.f32.mrf.mxu0
      %v2484 = vadd.f32 0.0, %v2483
      %v2485 = vpop.f32.mrf.mxu0
      %v2486 = vpop.f32.mrf.mxu0
      %v2487 = vadd.f32 0.0, %v2486
      %v2488 = vpop.f32.mrf.mxu0
      %2489 = vmatprep.mubr.bf16.mxu0 0
      %2490 = vmatmul.mubr.bf16.gmra.mxu0 %v2431
      %v2491 = vpop.f32.mrf.mxu0
      %v2492 = vadd.f32 0.0, %v2491
      %v2493 = vpop.f32.mrf.mxu0
      %v2494 = vpop.f32.mrf.mxu0
      %v2495 = vadd.f32 0.0, %v2494
      %v2496 = vpop.f32.mrf.mxu0
      %2497 = vdwg.mxu0
      %v2500 = vunpack.c.l.b16 %v2391
      %v2501 = vunpack.c.l.b16 %v2392
      %v2502 = vpack.c.b16 %v2501, %v2500
      %v2504 = vsel %vm188, %v2502, 0
      %2506 = vmatprep.subr.bf16.mxu0 0
      %2507 = vmatpush1.bf16.msra.mxu0 0
      %2508 = vmatprep.subr.bf16.mxu0 0
      %2509 = vmatpush1.bf16.msra.mxu0 0
      %2510 = vmatprep.subr.bf16.mxu0 0
      %2511 = vmatpush1.bf16.msra.mxu0 0
      %2512 = vmatprep.subr.bf16.mxu0 0
      %2513 = vmatpush1.bf16.msra.mxu0 0
      %2514 = vmatprep.subr.bf16.mxu0 0
      %2515 = vmatpush1.bf16.msra.mxu0 0
      %2516 = vmatprep.subr.bf16.mxu0 0
      %2517 = vmatpush1.bf16.msra.mxu0 0
      %2518 = vmatprep.subr.bf16.mxu0 0
      %2519 = vmatpush1.bf16.msra.mxu0 0
      %2520 = vmatprep.subr.bf16.mxu0 0
      %2521 = vmatpush1.bf16.msra.mxu0 %v287
      %2522 = vmatprep.subr.bf16.mxu0 0
      %2523 = vmatpush2.bf16.msra.mxu0 0
      %2524 = vmatprep.subr.bf16.mxu0 0
      %2525 = vmatpush2.bf16.msra.mxu0 0
      %2526 = vmatprep.subr.bf16.mxu0 0
      %2527 = vmatpush2.bf16.msra.mxu0 0
      %2528 = vmatprep.subr.bf16.mxu0 0
      %2529 = vmatpush2.bf16.msra.mxu0 0
      %2530 = vmatprep.subr.bf16.mxu0 0
      %2531 = vmatpush2.bf16.msra.mxu0 0
      %2532 = vmatprep.subr.bf16.mxu0 0
      %2533 = vmatpush2.bf16.msra.mxu0 0
      %2534 = vmatprep.subr.bf16.mxu0 0
      %2535 = vmatpush2.bf16.msra.mxu0 0
      %2536 = vmatprep.subr.bf16.mxu0 0
      %2537 = vmatpush2.bf16.msra.mxu0 0
      %2538 = vmatprep.mubr.bf16.mxu0 0
      %2539 = vmatmul.mubr.bf16.gmra.mxu0 %v2504
      %v2540 = vpop.f32.mrf.mxu0
      %v2541 = vadd.f32 %v2468, %v2540
      %v2542 = vpop.f32.mrf.mxu0
      %v2543 = vpop.f32.mrf.mxu0
      %v2544 = vadd.f32 %v2471, %v2543
      %v2545 = vpop.f32.mrf.mxu0
      %2546 = vmatprep.mubr.bf16.mxu0 0
      %2547 = vmatmul.mubr.bf16.gmra.mxu0 %v2422
      %v2548 = vpop.f32.mrf.mxu0
      %v2549 = vadd.f32 %v2476, %v2548
      %v2550 = vpop.f32.mrf.mxu0
      %v2551 = vpop.f32.mrf.mxu0
      %v2552 = vadd.f32 %v2479, %v2551
      %v2553 = vpop.f32.mrf.mxu0
      %2554 = vmatprep.mubr.bf16.mxu0 0
      %2555 = vmatmul.mubr.bf16.gmra.mxu0 %v2425
      %v2556 = vpop.f32.mrf.mxu0
      %v2557 = vadd.f32 %v2484, %v2556
      %v2558 = vpop.f32.mrf.mxu0
      %v2559 = vpop.f32.mrf.mxu0
      %v2560 = vadd.f32 %v2487, %v2559
      %v2561 = vpop.f32.mrf.mxu0
      %2562 = vmatprep.mubr.bf16.mxu0 0
      %2563 = vmatmul.mubr.bf16.gmra.mxu0 %v2428
      %v2564 = vpop.f32.mrf.mxu0
      %v2565 = vadd.f32 %v2492, %v2564
      %v2566 = vpop.f32.mrf.mxu0
      %v2567 = vpop.f32.mrf.mxu0
      %v2568 = vadd.f32 %v2495, %v2567
      %v2569 = vpop.f32.mrf.mxu0
      %2570 = vdwg.mxu0
      %v2571 = vld [vmem:[%s1445 + $0x70] sm:$0xf]
      %v2572 = vld [vmem:[%s1445 + $0x74] sm:$0xf]
      %v2573 = vld [vmem:[%s1445 + $0x78] sm:$0xf]
      %v2574 = vld [vmem:[%s1445 + $0x7c] sm:$0xf]
      %v2575 = vld [vmem:[%s1445 + $0x80] sm:$0xf]
      %v2576 = vld [vmem:[%s1445 + $0x84] sm:$0xf]
      %v2577 = vld [vmem:[%s1445 + $0x88] sm:$0xf]
      %v2578 = vld [vmem:[%s1445 + $0x8c] sm:$0xf]
      %v2587 = vunpack.c.l.b16 %v2571
      %v2588 = vunpack.c.l.b16 %v2572
      %v2589 = vunpack.c.l.b16 %v2573
      %v2590 = vunpack.c.l.b16 %v2574
      %v2591 = vunpack.c.l.b16 %v2575
      %v2592 = vunpack.c.l.b16 %v2576
      %v2593 = vunpack.c.l.b16 %v2577
      %v2594 = vunpack.c.l.b16 %v2578
      %v2595 = vpack.c.b16 %v2588, %v2587
      %v2596 = vpack.c.b16 %v2590, %v2589
      %v2597 = vpack.c.b16 %v2592, %v2591
      %v2598 = vpack.c.b16 %v2594, %v2593
      %v2600 = vsel %vm188, %v2595, 0
      %v2603 = vsel %vm188, %v2596, 0
      %v2606 = vsel %vm188, %v2597, 0
      %v2609 = vsel %vm188, %v2598, 0
      %2611 = vmatprep.subr.bf16.mxu0 0
      %2612 = vmatpush1.bf16.msra.mxu0 0
      %2613 = vmatprep.subr.bf16.mxu0 0
      %2614 = vmatpush1.bf16.msra.mxu0 0
      %2615 = vmatprep.subr.bf16.mxu0 0
      %2616 = vmatpush1.bf16.msra.mxu0 0
      %2617 = vmatprep.subr.bf16.mxu0 0
      %2618 = vmatpush1.bf16.msra.mxu0 0
      %2619 = vmatprep.subr.bf16.mxu0 0
      %2620 = vmatpush1.bf16.msra.mxu0 0
      %2621 = vmatprep.subr.bf16.mxu0 0
      %2622 = vmatpush1.bf16.msra.mxu0 0
      %2623 = vmatprep.subr.bf16.mxu0 0
      %2624 = vmatpush1.bf16.msra.mxu0 0
      %2625 = vmatprep.subr.bf16.mxu0 0
      %2626 = vmatpush1.bf16.msra.mxu0 %v403
      %2627 = vmatprep.subr.bf16.mxu0 0
      %2628 = vmatpush2.bf16.msra.mxu0 0
      %2629 = vmatprep.subr.bf16.mxu0 0
      %2630 = vmatpush2.bf16.msra.mxu0 0
      %2631 = vmatprep.subr.bf16.mxu0 0
      %2632 = vmatpush2.bf16.msra.mxu0 0
      %2633 = vmatprep.subr.bf16.mxu0 0
      %2634 = vmatpush2.bf16.msra.mxu0 0
      %2635 = vmatprep.subr.bf16.mxu0 0
      %2636 = vmatpush2.bf16.msra.mxu0 0
      %2637 = vmatprep.subr.bf16.mxu0 0
      %2638 = vmatpush2.bf16.msra.mxu0 0
      %2639 = vmatprep.subr.bf16.mxu0 0
      %2640 = vmatpush2.bf16.msra.mxu0 0
      %2641 = vmatprep.subr.bf16.mxu0 0
      %2642 = vmatpush2.bf16.msra.mxu0 0
      %2643 = vmatprep.mubr.bf16.mxu0 0
      %2644 = vmatmul.mubr.bf16.gmra.mxu0 %v2600
      %v2645 = vpop.f32.mrf.mxu0
      %v2646 = vadd.f32 0.0, %v2645
      %v2647 = vpop.f32.mrf.mxu0
      %v2648 = vpop.f32.mrf.mxu0
      %v2649 = vadd.f32 0.0, %v2648
      %v2650 = vpop.f32.mrf.mxu0
      %2651 = vmatprep.mubr.bf16.mxu0 0
      %2652 = vmatmul.mubr.bf16.gmra.mxu0 %v2603
      %v2653 = vpop.f32.mrf.mxu0
      %v2654 = vadd.f32 0.0, %v2653
      %v2655 = vpop.f32.mrf.mxu0
      %v2656 = vpop.f32.mrf.mxu0
      %v2657 = vadd.f32 0.0, %v2656
      %v2658 = vpop.f32.mrf.mxu0
      %2659 = vmatprep.mubr.bf16.mxu0 0
      %2660 = vmatmul.mubr.bf16.gmra.mxu0 %v2606
      %v2661 = vpop.f32.mrf.mxu0
      %v2662 = vadd.f32 0.0, %v2661
      %v2663 = vpop.f32.mrf.mxu0
      %v2664 = vpop.f32.mrf.mxu0
      %v2665 = vadd.f32 0.0, %v2664
      %v2666 = vpop.f32.mrf.mxu0
      %2667 = vmatprep.mubr.bf16.mxu0 0
      %2668 = vmatmul.mubr.bf16.gmra.mxu0 %v2609
      %v2669 = vpop.f32.mrf.mxu0
      %v2670 = vadd.f32 0.0, %v2669
      %v2671 = vpop.f32.mrf.mxu0
      %v2672 = vpop.f32.mrf.mxu0
      %v2673 = vadd.f32 0.0, %v2672
      %v2674 = vpop.f32.mrf.mxu0
      %2675 = vdwg.mxu0
      %v2676 = vadd.f32 %v2541, %v2646
      %v2677 = vadd.f32 %v2544, %v2649
      %v2678 = vadd.f32 %v2549, %v2654
      %v2679 = vadd.f32 %v2552, %v2657
      %v2680 = vadd.f32 %v2557, %v2662
      %v2681 = vadd.f32 %v2560, %v2665
      %v2682 = vadd.f32 %v2565, %v2670
      %v2683 = vadd.f32 %v2568, %v2673
      %v2684 = vmax.f32 %v2676, 0.0
      %v2685 = vmax.f32 %v2677, 0.0
      %v2686 = vmax.f32 %v2678, 0.0
      %v2687 = vmax.f32 %v2679, 0.0
      %v2688 = vmax.f32 %v2680, 0.0
      %v2689 = vmax.f32 %v2681, 0.0
      %v2690 = vmax.f32 %v2682, 0.0
      %v2691 = vmax.f32 %v2683, 0.0
      %v2692 = vadd.f32 %v2684, %v2685
      %v2693 = vadd.f32 %v2692, %v2686
      %v2694 = vadd.f32 %v2693, %v2687
      %v2695 = vadd.f32 %v2694, %v2688
      %v2696 = vadd.f32 %v2695, %v2689
      %v2697 = vadd.f32 %v2696, %v2690
      %v2698 = vadd.f32 %v2697, %v2691
      %v2699 = vrot.slane %v2698, 4
      %v2700 = vadd.f32 %v2698, %v2699
      %v2701 = vrot.slane %v2700, 2
      %v2702 = vadd.f32 %v2700, %v2701
      %v2703 = vrot.slane %v2702, 1
      %v2704 = vadd.f32 %v2702, %v2703
      %v2705 = vadd.f32 %v2390, %v2704
      %s2706 = scalar_lea.vmem %s141, 288
      %v2707 = vld [vmem:[%s2706] sm:$0xf]
      %v2708 = vld [vmem:[%s2706 + $0x4] sm:$0xf]
      %v2709 = vld [vmem:[%s2706 + $0x8] sm:$0xf]
      %v2710 = vld [vmem:[%s2706 + $0xc] sm:$0xf]
      %v2711 = vld [vmem:[%s2706 + $0x10] sm:$0xf]
      %v2712 = vld [vmem:[%s2706 + $0x14] sm:$0xf]
      %v2713 = vld [vmem:[%s2706 + $0x18] sm:$0xf]
      %v2714 = vld [vmem:[%s2706 + $0x1c] sm:$0xf]
      %v2715 = vld [vmem:[%s2706 + $0x20] sm:$0xf]
      %v2716 = vld [vmem:[%s2706 + $0x24] sm:$0xf]
      %v2725 = vunpack.c.l.b16 %v2709
      %v2726 = vunpack.c.l.b16 %v2710
      %v2727 = vunpack.c.l.b16 %v2711
      %v2728 = vunpack.c.l.b16 %v2712
      %v2729 = vunpack.c.l.b16 %v2713
      %v2730 = vunpack.c.l.b16 %v2714
      %v2731 = vunpack.c.l.b16 %v2715
      %v2732 = vunpack.c.l.b16 %v2716
      %v2733 = vpack.c.b16 %v2726, %v2725
      %v2734 = vpack.c.b16 %v2728, %v2727
      %v2735 = vpack.c.b16 %v2730, %v2729
      %v2736 = vpack.c.b16 %v2732, %v2731
      %v2738 = vsel %vm188, %v2733, 0
      %v2741 = vsel %vm188, %v2734, 0
      %v2744 = vsel %vm188, %v2735, 0
      %v2747 = vsel %vm188, %v2736, 0
      %2749 = vmatprep.subr.bf16.mxu0 0
      %2750 = vmatpush1.bf16.msra.mxu0 0
      %2751 = vmatprep.subr.bf16.mxu0 0
      %2752 = vmatpush1.bf16.msra.mxu0 0
      %2753 = vmatprep.subr.bf16.mxu0 0
      %2754 = vmatpush1.bf16.msra.mxu0 0
      %2755 = vmatprep.subr.bf16.mxu0 0
      %2756 = vmatpush1.bf16.msra.mxu0 0
      %2757 = vmatprep.subr.bf16.mxu0 0
      %2758 = vmatpush1.bf16.msra.mxu0 0
      %2759 = vmatprep.subr.bf16.mxu0 0
      %2760 = vmatpush1.bf16.msra.mxu0 0
      %2761 = vmatprep.subr.bf16.mxu0 0
      %2762 = vmatpush1.bf16.msra.mxu0 0
      %2763 = vmatprep.subr.bf16.mxu0 0
      %2764 = vmatpush1.bf16.msra.mxu0 %v206
      %2765 = vmatprep.subr.bf16.mxu0 0
      %2766 = vmatpush2.bf16.msra.mxu0 0
      %2767 = vmatprep.subr.bf16.mxu0 0
      %2768 = vmatpush2.bf16.msra.mxu0 0
      %2769 = vmatprep.subr.bf16.mxu0 0
      %2770 = vmatpush2.bf16.msra.mxu0 0
      %2771 = vmatprep.subr.bf16.mxu0 0
      %2772 = vmatpush2.bf16.msra.mxu0 0
      %2773 = vmatprep.subr.bf16.mxu0 0
      %2774 = vmatpush2.bf16.msra.mxu0 0
      %2775 = vmatprep.subr.bf16.mxu0 0
      %2776 = vmatpush2.bf16.msra.mxu0 0
      %2777 = vmatprep.subr.bf16.mxu0 0
      %2778 = vmatpush2.bf16.msra.mxu0 0
      %2779 = vmatprep.subr.bf16.mxu0 0
      %2780 = vmatpush2.bf16.msra.mxu0 0
      %2781 = vmatprep.mubr.bf16.mxu0 0
      %2782 = vmatmul.mubr.bf16.gmra.mxu0 %v2738
      %v2783 = vpop.f32.mrf.mxu0
      %v2784 = vadd.f32 0.0, %v2783
      %v2785 = vpop.f32.mrf.mxu0
      %v2786 = vpop.f32.mrf.mxu0
      %v2787 = vadd.f32 0.0, %v2786
      %v2788 = vpop.f32.mrf.mxu0
      %2789 = vmatprep.mubr.bf16.mxu0 0
      %2790 = vmatmul.mubr.bf16.gmra.mxu0 %v2741
      %v2791 = vpop.f32.mrf.mxu0
      %v2792 = vadd.f32 0.0, %v2791
      %v2793 = vpop.f32.mrf.mxu0
      %v2794 = vpop.f32.mrf.mxu0
      %v2795 = vadd.f32 0.0, %v2794
      %v2796 = vpop.f32.mrf.mxu0
      %2797 = vmatprep.mubr.bf16.mxu0 0
      %2798 = vmatmul.mubr.bf16.gmra.mxu0 %v2744
      %v2799 = vpop.f32.mrf.mxu0
      %v2800 = vadd.f32 0.0, %v2799
      %v2801 = vpop.f32.mrf.mxu0
      %v2802 = vpop.f32.mrf.mxu0
      %v2803 = vadd.f32 0.0, %v2802
      %v2804 = vpop.f32.mrf.mxu0
      %2805 = vmatprep.mubr.bf16.mxu0 0
      %2806 = vmatmul.mubr.bf16.gmra.mxu0 %v2747
      %v2807 = vpop.f32.mrf.mxu0
      %v2808 = vadd.f32 0.0, %v2807
      %v2809 = vpop.f32.mrf.mxu0
      %v2810 = vpop.f32.mrf.mxu0
      %v2811 = vadd.f32 0.0, %v2810
      %v2812 = vpop.f32.mrf.mxu0
      %2813 = vdwg.mxu0
      %v2816 = vunpack.c.l.b16 %v2707
      %v2817 = vunpack.c.l.b16 %v2708
      %v2818 = vpack.c.b16 %v2817, %v2816
      %v2820 = vsel %vm188, %v2818, 0
      %2822 = vmatprep.subr.bf16.mxu0 0
      %2823 = vmatpush1.bf16.msra.mxu0 0
      %2824 = vmatprep.subr.bf16.mxu0 0
      %2825 = vmatpush1.bf16.msra.mxu0 0
      %2826 = vmatprep.subr.bf16.mxu0 0
      %2827 = vmatpush1.bf16.msra.mxu0 0
      %2828 = vmatprep.subr.bf16.mxu0 0
      %2829 = vmatpush1.bf16.msra.mxu0 0
      %2830 = vmatprep.subr.bf16.mxu0 0
      %2831 = vmatpush1.bf16.msra.mxu0 0
      %2832 = vmatprep.subr.bf16.mxu0 0
      %2833 = vmatpush1.bf16.msra.mxu0 0
      %2834 = vmatprep.subr.bf16.mxu0 0
      %2835 = vmatpush1.bf16.msra.mxu0 0
      %2836 = vmatprep.subr.bf16.mxu0 0
      %2837 = vmatpush1.bf16.msra.mxu0 %v287
      %2838 = vmatprep.subr.bf16.mxu0 0
      %2839 = vmatpush2.bf16.msra.mxu0 0
      %2840 = vmatprep.subr.bf16.mxu0 0
      %2841 = vmatpush2.bf16.msra.mxu0 0
      %2842 = vmatprep.subr.bf16.mxu0 0
      %2843 = vmatpush2.bf16.msra.mxu0 0
      %2844 = vmatprep.subr.bf16.mxu0 0
      %2845 = vmatpush2.bf16.msra.mxu0 0
      %2846 = vmatprep.subr.bf16.mxu0 0
      %2847 = vmatpush2.bf16.msra.mxu0 0
      %2848 = vmatprep.subr.bf16.mxu0 0
      %2849 = vmatpush2.bf16.msra.mxu0 0
      %2850 = vmatprep.subr.bf16.mxu0 0
      %2851 = vmatpush2.bf16.msra.mxu0 0
      %2852 = vmatprep.subr.bf16.mxu0 0
      %2853 = vmatpush2.bf16.msra.mxu0 0
      %2854 = vmatprep.mubr.bf16.mxu0 0
      %2855 = vmatmul.mubr.bf16.gmra.mxu0 %v2820
      %v2856 = vpop.f32.mrf.mxu0
      %v2857 = vadd.f32 %v2784, %v2856
      %v2858 = vpop.f32.mrf.mxu0
      %v2859 = vpop.f32.mrf.mxu0
      %v2860 = vadd.f32 %v2787, %v2859
      %v2861 = vpop.f32.mrf.mxu0
      %2862 = vmatprep.mubr.bf16.mxu0 0
      %2863 = vmatmul.mubr.bf16.gmra.mxu0 %v2738
      %v2864 = vpop.f32.mrf.mxu0
      %v2865 = vadd.f32 %v2792, %v2864
      %v2866 = vpop.f32.mrf.mxu0
      %v2867 = vpop.f32.mrf.mxu0
      %v2868 = vadd.f32 %v2795, %v2867
      %v2869 = vpop.f32.mrf.mxu0
      %2870 = vmatprep.mubr.bf16.mxu0 0
      %2871 = vmatmul.mubr.bf16.gmra.mxu0 %v2741
      %v2872 = vpop.f32.mrf.mxu0
      %v2873 = vadd.f32 %v2800, %v2872
      %v2874 = vpop.f32.mrf.mxu0
      %v2875 = vpop.f32.mrf.mxu0
      %v2876 = vadd.f32 %v2803, %v2875
      %v2877 = vpop.f32.mrf.mxu0
      %2878 = vmatprep.mubr.bf16.mxu0 0
      %2879 = vmatmul.mubr.bf16.gmra.mxu0 %v2744
      %v2880 = vpop.f32.mrf.mxu0
      %v2881 = vadd.f32 %v2808, %v2880
      %v2882 = vpop.f32.mrf.mxu0
      %v2883 = vpop.f32.mrf.mxu0
      %v2884 = vadd.f32 %v2811, %v2883
      %v2885 = vpop.f32.mrf.mxu0
      %2886 = vdwg.mxu0
      %v2887 = vld [vmem:[%s2706 + $0x10] sm:$0xf]
      %v2888 = vld [vmem:[%s2706 + $0x14] sm:$0xf]
      %v2889 = vld [vmem:[%s2706 + $0x18] sm:$0xf]
      %v2890 = vld [vmem:[%s2706 + $0x1c] sm:$0xf]
      %v2891 = vld [vmem:[%s2706 + $0x20] sm:$0xf]
      %v2892 = vld [vmem:[%s2706 + $0x24] sm:$0xf]
      %v2893 = vld [vmem:[%s2706 + $0x28] sm:$0xf]
      %v2894 = vld [vmem:[%s2706 + $0x2c] sm:$0xf]
      %v2903 = vunpack.c.l.b16 %v2887
      %v2904 = vunpack.c.l.b16 %v2888
      %v2905 = vunpack.c.l.b16 %v2889
      %v2906 = vunpack.c.l.b16 %v2890
      %v2907 = vunpack.c.l.b16 %v2891
      %v2908 = vunpack.c.l.b16 %v2892
      %v2909 = vunpack.c.l.b16 %v2893
      %v2910 = vunpack.c.l.b16 %v2894
      %v2911 = vpack.c.b16 %v2904, %v2903
      %v2912 = vpack.c.b16 %v2906, %v2905
      %v2913 = vpack.c.b16 %v2908, %v2907
      %v2914 = vpack.c.b16 %v2910, %v2909
      %v2916 = vsel %vm188, %v2911, 0
      %v2919 = vsel %vm188, %v2912, 0
      %v2922 = vsel %vm188, %v2913, 0
      %v2925 = vsel %vm188, %v2914, 0
      %2927 = vmatprep.subr.bf16.mxu0 0
      %2928 = vmatpush1.bf16.msra.mxu0 0
      %2929 = vmatprep.subr.bf16.mxu0 0
      %2930 = vmatpush1.bf16.msra.mxu0 0
      %2931 = vmatprep.subr.bf16.mxu0 0
      %2932 = vmatpush1.bf16.msra.mxu0 0
      %2933 = vmatprep.subr.bf16.mxu0 0
      %2934 = vmatpush1.bf16.msra.mxu0 0
      %2935 = vmatprep.subr.bf16.mxu0 0
      %2936 = vmatpush1.bf16.msra.mxu0 0
      %2937 = vmatprep.subr.bf16.mxu0 0
      %2938 = vmatpush1.bf16.msra.mxu0 0
      %2939 = vmatprep.subr.bf16.mxu0 0
      %2940 = vmatpush1.bf16.msra.mxu0 0
      %2941 = vmatprep.subr.bf16.mxu0 0
      %2942 = vmatpush1.bf16.msra.mxu0 %v403
      %2943 = vmatprep.subr.bf16.mxu0 0
      %2944 = vmatpush2.bf16.msra.mxu0 0
      %2945 = vmatprep.subr.bf16.mxu0 0
      %2946 = vmatpush2.bf16.msra.mxu0 0
      %2947 = vmatprep.subr.bf16.mxu0 0
      %2948 = vmatpush2.bf16.msra.mxu0 0
      %2949 = vmatprep.subr.bf16.mxu0 0
      %2950 = vmatpush2.bf16.msra.mxu0 0
      %2951 = vmatprep.subr.bf16.mxu0 0
      %2952 = vmatpush2.bf16.msra.mxu0 0
      %2953 = vmatprep.subr.bf16.mxu0 0
      %2954 = vmatpush2.bf16.msra.mxu0 0
      %2955 = vmatprep.subr.bf16.mxu0 0
      %2956 = vmatpush2.bf16.msra.mxu0 0
      %2957 = vmatprep.subr.bf16.mxu0 0
      %2958 = vmatpush2.bf16.msra.mxu0 0
      %2959 = vmatprep.mubr.bf16.mxu0 0
      %2960 = vmatmul.mubr.bf16.gmra.mxu0 %v2916
      %v2961 = vpop.f32.mrf.mxu0
      %v2962 = vadd.f32 0.0, %v2961
      %v2963 = vpop.f32.mrf.mxu0
      %v2964 = vpop.f32.mrf.mxu0
      %v2965 = vadd.f32 0.0, %v2964
      %v2966 = vpop.f32.mrf.mxu0
      %2967 = vmatprep.mubr.bf16.mxu0 0
      %2968 = vmatmul.mubr.bf16.gmra.mxu0 %v2919
      %v2969 = vpop.f32.mrf.mxu0
      %v2970 = vadd.f32 0.0, %v2969
      %v2971 = vpop.f32.mrf.mxu0
      %v2972 = vpop.f32.mrf.mxu0
      %v2973 = vadd.f32 0.0, %v2972
      %v2974 = vpop.f32.mrf.mxu0
      %2975 = vmatprep.mubr.bf16.mxu0 0
      %2976 = vmatmul.mubr.bf16.gmra.mxu0 %v2922
      %v2977 = vpop.f32.mrf.mxu0
      %v2978 = vadd.f32 0.0, %v2977
      %v2979 = vpop.f32.mrf.mxu0
      %v2980 = vpop.f32.mrf.mxu0
      %v2981 = vadd.f32 0.0, %v2980
      %v2982 = vpop.f32.mrf.mxu0
      %2983 = vmatprep.mubr.bf16.mxu0 0
      %2984 = vmatmul.mubr.bf16.gmra.mxu0 %v2925
      %v2985 = vpop.f32.mrf.mxu0
      %v2986 = vadd.f32 0.0, %v2985
      %v2987 = vpop.f32.mrf.mxu0
      %v2988 = vpop.f32.mrf.mxu0
      %v2989 = vadd.f32 0.0, %v2988
      %v2990 = vpop.f32.mrf.mxu0
      %2991 = vdwg.mxu0
      %v2992 = vadd.f32 %v2857, %v2962
      %v2993 = vadd.f32 %v2860, %v2965
      %v2994 = vadd.f32 %v2865, %v2970
      %v2995 = vadd.f32 %v2868, %v2973
      %v2996 = vadd.f32 %v2873, %v2978
      %v2997 = vadd.f32 %v2876, %v2981
      %v2998 = vadd.f32 %v2881, %v2986
      %v2999 = vadd.f32 %v2884, %v2989
      %v3000 = vmax.f32 %v2992, 0.0
      %v3001 = vmax.f32 %v2993, 0.0
      %v3002 = vmax.f32 %v2994, 0.0
      %v3003 = vmax.f32 %v2995, 0.0
      %v3004 = vmax.f32 %v2996, 0.0
      %v3005 = vmax.f32 %v2997, 0.0
      %v3006 = vmax.f32 %v2998, 0.0
      %v3007 = vmax.f32 %v2999, 0.0
      %v3008 = vadd.f32 %v3000, %v3001
      %v3009 = vadd.f32 %v3008, %v3002
      %v3010 = vadd.f32 %v3009, %v3003
      %v3011 = vadd.f32 %v3010, %v3004
      %v3012 = vadd.f32 %v3011, %v3005
      %v3013 = vadd.f32 %v3012, %v3006
      %v3014 = vadd.f32 %v3013, %v3007
      %v3015 = vrot.slane %v3014, 4
      %v3016 = vadd.f32 %v3014, %v3015
      %v3017 = vrot.slane %v3016, 2
      %v3018 = vadd.f32 %v3016, %v3017
      %v3019 = vrot.slane %v3018, 1
      %v3020 = vadd.f32 %v3018, %v3019
      %v3021 = vadd.f32 %v3020, 0.0
      %v3022 = vld [vmem:[%s2706 + $0x20] sm:$0xf]
      %v3023 = vld [vmem:[%s2706 + $0x24] sm:$0xf]
      %v3024 = vld [vmem:[%s2706 + $0x28] sm:$0xf]
      %v3025 = vld [vmem:[%s2706 + $0x2c] sm:$0xf]
      %v3026 = vld [vmem:[%s2706 + $0x30] sm:$0xf]
      %v3027 = vld [vmem:[%s2706 + $0x34] sm:$0xf]
      %v3028 = vld [vmem:[%s2706 + $0x38] sm:$0xf]
      %v3029 = vld [vmem:[%s2706 + $0x3c] sm:$0xf]
      %v3030 = vld [vmem:[%s2706 + $0x40] sm:$0xf]
      %v3031 = vld [vmem:[%s2706 + $0x44] sm:$0xf]
      %v3040 = vunpack.c.l.b16 %v3024
      %v3041 = vunpack.c.l.b16 %v3025
      %v3042 = vunpack.c.l.b16 %v3026
      %v3043 = vunpack.c.l.b16 %v3027
      %v3044 = vunpack.c.l.b16 %v3028
      %v3045 = vunpack.c.l.b16 %v3029
      %v3046 = vunpack.c.l.b16 %v3030
      %v3047 = vunpack.c.l.b16 %v3031
      %v3048 = vpack.c.b16 %v3041, %v3040
      %v3049 = vpack.c.b16 %v3043, %v3042
      %v3050 = vpack.c.b16 %v3045, %v3044
      %v3051 = vpack.c.b16 %v3047, %v3046
      %v3053 = vsel %vm188, %v3048, 0
      %v3056 = vsel %vm188, %v3049, 0
      %v3059 = vsel %vm188, %v3050, 0
      %v3062 = vsel %vm188, %v3051, 0
      %3064 = vmatprep.subr.bf16.mxu0 0
      %3065 = vmatpush1.bf16.msra.mxu0 0
      %3066 = vmatprep.subr.bf16.mxu0 0
      %3067 = vmatpush1.bf16.msra.mxu0 0
      %3068 = vmatprep.subr.bf16.mxu0 0
      %3069 = vmatpush1.bf16.msra.mxu0 0
      %3070 = vmatprep.subr.bf16.mxu0 0
      %3071 = vmatpush1.bf16.msra.mxu0 0
      %3072 = vmatprep.subr.bf16.mxu0 0
      %3073 = vmatpush1.bf16.msra.mxu0 0
      %3074 = vmatprep.subr.bf16.mxu0 0
      %3075 = vmatpush1.bf16.msra.mxu0 0
      %3076 = vmatprep.subr.bf16.mxu0 0
      %3077 = vmatpush1.bf16.msra.mxu0 0
      %3078 = vmatprep.subr.bf16.mxu0 0
      %3079 = vmatpush1.bf16.msra.mxu0 %v206
      %3080 = vmatprep.subr.bf16.mxu0 0
      %3081 = vmatpush2.bf16.msra.mxu0 0
      %3082 = vmatprep.subr.bf16.mxu0 0
      %3083 = vmatpush2.bf16.msra.mxu0 0
      %3084 = vmatprep.subr.bf16.mxu0 0
      %3085 = vmatpush2.bf16.msra.mxu0 0
      %3086 = vmatprep.subr.bf16.mxu0 0
      %3087 = vmatpush2.bf16.msra.mxu0 0
      %3088 = vmatprep.subr.bf16.mxu0 0
      %3089 = vmatpush2.bf16.msra.mxu0 0
      %3090 = vmatprep.subr.bf16.mxu0 0
      %3091 = vmatpush2.bf16.msra.mxu0 0
      %3092 = vmatprep.subr.bf16.mxu0 0
      %3093 = vmatpush2.bf16.msra.mxu0 0
      %3094 = vmatprep.subr.bf16.mxu0 0
      %3095 = vmatpush2.bf16.msra.mxu0 0
      %3096 = vmatprep.mubr.bf16.mxu0 0
      %3097 = vmatmul.mubr.bf16.gmra.mxu0 %v3053
      %v3098 = vpop.f32.mrf.mxu0
      %v3099 = vadd.f32 0.0, %v3098
      %v3100 = vpop.f32.mrf.mxu0
      %v3101 = vpop.f32.mrf.mxu0
      %v3102 = vadd.f32 0.0, %v3101
      %v3103 = vpop.f32.mrf.mxu0
      %3104 = vmatprep.mubr.bf16.mxu0 0
      %3105 = vmatmul.mubr.bf16.gmra.mxu0 %v3056
      %v3106 = vpop.f32.mrf.mxu0
      %v3107 = vadd.f32 0.0, %v3106
      %v3108 = vpop.f32.mrf.mxu0
      %v3109 = vpop.f32.mrf.mxu0
      %v3110 = vadd.f32 0.0, %v3109
      %v3111 = vpop.f32.mrf.mxu0
      %3112 = vmatprep.mubr.bf16.mxu0 0
      %3113 = vmatmul.mubr.bf16.gmra.mxu0 %v3059
      %v3114 = vpop.f32.mrf.mxu0
      %v3115 = vadd.f32 0.0, %v3114
      %v3116 = vpop.f32.mrf.mxu0
      %v3117 = vpop.f32.mrf.mxu0
      %v3118 = vadd.f32 0.0, %v3117
      %v3119 = vpop.f32.mrf.mxu0
      %3120 = vmatprep.mubr.bf16.mxu0 0
      %3121 = vmatmul.mubr.bf16.gmra.mxu0 %v3062
      %v3122 = vpop.f32.mrf.mxu0
      %v3123 = vadd.f32 0.0, %v3122
      %v3124 = vpop.f32.mrf.mxu0
      %v3125 = vpop.f32.mrf.mxu0
      %v3126 = vadd.f32 0.0, %v3125
      %v3127 = vpop.f32.mrf.mxu0
      %3128 = vdwg.mxu0
      %v3131 = vunpack.c.l.b16 %v3022
      %v3132 = vunpack.c.l.b16 %v3023
      %v3133 = vpack.c.b16 %v3132, %v3131
      %v3135 = vsel %vm188, %v3133, 0
      %3137 = vmatprep.subr.bf16.mxu0 0
      %3138 = vmatpush1.bf16.msra.mxu0 0
      %3139 = vmatprep.subr.bf16.mxu0 0
      %3140 = vmatpush1.bf16.msra.mxu0 0
      %3141 = vmatprep.subr.bf16.mxu0 0
      %3142 = vmatpush1.bf16.msra.mxu0 0
      %3143 = vmatprep.subr.bf16.mxu0 0
      %3144 = vmatpush1.bf16.msra.mxu0 0
      %3145 = vmatprep.subr.bf16.mxu0 0
      %3146 = vmatpush1.bf16.msra.mxu0 0
      %3147 = vmatprep.subr.bf16.mxu0 0
      %3148 = vmatpush1.bf16.msra.mxu0 0
      %3149 = vmatprep.subr.bf16.mxu0 0
      %3150 = vmatpush1.bf16.msra.mxu0 0
      %3151 = vmatprep.subr.bf16.mxu0 0
      %3152 = vmatpush1.bf16.msra.mxu0 %v287
      %3153 = vmatprep.subr.bf16.mxu0 0
      %3154 = vmatpush2.bf16.msra.mxu0 0
      %3155 = vmatprep.subr.bf16.mxu0 0
      %3156 = vmatpush2.bf16.msra.mxu0 0
      %3157 = vmatprep.subr.bf16.mxu0 0
      %3158 = vmatpush2.bf16.msra.mxu0 0
      %3159 = vmatprep.subr.bf16.mxu0 0
      %3160 = vmatpush2.bf16.msra.mxu0 0
      %3161 = vmatprep.subr.bf16.mxu0 0
      %3162 = vmatpush2.bf16.msra.mxu0 0
      %3163 = vmatprep.subr.bf16.mxu0 0
      %3164 = vmatpush2.bf16.msra.mxu0 0
      %3165 = vmatprep.subr.bf16.mxu0 0
      %3166 = vmatpush2.bf16.msra.mxu0 0
      %3167 = vmatprep.subr.bf16.mxu0 0
      %3168 = vmatpush2.bf16.msra.mxu0 0
      %3169 = vmatprep.mubr.bf16.mxu0 0
      %3170 = vmatmul.mubr.bf16.gmra.mxu0 %v3135
      %v3171 = vpop.f32.mrf.mxu0
      %v3172 = vadd.f32 %v3099, %v3171
      %v3173 = vpop.f32.mrf.mxu0
      %v3174 = vpop.f32.mrf.mxu0
      %v3175 = vadd.f32 %v3102, %v3174
      %v3176 = vpop.f32.mrf.mxu0
      %3177 = vmatprep.mubr.bf16.mxu0 0
      %3178 = vmatmul.mubr.bf16.gmra.mxu0 %v3053
      %v3179 = vpop.f32.mrf.mxu0
      %v3180 = vadd.f32 %v3107, %v3179
      %v3181 = vpop.f32.mrf.mxu0
      %v3182 = vpop.f32.mrf.mxu0
      %v3183 = vadd.f32 %v3110, %v3182
      %v3184 = vpop.f32.mrf.mxu0
      %3185 = vmatprep.mubr.bf16.mxu0 0
      %3186 = vmatmul.mubr.bf16.gmra.mxu0 %v3056
      %v3187 = vpop.f32.mrf.mxu0
      %v3188 = vadd.f32 %v3115, %v3187
      %v3189 = vpop.f32.mrf.mxu0
      %v3190 = vpop.f32.mrf.mxu0
      %v3191 = vadd.f32 %v3118, %v3190
      %v3192 = vpop.f32.mrf.mxu0
      %3193 = vmatprep.mubr.bf16.mxu0 0
      %3194 = vmatmul.mubr.bf16.gmra.mxu0 %v3059
      %v3195 = vpop.f32.mrf.mxu0
      %v3196 = vadd.f32 %v3123, %v3195
      %v3197 = vpop.f32.mrf.mxu0
      %v3198 = vpop.f32.mrf.mxu0
      %v3199 = vadd.f32 %v3126, %v3198
      %v3200 = vpop.f32.mrf.mxu0
      %3201 = vdwg.mxu0
      %v3202 = vld [vmem:[%s2706 + $0x30] sm:$0xf]
      %v3203 = vld [vmem:[%s2706 + $0x34] sm:$0xf]
      %v3204 = vld [vmem:[%s2706 + $0x38] sm:$0xf]
      %v3205 = vld [vmem:[%s2706 + $0x3c] sm:$0xf]
      %v3206 = vld [vmem:[%s2706 + $0x40] sm:$0xf]
      %v3207 = vld [vmem:[%s2706 + $0x44] sm:$0xf]
      %v3208 = vld [vmem:[%s2706 + $0x48] sm:$0xf]
      %v3209 = vld [vmem:[%s2706 + $0x4c] sm:$0xf]
      %v3218 = vunpack.c.l.b16 %v3202
      %v3219 = vunpack.c.l.b16 %v3203
      %v3220 = vunpack.c.l.b16 %v3204
      %v3221 = vunpack.c.l.b16 %v3205
      %v3222 = vunpack.c.l.b16 %v3206
      %v3223 = vunpack.c.l.b16 %v3207
      %v3224 = vunpack.c.l.b16 %v3208
      %v3225 = vunpack.c.l.b16 %v3209
      %v3226 = vpack.c.b16 %v3219, %v3218
      %v3227 = vpack.c.b16 %v3221, %v3220
      %v3228 = vpack.c.b16 %v3223, %v3222
      %v3229 = vpack.c.b16 %v3225, %v3224
      %v3231 = vsel %vm188, %v3226, 0
      %v3234 = vsel %vm188, %v3227, 0
      %v3237 = vsel %vm188, %v3228, 0
      %v3240 = vsel %vm188, %v3229, 0
      %3242 = vmatprep.subr.bf16.mxu0 0
      %3243 = vmatpush1.bf16.msra.mxu0 0
      %3244 = vmatprep.subr.bf16.mxu0 0
      %3245 = vmatpush1.bf16.msra.mxu0 0
      %3246 = vmatprep.subr.bf16.mxu0 0
      %3247 = vmatpush1.bf16.msra.mxu0 0
      %3248 = vmatprep.subr.bf16.mxu0 0
      %3249 = vmatpush1.bf16.msra.mxu0 0
      %3250 = vmatprep.subr.bf16.mxu0 0
      %3251 = vmatpush1.bf16.msra.mxu0 0
      %3252 = vmatprep.subr.bf16.mxu0 0
      %3253 = vmatpush1.bf16.msra.mxu0 0
      %3254 = vmatprep.subr.bf16.mxu0 0
      %3255 = vmatpush1.bf16.msra.mxu0 0
      %3256 = vmatprep.subr.bf16.mxu0 0
      %3257 = vmatpush1.bf16.msra.mxu0 %v403
      %3258 = vmatprep.subr.bf16.mxu0 0
      %3259 = vmatpush2.bf16.msra.mxu0 0
      %3260 = vmatprep.subr.bf16.mxu0 0
      %3261 = vmatpush2.bf16.msra.mxu0 0
      %3262 = vmatprep.subr.bf16.mxu0 0
      %3263 = vmatpush2.bf16.msra.mxu0 0
      %3264 = vmatprep.subr.bf16.mxu0 0
      %3265 = vmatpush2.bf16.msra.mxu0 0
      %3266 = vmatprep.subr.bf16.mxu0 0
      %3267 = vmatpush2.bf16.msra.mxu0 0
      %3268 = vmatprep.subr.bf16.mxu0 0
      %3269 = vmatpush2.bf16.msra.mxu0 0
      %3270 = vmatprep.subr.bf16.mxu0 0
      %3271 = vmatpush2.bf16.msra.mxu0 0
      %3272 = vmatprep.subr.bf16.mxu0 0
      %3273 = vmatpush2.bf16.msra.mxu0 0
      %3274 = vmatprep.mubr.bf16.mxu0 0
      %3275 = vmatmul.mubr.bf16.gmra.mxu0 %v3231
      %v3276 = vpop.f32.mrf.mxu0
      %v3277 = vadd.f32 0.0, %v3276
      %v3278 = vpop.f32.mrf.mxu0
      %v3279 = vpop.f32.mrf.mxu0
      %v3280 = vadd.f32 0.0, %v3279
      %v3281 = vpop.f32.mrf.mxu0
      %3282 = vmatprep.mubr.bf16.mxu0 0
      %3283 = vmatmul.mubr.bf16.gmra.mxu0 %v3234
      %v3284 = vpop.f32.mrf.mxu0
      %v3285 = vadd.f32 0.0, %v3284
      %v3286 = vpop.f32.mrf.mxu0
      %v3287 = vpop.f32.mrf.mxu0
      %v3288 = vadd.f32 0.0, %v3287
      %v3289 = vpop.f32.mrf.mxu0
      %3290 = vmatprep.mubr.bf16.mxu0 0
      %3291 = vmatmul.mubr.bf16.gmra.mxu0 %v3237
      %v3292 = vpop.f32.mrf.mxu0
      %v3293 = vadd.f32 0.0, %v3292
      %v3294 = vpop.f32.mrf.mxu0
      %v3295 = vpop.f32.mrf.mxu0
      %v3296 = vadd.f32 0.0, %v3295
      %v3297 = vpop.f32.mrf.mxu0
      %3298 = vmatprep.mubr.bf16.mxu0 0
      %3299 = vmatmul.mubr.bf16.gmra.mxu0 %v3240
      %v3300 = vpop.f32.mrf.mxu0
      %v3301 = vadd.f32 0.0, %v3300
      %v3302 = vpop.f32.mrf.mxu0
      %v3303 = vpop.f32.mrf.mxu0
      %v3304 = vadd.f32 0.0, %v3303
      %v3305 = vpop.f32.mrf.mxu0
      %3306 = vdwg.mxu0
      %v3307 = vadd.f32 %v3172, %v3277
      %v3308 = vadd.f32 %v3175, %v3280
      %v3309 = vadd.f32 %v3180, %v3285
      %v3310 = vadd.f32 %v3183, %v3288
      %v3311 = vadd.f32 %v3188, %v3293
      %v3312 = vadd.f32 %v3191, %v3296
      %v3313 = vadd.f32 %v3196, %v3301
      %v3314 = vadd.f32 %v3199, %v3304
      %v3315 = vmax.f32 %v3307, 0.0
      %v3316 = vmax.f32 %v3308, 0.0
      %v3317 = vmax.f32 %v3309, 0.0
      %v3318 = vmax.f32 %v3310, 0.0
      %v3319 = vmax.f32 %v3311, 0.0
      %v3320 = vmax.f32 %v3312, 0.0
      %v3321 = vmax.f32 %v3313, 0.0
      %v3322 = vmax.f32 %v3314, 0.0
      %v3323 = vadd.f32 %v3315, %v3316
      %v3324 = vadd.f32 %v3323, %v3317
      %v3325 = vadd.f32 %v3324, %v3318
      %v3326 = vadd.f32 %v3325, %v3319
      %v3327 = vadd.f32 %v3326, %v3320
      %v3328 = vadd.f32 %v3327, %v3321
      %v3329 = vadd.f32 %v3328, %v3322
      %v3330 = vrot.slane %v3329, 4
      %v3331 = vadd.f32 %v3329, %v3330
      %v3332 = vrot.slane %v3331, 2
      %v3333 = vadd.f32 %v3331, %v3332
      %v3334 = vrot.slane %v3333, 1
      %v3335 = vadd.f32 %v3333, %v3334
      %v3336 = vadd.f32 %v3021, %v3335
      %v3337 = vld [vmem:[%s2706 + $0x40] sm:$0xf]
      %v3338 = vld [vmem:[%s2706 + $0x44] sm:$0xf]
      %v3339 = vld [vmem:[%s2706 + $0x48] sm:$0xf]
      %v3340 = vld [vmem:[%s2706 + $0x4c] sm:$0xf]
      %v3341 = vld [vmem:[%s2706 + $0x50] sm:$0xf]
      %v3342 = vld [vmem:[%s2706 + $0x54] sm:$0xf]
      %v3343 = vld [vmem:[%s2706 + $0x58] sm:$0xf]
      %v3344 = vld [vmem:[%s2706 + $0x5c] sm:$0xf]
      %v3345 = vld [vmem:[%s2706 + $0x60] sm:$0xf]
      %v3346 = vld [vmem:[%s2706 + $0x64] sm:$0xf]
      %v3355 = vunpack.c.l.b16 %v3339
      %v3356 = vunpack.c.l.b16 %v3340
      %v3357 = vunpack.c.l.b16 %v3341
      %v3358 = vunpack.c.l.b16 %v3342
      %v3359 = vunpack.c.l.b16 %v3343
      %v3360 = vunpack.c.l.b16 %v3344
      %v3361 = vunpack.c.l.b16 %v3345
      %v3362 = vunpack.c.l.b16 %v3346
      %v3363 = vpack.c.b16 %v3356, %v3355
      %v3364 = vpack.c.b16 %v3358, %v3357
      %v3365 = vpack.c.b16 %v3360, %v3359
      %v3366 = vpack.c.b16 %v3362, %v3361
      %v3368 = vsel %vm188, %v3363, 0
      %v3371 = vsel %vm188, %v3364, 0
      %v3374 = vsel %vm188, %v3365, 0
      %v3377 = vsel %vm188, %v3366, 0
      %3379 = vmatprep.subr.bf16.mxu0 0
      %3380 = vmatpush1.bf16.msra.mxu0 0
      %3381 = vmatprep.subr.bf16.mxu0 0
      %3382 = vmatpush1.bf16.msra.mxu0 0
      %3383 = vmatprep.subr.bf16.mxu0 0
      %3384 = vmatpush1.bf16.msra.mxu0 0
      %3385 = vmatprep.subr.bf16.mxu0 0
      %3386 = vmatpush1.bf16.msra.mxu0 0
      %3387 = vmatprep.subr.bf16.mxu0 0
      %3388 = vmatpush1.bf16.msra.mxu0 0
      %3389 = vmatprep.subr.bf16.mxu0 0
      %3390 = vmatpush1.bf16.msra.mxu0 0
      %3391 = vmatprep.subr.bf16.mxu0 0
      %3392 = vmatpush1.bf16.msra.mxu0 0
      %3393 = vmatprep.subr.bf16.mxu0 0
      %3394 = vmatpush1.bf16.msra.mxu0 %v206
      %3395 = vmatprep.subr.bf16.mxu0 0
      %3396 = vmatpush2.bf16.msra.mxu0 0
      %3397 = vmatprep.subr.bf16.mxu0 0
      %3398 = vmatpush2.bf16.msra.mxu0 0
      %3399 = vmatprep.subr.bf16.mxu0 0
      %3400 = vmatpush2.bf16.msra.mxu0 0
      %3401 = vmatprep.subr.bf16.mxu0 0
      %3402 = vmatpush2.bf16.msra.mxu0 0
      %3403 = vmatprep.subr.bf16.mxu0 0
      %3404 = vmatpush2.bf16.msra.mxu0 0
      %3405 = vmatprep.subr.bf16.mxu0 0
      %3406 = vmatpush2.bf16.msra.mxu0 0
      %3407 = vmatprep.subr.bf16.mxu0 0
      %3408 = vmatpush2.bf16.msra.mxu0 0
      %3409 = vmatprep.subr.bf16.mxu0 0
      %3410 = vmatpush2.bf16.msra.mxu0 0
      %3411 = vmatprep.mubr.bf16.mxu0 0
      %3412 = vmatmul.mubr.bf16.gmra.mxu0 %v3368
      %v3413 = vpop.f32.mrf.mxu0
      %v3414 = vadd.f32 0.0, %v3413
      %v3415 = vpop.f32.mrf.mxu0
      %v3416 = vpop.f32.mrf.mxu0
      %v3417 = vadd.f32 0.0, %v3416
      %v3418 = vpop.f32.mrf.mxu0
      %3419 = vmatprep.mubr.bf16.mxu0 0
      %3420 = vmatmul.mubr.bf16.gmra.mxu0 %v3371
      %v3421 = vpop.f32.mrf.mxu0
      %v3422 = vadd.f32 0.0, %v3421
      %v3423 = vpop.f32.mrf.mxu0
      %v3424 = vpop.f32.mrf.mxu0
      %v3425 = vadd.f32 0.0, %v3424
      %v3426 = vpop.f32.mrf.mxu0
      %3427 = vmatprep.mubr.bf16.mxu0 0
      %3428 = vmatmul.mubr.bf16.gmra.mxu0 %v3374
      %v3429 = vpop.f32.mrf.mxu0
      %v3430 = vadd.f32 0.0, %v3429
      %v3431 = vpop.f32.mrf.mxu0
      %v3432 = vpop.f32.mrf.mxu0
      %v3433 = vadd.f32 0.0, %v3432
      %v3434 = vpop.f32.mrf.mxu0
      %3435 = vmatprep.mubr.bf16.mxu0 0
      %3436 = vmatmul.mubr.bf16.gmra.mxu0 %v3377
      %v3437 = vpop.f32.mrf.mxu0
      %v3438 = vadd.f32 0.0, %v3437
      %v3439 = vpop.f32.mrf.mxu0
      %v3440 = vpop.f32.mrf.mxu0
      %v3441 = vadd.f32 0.0, %v3440
      %v3442 = vpop.f32.mrf.mxu0
      %3443 = vdwg.mxu0
      %v3446 = vunpack.c.l.b16 %v3337
      %v3447 = vunpack.c.l.b16 %v3338
      %v3448 = vpack.c.b16 %v3447, %v3446
      %v3450 = vsel %vm188, %v3448, 0
      %3452 = vmatprep.subr.bf16.mxu0 0
      %3453 = vmatpush1.bf16.msra.mxu0 0
      %3454 = vmatprep.subr.bf16.mxu0 0
      %3455 = vmatpush1.bf16.msra.mxu0 0
      %3456 = vmatprep.subr.bf16.mxu0 0
      %3457 = vmatpush1.bf16.msra.mxu0 0
      %3458 = vmatprep.subr.bf16.mxu0 0
      %3459 = vmatpush1.bf16.msra.mxu0 0
      %3460 = vmatprep.subr.bf16.mxu0 0
      %3461 = vmatpush1.bf16.msra.mxu0 0
      %3462 = vmatprep.subr.bf16.mxu0 0
      %3463 = vmatpush1.bf16.msra.mxu0 0
      %3464 = vmatprep.subr.bf16.mxu0 0
      %3465 = vmatpush1.bf16.msra.mxu0 0
      %3466 = vmatprep.subr.bf16.mxu0 0
      %3467 = vmatpush1.bf16.msra.mxu0 %v287
      %3468 = vmatprep.subr.bf16.mxu0 0
      %3469 = vmatpush2.bf16.msra.mxu0 0
      %3470 = vmatprep.subr.bf16.mxu0 0
      %3471 = vmatpush2.bf16.msra.mxu0 0
      %3472 = vmatprep.subr.bf16.mxu0 0
      %3473 = vmatpush2.bf16.msra.mxu0 0
      %3474 = vmatprep.subr.bf16.mxu0 0
      %3475 = vmatpush2.bf16.msra.mxu0 0
      %3476 = vmatprep.subr.bf16.mxu0 0
      %3477 = vmatpush2.bf16.msra.mxu0 0
      %3478 = vmatprep.subr.bf16.mxu0 0
      %3479 = vmatpush2.bf16.msra.mxu0 0
      %3480 = vmatprep.subr.bf16.mxu0 0
      %3481 = vmatpush2.bf16.msra.mxu0 0
      %3482 = vmatprep.subr.bf16.mxu0 0
      %3483 = vmatpush2.bf16.msra.mxu0 0
      %3484 = vmatprep.mubr.bf16.mxu0 0
      %3485 = vmatmul.mubr.bf16.gmra.mxu0 %v3450
      %v3486 = vpop.f32.mrf.mxu0
      %v3487 = vadd.f32 %v3414, %v3486
      %v3488 = vpop.f32.mrf.mxu0
      %v3489 = vpop.f32.mrf.mxu0
      %v3490 = vadd.f32 %v3417, %v3489
      %v3491 = vpop.f32.mrf.mxu0
      %3492 = vmatprep.mubr.bf16.mxu0 0
      %3493 = vmatmul.mubr.bf16.gmra.mxu0 %v3368
      %v3494 = vpop.f32.mrf.mxu0
      %v3495 = vadd.f32 %v3422, %v3494
      %v3496 = vpop.f32.mrf.mxu0
      %v3497 = vpop.f32.mrf.mxu0
      %v3498 = vadd.f32 %v3425, %v3497
      %v3499 = vpop.f32.mrf.mxu0
      %3500 = vmatprep.mubr.bf16.mxu0 0
      %3501 = vmatmul.mubr.bf16.gmra.mxu0 %v3371
      %v3502 = vpop.f32.mrf.mxu0
      %v3503 = vadd.f32 %v3430, %v3502
      %v3504 = vpop.f32.mrf.mxu0
      %v3505 = vpop.f32.mrf.mxu0
      %v3506 = vadd.f32 %v3433, %v3505
      %v3507 = vpop.f32.mrf.mxu0
      %3508 = vmatprep.mubr.bf16.mxu0 0
      %3509 = vmatmul.mubr.bf16.gmra.mxu0 %v3374
      %v3510 = vpop.f32.mrf.mxu0
      %v3511 = vadd.f32 %v3438, %v3510
      %v3512 = vpop.f32.mrf.mxu0
      %v3513 = vpop.f32.mrf.mxu0
      %v3514 = vadd.f32 %v3441, %v3513
      %v3515 = vpop.f32.mrf.mxu0
      %3516 = vdwg.mxu0
      %v3517 = vld [vmem:[%s2706 + $0x50] sm:$0xf]
      %v3518 = vld [vmem:[%s2706 + $0x54] sm:$0xf]
      %v3519 = vld [vmem:[%s2706 + $0x58] sm:$0xf]
      %v3520 = vld [vmem:[%s2706 + $0x5c] sm:$0xf]
      %v3521 = vld [vmem:[%s2706 + $0x60] sm:$0xf]
      %v3522 = vld [vmem:[%s2706 + $0x64] sm:$0xf]
      %v3523 = vld [vmem:[%s2706 + $0x68] sm:$0xf]
      %v3524 = vld [vmem:[%s2706 + $0x6c] sm:$0xf]
      %v3533 = vunpack.c.l.b16 %v3517
      %v3534 = vunpack.c.l.b16 %v3518
      %v3535 = vunpack.c.l.b16 %v3519
      %v3536 = vunpack.c.l.b16 %v3520
      %v3537 = vunpack.c.l.b16 %v3521
      %v3538 = vunpack.c.l.b16 %v3522
      %v3539 = vunpack.c.l.b16 %v3523
      %v3540 = vunpack.c.l.b16 %v3524
      %v3541 = vpack.c.b16 %v3534, %v3533
      %v3542 = vpack.c.b16 %v3536, %v3535
      %v3543 = vpack.c.b16 %v3538, %v3537
      %v3544 = vpack.c.b16 %v3540, %v3539
      %v3546 = vsel %vm188, %v3541, 0
      %v3549 = vsel %vm188, %v3542, 0
      %v3552 = vsel %vm188, %v3543, 0
      %v3555 = vsel %vm188, %v3544, 0
      %3557 = vmatprep.subr.bf16.mxu0 0
      %3558 = vmatpush1.bf16.msra.mxu0 0
      %3559 = vmatprep.subr.bf16.mxu0 0
      %3560 = vmatpush1.bf16.msra.mxu0 0
      %3561 = vmatprep.subr.bf16.mxu0 0
      %3562 = vmatpush1.bf16.msra.mxu0 0
      %3563 = vmatprep.subr.bf16.mxu0 0
      %3564 = vmatpush1.bf16.msra.mxu0 0
      %3565 = vmatprep.subr.bf16.mxu0 0
      %3566 = vmatpush1.bf16.msra.mxu0 0
      %3567 = vmatprep.subr.bf16.mxu0 0
      %3568 = vmatpush1.bf16.msra.mxu0 0
      %3569 = vmatprep.subr.bf16.mxu0 0
      %3570 = vmatpush1.bf16.msra.mxu0 0
      %3571 = vmatprep.subr.bf16.mxu0 0
      %3572 = vmatpush1.bf16.msra.mxu0 %v403
      %3573 = vmatprep.subr.bf16.mxu0 0
      %3574 = vmatpush2.bf16.msra.mxu0 0
      %3575 = vmatprep.subr.bf16.mxu0 0
      %3576 = vmatpush2.bf16.msra.mxu0 0
      %3577 = vmatprep.subr.bf16.mxu0 0
      %3578 = vmatpush2.bf16.msra.mxu0 0
      %3579 = vmatprep.subr.bf16.mxu0 0
      %3580 = vmatpush2.bf16.msra.mxu0 0
      %3581 = vmatprep.subr.bf16.mxu0 0
      %3582 = vmatpush2.bf16.msra.mxu0 0
      %3583 = vmatprep.subr.bf16.mxu0 0
      %3584 = vmatpush2.bf16.msra.mxu0 0
      %3585 = vmatprep.subr.bf16.mxu0 0
      %3586 = vmatpush2.bf16.msra.mxu0 0
      %3587 = vmatprep.subr.bf16.mxu0 0
      %3588 = vmatpush2.bf16.msra.mxu0 0
      %3589 = vmatprep.mubr.bf16.mxu0 0
      %3590 = vmatmul.mubr.bf16.gmra.mxu0 %v3546
      %v3591 = vpop.f32.mrf.mxu0
      %v3592 = vadd.f32 0.0, %v3591
      %v3593 = vpop.f32.mrf.mxu0
      %v3594 = vpop.f32.mrf.mxu0
      %v3595 = vadd.f32 0.0, %v3594
      %v3596 = vpop.f32.mrf.mxu0
      %3597 = vmatprep.mubr.bf16.mxu0 0
      %3598 = vmatmul.mubr.bf16.gmra.mxu0 %v3549
      %v3599 = vpop.f32.mrf.mxu0
      %v3600 = vadd.f32 0.0, %v3599
      %v3601 = vpop.f32.mrf.mxu0
      %v3602 = vpop.f32.mrf.mxu0
      %v3603 = vadd.f32 0.0, %v3602
      %v3604 = vpop.f32.mrf.mxu0
      %3605 = vmatprep.mubr.bf16.mxu0 0
      %3606 = vmatmul.mubr.bf16.gmra.mxu0 %v3552
      %v3607 = vpop.f32.mrf.mxu0
      %v3608 = vadd.f32 0.0, %v3607
      %v3609 = vpop.f32.mrf.mxu0
      %v3610 = vpop.f32.mrf.mxu0
      %v3611 = vadd.f32 0.0, %v3610
      %v3612 = vpop.f32.mrf.mxu0
      %3613 = vmatprep.mubr.bf16.mxu0 0
      %3614 = vmatmul.mubr.bf16.gmra.mxu0 %v3555
      %v3615 = vpop.f32.mrf.mxu0
      %v3616 = vadd.f32 0.0, %v3615
      %v3617 = vpop.f32.mrf.mxu0
      %v3618 = vpop.f32.mrf.mxu0
      %v3619 = vadd.f32 0.0, %v3618
      %v3620 = vpop.f32.mrf.mxu0
      %3621 = vdwg.mxu0
      %v3622 = vadd.f32 %v3487, %v3592
      %v3623 = vadd.f32 %v3490, %v3595
      %v3624 = vadd.f32 %v3495, %v3600
      %v3625 = vadd.f32 %v3498, %v3603
      %v3626 = vadd.f32 %v3503, %v3608
      %v3627 = vadd.f32 %v3506, %v3611
      %v3628 = vadd.f32 %v3511, %v3616
      %v3629 = vadd.f32 %v3514, %v3619
      %v3630 = vmax.f32 %v3622, 0.0
      %v3631 = vmax.f32 %v3623, 0.0
      %v3632 = vmax.f32 %v3624, 0.0
      %v3633 = vmax.f32 %v3625, 0.0
      %v3634 = vmax.f32 %v3626, 0.0
      %v3635 = vmax.f32 %v3627, 0.0
      %v3636 = vmax.f32 %v3628, 0.0
      %v3637 = vmax.f32 %v3629, 0.0
      %v3638 = vadd.f32 %v3630, %v3631
      %v3639 = vadd.f32 %v3638, %v3632
      %v3640 = vadd.f32 %v3639, %v3633
      %v3641 = vadd.f32 %v3640, %v3634
      %v3642 = vadd.f32 %v3641, %v3635
      %v3643 = vadd.f32 %v3642, %v3636
      %v3644 = vadd.f32 %v3643, %v3637
      %v3645 = vrot.slane %v3644, 4
      %v3646 = vadd.f32 %v3644, %v3645
      %v3647 = vrot.slane %v3646, 2
      %v3648 = vadd.f32 %v3646, %v3647
      %v3649 = vrot.slane %v3648, 1
      %v3650 = vadd.f32 %v3648, %v3649
      %v3651 = vadd.f32 %v3336, %v3650
      %v3652 = vld [vmem:[%s2706 + $0x60] sm:$0xf]
      %v3653 = vld [vmem:[%s2706 + $0x64] sm:$0xf]
      %v3654 = vld [vmem:[%s2706 + $0x68] sm:$0xf]
      %v3655 = vld [vmem:[%s2706 + $0x6c] sm:$0xf]
      %v3656 = vld [vmem:[%s2706 + $0x70] sm:$0xf]
      %v3657 = vld [vmem:[%s2706 + $0x74] sm:$0xf]
      %v3658 = vld [vmem:[%s2706 + $0x78] sm:$0xf]
      %v3659 = vld [vmem:[%s2706 + $0x7c] sm:$0xf]
      %v3660 = vld [vmem:[%s2706 + $0x80] sm:$0xf]
      %v3661 = vld [vmem:[%s2706 + $0x84] sm:$0xf]
      %v3670 = vunpack.c.l.b16 %v3654
      %v3671 = vunpack.c.l.b16 %v3655
      %v3672 = vunpack.c.l.b16 %v3656
      %v3673 = vunpack.c.l.b16 %v3657
      %v3674 = vunpack.c.l.b16 %v3658
      %v3675 = vunpack.c.l.b16 %v3659
      %v3676 = vunpack.c.l.b16 %v3660
      %v3677 = vunpack.c.l.b16 %v3661
      %v3678 = vpack.c.b16 %v3671, %v3670
      %v3679 = vpack.c.b16 %v3673, %v3672
      %v3680 = vpack.c.b16 %v3675, %v3674
      %v3681 = vpack.c.b16 %v3677, %v3676
      %v3683 = vsel %vm188, %v3678, 0
      %v3686 = vsel %vm188, %v3679, 0
      %v3689 = vsel %vm188, %v3680, 0
      %v3692 = vsel %vm188, %v3681, 0
      %3694 = vmatprep.subr.bf16.mxu0 0
      %3695 = vmatpush1.bf16.msra.mxu0 0
      %3696 = vmatprep.subr.bf16.mxu0 0
      %3697 = vmatpush1.bf16.msra.mxu0 0
      %3698 = vmatprep.subr.bf16.mxu0 0
      %3699 = vmatpush1.bf16.msra.mxu0 0
      %3700 = vmatprep.subr.bf16.mxu0 0
      %3701 = vmatpush1.bf16.msra.mxu0 0
      %3702 = vmatprep.subr.bf16.mxu0 0
      %3703 = vmatpush1.bf16.msra.mxu0 0
      %3704 = vmatprep.subr.bf16.mxu0 0
      %3705 = vmatpush1.bf16.msra.mxu0 0
      %3706 = vmatprep.subr.bf16.mxu0 0
      %3707 = vmatpush1.bf16.msra.mxu0 0
      %3708 = vmatprep.subr.bf16.mxu0 0
      %3709 = vmatpush1.bf16.msra.mxu0 %v206
      %3710 = vmatprep.subr.bf16.mxu0 0
      %3711 = vmatpush2.bf16.msra.mxu0 0
      %3712 = vmatprep.subr.bf16.mxu0 0
      %3713 = vmatpush2.bf16.msra.mxu0 0
      %3714 = vmatprep.subr.bf16.mxu0 0
      %3715 = vmatpush2.bf16.msra.mxu0 0
      %3716 = vmatprep.subr.bf16.mxu0 0
      %3717 = vmatpush2.bf16.msra.mxu0 0
      %3718 = vmatprep.subr.bf16.mxu0 0
      %3719 = vmatpush2.bf16.msra.mxu0 0
      %3720 = vmatprep.subr.bf16.mxu0 0
      %3721 = vmatpush2.bf16.msra.mxu0 0
      %3722 = vmatprep.subr.bf16.mxu0 0
      %3723 = vmatpush2.bf16.msra.mxu0 0
      %3724 = vmatprep.subr.bf16.mxu0 0
      %3725 = vmatpush2.bf16.msra.mxu0 0
      %3726 = vmatprep.mubr.bf16.mxu0 0
      %3727 = vmatmul.mubr.bf16.gmra.mxu0 %v3683
      %v3728 = vpop.f32.mrf.mxu0
      %v3729 = vadd.f32 0.0, %v3728
      %v3730 = vpop.f32.mrf.mxu0
      %v3731 = vpop.f32.mrf.mxu0
      %v3732 = vadd.f32 0.0, %v3731
      %v3733 = vpop.f32.mrf.mxu0
      %3734 = vmatprep.mubr.bf16.mxu0 0
      %3735 = vmatmul.mubr.bf16.gmra.mxu0 %v3686
      %v3736 = vpop.f32.mrf.mxu0
      %v3737 = vadd.f32 0.0, %v3736
      %v3738 = vpop.f32.mrf.mxu0
      %v3739 = vpop.f32.mrf.mxu0
      %v3740 = vadd.f32 0.0, %v3739
      %v3741 = vpop.f32.mrf.mxu0
      %3742 = vmatprep.mubr.bf16.mxu0 0
      %3743 = vmatmul.mubr.bf16.gmra.mxu0 %v3689
      %v3744 = vpop.f32.mrf.mxu0
      %v3745 = vadd.f32 0.0, %v3744
      %v3746 = vpop.f32.mrf.mxu0
      %v3747 = vpop.f32.mrf.mxu0
      %v3748 = vadd.f32 0.0, %v3747
      %v3749 = vpop.f32.mrf.mxu0
      %3750 = vmatprep.mubr.bf16.mxu0 0
      %3751 = vmatmul.mubr.bf16.gmra.mxu0 %v3692
      %v3752 = vpop.f32.mrf.mxu0
      %v3753 = vadd.f32 0.0, %v3752
      %v3754 = vpop.f32.mrf.mxu0
      %v3755 = vpop.f32.mrf.mxu0
      %v3756 = vadd.f32 0.0, %v3755
      %v3757 = vpop.f32.mrf.mxu0
      %3758 = vdwg.mxu0
      %v3761 = vunpack.c.l.b16 %v3652
      %v3762 = vunpack.c.l.b16 %v3653
      %v3763 = vpack.c.b16 %v3762, %v3761
      %v3765 = vsel %vm188, %v3763, 0
      %3767 = vmatprep.subr.bf16.mxu0 0
      %3768 = vmatpush1.bf16.msra.mxu0 0
      %3769 = vmatprep.subr.bf16.mxu0 0
      %3770 = vmatpush1.bf16.msra.mxu0 0
      %3771 = vmatprep.subr.bf16.mxu0 0
      %3772 = vmatpush1.bf16.msra.mxu0 0
      %3773 = vmatprep.subr.bf16.mxu0 0
      %3774 = vmatpush1.bf16.msra.mxu0 0
      %3775 = vmatprep.subr.bf16.mxu0 0
      %3776 = vmatpush1.bf16.msra.mxu0 0
      %3777 = vmatprep.subr.bf16.mxu0 0
      %3778 = vmatpush1.bf16.msra.mxu0 0
      %3779 = vmatprep.subr.bf16.mxu0 0
      %3780 = vmatpush1.bf16.msra.mxu0 0
      %3781 = vmatprep.subr.bf16.mxu0 0
      %3782 = vmatpush1.bf16.msra.mxu0 %v287
      %3783 = vmatprep.subr.bf16.mxu0 0
      %3784 = vmatpush2.bf16.msra.mxu0 0
      %3785 = vmatprep.subr.bf16.mxu0 0
      %3786 = vmatpush2.bf16.msra.mxu0 0
      %3787 = vmatprep.subr.bf16.mxu0 0
      %3788 = vmatpush2.bf16.msra.mxu0 0
      %3789 = vmatprep.subr.bf16.mxu0 0
      %3790 = vmatpush2.bf16.msra.mxu0 0
      %3791 = vmatprep.subr.bf16.mxu0 0
      %3792 = vmatpush2.bf16.msra.mxu0 0
      %3793 = vmatprep.subr.bf16.mxu0 0
      %3794 = vmatpush2.bf16.msra.mxu0 0
      %3795 = vmatprep.subr.bf16.mxu0 0
      %3796 = vmatpush2.bf16.msra.mxu0 0
      %3797 = vmatprep.subr.bf16.mxu0 0
      %3798 = vmatpush2.bf16.msra.mxu0 0
      %3799 = vmatprep.mubr.bf16.mxu0 0
      %3800 = vmatmul.mubr.bf16.gmra.mxu0 %v3765
      %v3801 = vpop.f32.mrf.mxu0
      %v3802 = vadd.f32 %v3729, %v3801
      %v3803 = vpop.f32.mrf.mxu0
      %v3804 = vpop.f32.mrf.mxu0
      %v3805 = vadd.f32 %v3732, %v3804
      %v3806 = vpop.f32.mrf.mxu0
      %3807 = vmatprep.mubr.bf16.mxu0 0
      %3808 = vmatmul.mubr.bf16.gmra.mxu0 %v3683
      %v3809 = vpop.f32.mrf.mxu0
      %v3810 = vadd.f32 %v3737, %v3809
      %v3811 = vpop.f32.mrf.mxu0
      %v3812 = vpop.f32.mrf.mxu0
      %v3813 = vadd.f32 %v3740, %v3812
      %v3814 = vpop.f32.mrf.mxu0
      %3815 = vmatprep.mubr.bf16.mxu0 0
      %3816 = vmatmul.mubr.bf16.gmra.mxu0 %v3686
      %v3817 = vpop.f32.mrf.mxu0
      %v3818 = vadd.f32 %v3745, %v3817
      %v3819 = vpop.f32.mrf.mxu0
      %v3820 = vpop.f32.mrf.mxu0
      %v3821 = vadd.f32 %v3748, %v3820
      %v3822 = vpop.f32.mrf.mxu0
      %3823 = vmatprep.mubr.bf16.mxu0 0
      %3824 = vmatmul.mubr.bf16.gmra.mxu0 %v3689
      %v3825 = vpop.f32.mrf.mxu0
      %v3826 = vadd.f32 %v3753, %v3825
      %v3827 = vpop.f32.mrf.mxu0
      %v3828 = vpop.f32.mrf.mxu0
      %v3829 = vadd.f32 %v3756, %v3828
      %v3830 = vpop.f32.mrf.mxu0
      %3831 = vdwg.mxu0
      %v3832 = vld [vmem:[%s2706 + $0x70] sm:$0xf]
      %v3833 = vld [vmem:[%s2706 + $0x74] sm:$0xf]
      %v3834 = vld [vmem:[%s2706 + $0x78] sm:$0xf]
      %v3835 = vld [vmem:[%s2706 + $0x7c] sm:$0xf]
      %v3836 = vld [vmem:[%s2706 + $0x80] sm:$0xf]
      %v3837 = vld [vmem:[%s2706 + $0x84] sm:$0xf]
      %v3838 = vld [vmem:[%s2706 + $0x88] sm:$0xf]
      %v3839 = vld [vmem:[%s2706 + $0x8c] sm:$0xf]
      %v3848 = vunpack.c.l.b16 %v3832
      %v3849 = vunpack.c.l.b16 %v3833
      %v3850 = vunpack.c.l.b16 %v3834
      %v3851 = vunpack.c.l.b16 %v3835
      %v3852 = vunpack.c.l.b16 %v3836
      %v3853 = vunpack.c.l.b16 %v3837
      %v3854 = vunpack.c.l.b16 %v3838
      %v3855 = vunpack.c.l.b16 %v3839
      %v3856 = vpack.c.b16 %v3849, %v3848
      %v3857 = vpack.c.b16 %v3851, %v3850
      %v3858 = vpack.c.b16 %v3853, %v3852
      %v3859 = vpack.c.b16 %v3855, %v3854
      %v3861 = vsel %vm188, %v3856, 0
      %v3864 = vsel %vm188, %v3857, 0
      %v3867 = vsel %vm188, %v3858, 0
      %v3870 = vsel %vm188, %v3859, 0
      %3872 = vmatprep.subr.bf16.mxu0 0
      %3873 = vmatpush1.bf16.msra.mxu0 0
      %3874 = vmatprep.subr.bf16.mxu0 0
      %3875 = vmatpush1.bf16.msra.mxu0 0
      %3876 = vmatprep.subr.bf16.mxu0 0
      %3877 = vmatpush1.bf16.msra.mxu0 0
      %3878 = vmatprep.subr.bf16.mxu0 0
      %3879 = vmatpush1.bf16.msra.mxu0 0
      %3880 = vmatprep.subr.bf16.mxu0 0
      %3881 = vmatpush1.bf16.msra.mxu0 0
      %3882 = vmatprep.subr.bf16.mxu0 0
      %3883 = vmatpush1.bf16.msra.mxu0 0
      %3884 = vmatprep.subr.bf16.mxu0 0
      %3885 = vmatpush1.bf16.msra.mxu0 0
      %3886 = vmatprep.subr.bf16.mxu0 0
      %3887 = vmatpush1.bf16.msra.mxu0 %v403
      %3888 = vmatprep.subr.bf16.mxu0 0
      %3889 = vmatpush2.bf16.msra.mxu0 0
      %3890 = vmatprep.subr.bf16.mxu0 0
      %3891 = vmatpush2.bf16.msra.mxu0 0
      %3892 = vmatprep.subr.bf16.mxu0 0
      %3893 = vmatpush2.bf16.msra.mxu0 0
      %3894 = vmatprep.subr.bf16.mxu0 0
      %3895 = vmatpush2.bf16.msra.mxu0 0
      %3896 = vmatprep.subr.bf16.mxu0 0
      %3897 = vmatpush2.bf16.msra.mxu0 0
      %3898 = vmatprep.subr.bf16.mxu0 0
      %3899 = vmatpush2.bf16.msra.mxu0 0
      %3900 = vmatprep.subr.bf16.mxu0 0
      %3901 = vmatpush2.bf16.msra.mxu0 0
      %3902 = vmatprep.subr.bf16.mxu0 0
      %3903 = vmatpush2.bf16.msra.mxu0 0
      %3904 = vmatprep.mubr.bf16.mxu0 0
      %3905 = vmatmul.mubr.bf16.gmra.mxu0 %v3861
      %v3906 = vpop.f32.mrf.mxu0
      %v3907 = vadd.f32 0.0, %v3906
      %v3908 = vpop.f32.mrf.mxu0
      %v3909 = vpop.f32.mrf.mxu0
      %v3910 = vadd.f32 0.0, %v3909
      %v3911 = vpop.f32.mrf.mxu0
      %3912 = vmatprep.mubr.bf16.mxu0 0
      %3913 = vmatmul.mubr.bf16.gmra.mxu0 %v3864
      %v3914 = vpop.f32.mrf.mxu0
      %v3915 = vadd.f32 0.0, %v3914
      %v3916 = vpop.f32.mrf.mxu0
      %v3917 = vpop.f32.mrf.mxu0
      %v3918 = vadd.f32 0.0, %v3917
      %v3919 = vpop.f32.mrf.mxu0
      %3920 = vmatprep.mubr.bf16.mxu0 0
      %3921 = vmatmul.mubr.bf16.gmra.mxu0 %v3867
      %v3922 = vpop.f32.mrf.mxu0
      %v3923 = vadd.f32 0.0, %v3922
      %v3924 = vpop.f32.mrf.mxu0
      %v3925 = vpop.f32.mrf.mxu0
      %v3926 = vadd.f32 0.0, %v3925
      %v3927 = vpop.f32.mrf.mxu0
      %3928 = vmatprep.mubr.bf16.mxu0 0
      %3929 = vmatmul.mubr.bf16.gmra.mxu0 %v3870
      %v3930 = vpop.f32.mrf.mxu0
      %v3931 = vadd.f32 0.0, %v3930
      %v3932 = vpop.f32.mrf.mxu0
      %v3933 = vpop.f32.mrf.mxu0
      %v3934 = vadd.f32 0.0, %v3933
      %v3935 = vpop.f32.mrf.mxu0
      %3936 = vdwg.mxu0
      %v3937 = vadd.f32 %v3802, %v3907
      %v3938 = vadd.f32 %v3805, %v3910
      %v3939 = vadd.f32 %v3810, %v3915
      %v3940 = vadd.f32 %v3813, %v3918
      %v3941 = vadd.f32 %v3818, %v3923
      %v3942 = vadd.f32 %v3821, %v3926
      %v3943 = vadd.f32 %v3826, %v3931
      %v3944 = vadd.f32 %v3829, %v3934
      %v3945 = vmax.f32 %v3937, 0.0
      %v3946 = vmax.f32 %v3938, 0.0
      %v3947 = vmax.f32 %v3939, 0.0
      %v3948 = vmax.f32 %v3940, 0.0
      %v3949 = vmax.f32 %v3941, 0.0
      %v3950 = vmax.f32 %v3942, 0.0
      %v3951 = vmax.f32 %v3943, 0.0
      %v3952 = vmax.f32 %v3944, 0.0
      %v3953 = vadd.f32 %v3945, %v3946
      %v3954 = vadd.f32 %v3953, %v3947
      %v3955 = vadd.f32 %v3954, %v3948
      %v3956 = vadd.f32 %v3955, %v3949
      %v3957 = vadd.f32 %v3956, %v3950
      %v3958 = vadd.f32 %v3957, %v3951
      %v3959 = vadd.f32 %v3958, %v3952
      %v3960 = vrot.slane %v3959, 4
      %v3961 = vadd.f32 %v3959, %v3960
      %v3962 = vrot.slane %v3961, 2
      %v3963 = vadd.f32 %v3961, %v3962
      %v3964 = vrot.slane %v3963, 1
      %v3965 = vadd.f32 %v3963, %v3964
      %v3966 = vadd.f32 %v3651, %v3965
      %s3967 = scalar_lea.vmem %s141, 432
      %v3968 = vld [vmem:[%s3967] sm:$0xf]
      %v3969 = vld [vmem:[%s3967 + $0x4] sm:$0xf]
      %v3970 = vld [vmem:[%s3967 + $0x8] sm:$0xf]
      %v3971 = vld [vmem:[%s3967 + $0xc] sm:$0xf]
      %v3972 = vld [vmem:[%s3967 + $0x10] sm:$0xf]
      %v3973 = vld [vmem:[%s3967 + $0x14] sm:$0xf]
      %v3974 = vld [vmem:[%s3967 + $0x18] sm:$0xf]
      %v3975 = vld [vmem:[%s3967 + $0x1c] sm:$0xf]
      %v3976 = vld [vmem:[%s3967 + $0x20] sm:$0xf]
      %v3977 = vld [vmem:[%s3967 + $0x24] sm:$0xf]
      %v3986 = vunpack.c.l.b16 %v3970
      %v3987 = vunpack.c.l.b16 %v3971
      %v3988 = vunpack.c.l.b16 %v3972
      %v3989 = vunpack.c.l.b16 %v3973
      %v3990 = vunpack.c.l.b16 %v3974
      %v3991 = vunpack.c.l.b16 %v3975
      %v3992 = vunpack.c.l.b16 %v3976
      %v3993 = vunpack.c.l.b16 %v3977
      %v3994 = vpack.c.b16 %v3987, %v3986
      %v3995 = vpack.c.b16 %v3989, %v3988
      %v3996 = vpack.c.b16 %v3991, %v3990
      %v3997 = vpack.c.b16 %v3993, %v3992
      %v3999 = vsel %vm188, %v3994, 0
      %v4002 = vsel %vm188, %v3995, 0
      %v4005 = vsel %vm188, %v3996, 0
      %v4008 = vsel %vm188, %v3997, 0
      %4010 = vmatprep.subr.bf16.mxu0 0
      %4011 = vmatpush1.bf16.msra.mxu0 0
      %4012 = vmatprep.subr.bf16.mxu0 0
      %4013 = vmatpush1.bf16.msra.mxu0 0
      %4014 = vmatprep.subr.bf16.mxu0 0
      %4015 = vmatpush1.bf16.msra.mxu0 0
      %4016 = vmatprep.subr.bf16.mxu0 0
      %4017 = vmatpush1.bf16.msra.mxu0 0
      %4018 = vmatprep.subr.bf16.mxu0 0
      %4019 = vmatpush1.bf16.msra.mxu0 0
      %4020 = vmatprep.subr.bf16.mxu0 0
      %4021 = vmatpush1.bf16.msra.mxu0 0
      %4022 = vmatprep.subr.bf16.mxu0 0
      %4023 = vmatpush1.bf16.msra.mxu0 0
      %4024 = vmatprep.subr.bf16.mxu0 0
      %4025 = vmatpush1.bf16.msra.mxu0 %v206
      %4026 = vmatprep.subr.bf16.mxu0 0
      %4027 = vmatpush2.bf16.msra.mxu0 0
      %4028 = vmatprep.subr.bf16.mxu0 0
      %4029 = vmatpush2.bf16.msra.mxu0 0
      %4030 = vmatprep.subr.bf16.mxu0 0
      %4031 = vmatpush2.bf16.msra.mxu0 0
      %4032 = vmatprep.subr.bf16.mxu0 0
      %4033 = vmatpush2.bf16.msra.mxu0 0
      %4034 = vmatprep.subr.bf16.mxu0 0
      %4035 = vmatpush2.bf16.msra.mxu0 0
      %4036 = vmatprep.subr.bf16.mxu0 0
      %4037 = vmatpush2.bf16.msra.mxu0 0
      %4038 = vmatprep.subr.bf16.mxu0 0
      %4039 = vmatpush2.bf16.msra.mxu0 0
      %4040 = vmatprep.subr.bf16.mxu0 0
      %4041 = vmatpush2.bf16.msra.mxu0 0
      %4042 = vmatprep.mubr.bf16.mxu0 0
      %4043 = vmatmul.mubr.bf16.gmra.mxu0 %v3999
      %v4044 = vpop.f32.mrf.mxu0
      %v4045 = vadd.f32 0.0, %v4044
      %v4046 = vpop.f32.mrf.mxu0
      %v4047 = vpop.f32.mrf.mxu0
      %v4048 = vadd.f32 0.0, %v4047
      %v4049 = vpop.f32.mrf.mxu0
      %4050 = vmatprep.mubr.bf16.mxu0 0
      %4051 = vmatmul.mubr.bf16.gmra.mxu0 %v4002
      %v4052 = vpop.f32.mrf.mxu0
      %v4053 = vadd.f32 0.0, %v4052
      %v4054 = vpop.f32.mrf.mxu0
      %v4055 = vpop.f32.mrf.mxu0
      %v4056 = vadd.f32 0.0, %v4055
      %v4057 = vpop.f32.mrf.mxu0
      %4058 = vmatprep.mubr.bf16.mxu0 0
      %4059 = vmatmul.mubr.bf16.gmra.mxu0 %v4005
      %v4060 = vpop.f32.mrf.mxu0
      %v4061 = vadd.f32 0.0, %v4060
      %v4062 = vpop.f32.mrf.mxu0
      %v4063 = vpop.f32.mrf.mxu0
      %v4064 = vadd.f32 0.0, %v4063
      %v4065 = vpop.f32.mrf.mxu0
      %4066 = vmatprep.mubr.bf16.mxu0 0
      %4067 = vmatmul.mubr.bf16.gmra.mxu0 %v4008
      %v4068 = vpop.f32.mrf.mxu0
      %v4069 = vadd.f32 0.0, %v4068
      %v4070 = vpop.f32.mrf.mxu0
      %v4071 = vpop.f32.mrf.mxu0
      %v4072 = vadd.f32 0.0, %v4071
      %v4073 = vpop.f32.mrf.mxu0
      %4074 = vdwg.mxu0
      %v4077 = vunpack.c.l.b16 %v3968
      %v4078 = vunpack.c.l.b16 %v3969
      %v4079 = vpack.c.b16 %v4078, %v4077
      %v4081 = vsel %vm188, %v4079, 0
      %4083 = vmatprep.subr.bf16.mxu0 0
      %4084 = vmatpush1.bf16.msra.mxu0 0
      %4085 = vmatprep.subr.bf16.mxu0 0
      %4086 = vmatpush1.bf16.msra.mxu0 0
      %4087 = vmatprep.subr.bf16.mxu0 0
      %4088 = vmatpush1.bf16.msra.mxu0 0
      %4089 = vmatprep.subr.bf16.mxu0 0
      %4090 = vmatpush1.bf16.msra.mxu0 0
      %4091 = vmatprep.subr.bf16.mxu0 0
      %4092 = vmatpush1.bf16.msra.mxu0 0
      %4093 = vmatprep.subr.bf16.mxu0 0
      %4094 = vmatpush1.bf16.msra.mxu0 0
      %4095 = vmatprep.subr.bf16.mxu0 0
      %4096 = vmatpush1.bf16.msra.mxu0 0
      %4097 = vmatprep.subr.bf16.mxu0 0
      %4098 = vmatpush1.bf16.msra.mxu0 %v287
      %4099 = vmatprep.subr.bf16.mxu0 0
      %4100 = vmatpush2.bf16.msra.mxu0 0
      %4101 = vmatprep.subr.bf16.mxu0 0
      %4102 = vmatpush2.bf16.msra.mxu0 0
      %4103 = vmatprep.subr.bf16.mxu0 0
      %4104 = vmatpush2.bf16.msra.mxu0 0
      %4105 = vmatprep.subr.bf16.mxu0 0
      %4106 = vmatpush2.bf16.msra.mxu0 0
      %4107 = vmatprep.subr.bf16.mxu0 0
      %4108 = vmatpush2.bf16.msra.mxu0 0
      %4109 = vmatprep.subr.bf16.mxu0 0
      %4110 = vmatpush2.bf16.msra.mxu0 0
      %4111 = vmatprep.subr.bf16.mxu0 0
      %4112 = vmatpush2.bf16.msra.mxu0 0
      %4113 = vmatprep.subr.bf16.mxu0 0
      %4114 = vmatpush2.bf16.msra.mxu0 0
      %4115 = vmatprep.mubr.bf16.mxu0 0
      %4116 = vmatmul.mubr.bf16.gmra.mxu0 %v4081
      %v4117 = vpop.f32.mrf.mxu0
      %v4118 = vadd.f32 %v4045, %v4117
      %v4119 = vpop.f32.mrf.mxu0
      %v4120 = vpop.f32.mrf.mxu0
      %v4121 = vadd.f32 %v4048, %v4120
      %v4122 = vpop.f32.mrf.mxu0
      %4123 = vmatprep.mubr.bf16.mxu0 0
      %4124 = vmatmul.mubr.bf16.gmra.mxu0 %v3999
      %v4125 = vpop.f32.mrf.mxu0
      %v4126 = vadd.f32 %v4053, %v4125
      %v4127 = vpop.f32.mrf.mxu0
      %v4128 = vpop.f32.mrf.mxu0
      %v4129 = vadd.f32 %v4056, %v4128
      %v4130 = vpop.f32.mrf.mxu0
      %4131 = vmatprep.mubr.bf16.mxu0 0
      %4132 = vmatmul.mubr.bf16.gmra.mxu0 %v4002
      %v4133 = vpop.f32.mrf.mxu0
      %v4134 = vadd.f32 %v4061, %v4133
      %v4135 = vpop.f32.mrf.mxu0
      %v4136 = vpop.f32.mrf.mxu0
      %v4137 = vadd.f32 %v4064, %v4136
      %v4138 = vpop.f32.mrf.mxu0
      %4139 = vmatprep.mubr.bf16.mxu0 0
      %4140 = vmatmul.mubr.bf16.gmra.mxu0 %v4005
      %v4141 = vpop.f32.mrf.mxu0
      %v4142 = vadd.f32 %v4069, %v4141
      %v4143 = vpop.f32.mrf.mxu0
      %v4144 = vpop.f32.mrf.mxu0
      %v4145 = vadd.f32 %v4072, %v4144
      %v4146 = vpop.f32.mrf.mxu0
      %4147 = vdwg.mxu0
      %v4148 = vld [vmem:[%s3967 + $0x10] sm:$0xf]
      %v4149 = vld [vmem:[%s3967 + $0x14] sm:$0xf]
      %v4150 = vld [vmem:[%s3967 + $0x18] sm:$0xf]
      %v4151 = vld [vmem:[%s3967 + $0x1c] sm:$0xf]
      %v4152 = vld [vmem:[%s3967 + $0x20] sm:$0xf]
      %v4153 = vld [vmem:[%s3967 + $0x24] sm:$0xf]
      %v4154 = vld [vmem:[%s3967 + $0x28] sm:$0xf]
      %v4155 = vld [vmem:[%s3967 + $0x2c] sm:$0xf]
      %v4164 = vunpack.c.l.b16 %v4148
      %v4165 = vunpack.c.l.b16 %v4149
      %v4166 = vunpack.c.l.b16 %v4150
      %v4167 = vunpack.c.l.b16 %v4151
      %v4168 = vunpack.c.l.b16 %v4152
      %v4169 = vunpack.c.l.b16 %v4153
      %v4170 = vunpack.c.l.b16 %v4154
      %v4171 = vunpack.c.l.b16 %v4155
      %v4172 = vpack.c.b16 %v4165, %v4164
      %v4173 = vpack.c.b16 %v4167, %v4166
      %v4174 = vpack.c.b16 %v4169, %v4168
      %v4175 = vpack.c.b16 %v4171, %v4170
      %v4177 = vsel %vm188, %v4172, 0
      %v4180 = vsel %vm188, %v4173, 0
      %v4183 = vsel %vm188, %v4174, 0
      %v4186 = vsel %vm188, %v4175, 0
      %4188 = vmatprep.subr.bf16.mxu0 0
      %4189 = vmatpush1.bf16.msra.mxu0 0
      %4190 = vmatprep.subr.bf16.mxu0 0
      %4191 = vmatpush1.bf16.msra.mxu0 0
      %4192 = vmatprep.subr.bf16.mxu0 0
      %4193 = vmatpush1.bf16.msra.mxu0 0
      %4194 = vmatprep.subr.bf16.mxu0 0
      %4195 = vmatpush1.bf16.msra.mxu0 0
      %4196 = vmatprep.subr.bf16.mxu0 0
      %4197 = vmatpush1.bf16.msra.mxu0 0
      %4198 = vmatprep.subr.bf16.mxu0 0
      %4199 = vmatpush1.bf16.msra.mxu0 0
      %4200 = vmatprep.subr.bf16.mxu0 0
      %4201 = vmatpush1.bf16.msra.mxu0 0
      %4202 = vmatprep.subr.bf16.mxu0 0
      %4203 = vmatpush1.bf16.msra.mxu0 %v403
      %4204 = vmatprep.subr.bf16.mxu0 0
      %4205 = vmatpush2.bf16.msra.mxu0 0
      %4206 = vmatprep.subr.bf16.mxu0 0
      %4207 = vmatpush2.bf16.msra.mxu0 0
      %4208 = vmatprep.subr.bf16.mxu0 0
      %4209 = vmatpush2.bf16.msra.mxu0 0
      %4210 = vmatprep.subr.bf16.mxu0 0
      %4211 = vmatpush2.bf16.msra.mxu0 0
      %4212 = vmatprep.subr.bf16.mxu0 0
      %4213 = vmatpush2.bf16.msra.mxu0 0
      %4214 = vmatprep.subr.bf16.mxu0 0
      %4215 = vmatpush2.bf16.msra.mxu0 0
      %4216 = vmatprep.subr.bf16.mxu0 0
      %4217 = vmatpush2.bf16.msra.mxu0 0
      %4218 = vmatprep.subr.bf16.mxu0 0
      %4219 = vmatpush2.bf16.msra.mxu0 0
      %4220 = vmatprep.mubr.bf16.mxu0 0
      %4221 = vmatmul.mubr.bf16.gmra.mxu0 %v4177
      %v4222 = vpop.f32.mrf.mxu0
      %v4223 = vadd.f32 0.0, %v4222
      %v4224 = vpop.f32.mrf.mxu0
      %v4225 = vpop.f32.mrf.mxu0
      %v4226 = vadd.f32 0.0, %v4225
      %v4227 = vpop.f32.mrf.mxu0
      %4228 = vmatprep.mubr.bf16.mxu0 0
      %4229 = vmatmul.mubr.bf16.gmra.mxu0 %v4180
      %v4230 = vpop.f32.mrf.mxu0
      %v4231 = vadd.f32 0.0, %v4230
      %v4232 = vpop.f32.mrf.mxu0
      %v4233 = vpop.f32.mrf.mxu0
      %v4234 = vadd.f32 0.0, %v4233
      %v4235 = vpop.f32.mrf.mxu0
      %4236 = vmatprep.mubr.bf16.mxu0 0
      %4237 = vmatmul.mubr.bf16.gmra.mxu0 %v4183
      %v4238 = vpop.f32.mrf.mxu0
      %v4239 = vadd.f32 0.0, %v4238
      %v4240 = vpop.f32.mrf.mxu0
      %v4241 = vpop.f32.mrf.mxu0
      %v4242 = vadd.f32 0.0, %v4241
      %v4243 = vpop.f32.mrf.mxu0
      %4244 = vmatprep.mubr.bf16.mxu0 0
      %4245 = vmatmul.mubr.bf16.gmra.mxu0 %v4186
      %v4246 = vpop.f32.mrf.mxu0
      %v4247 = vadd.f32 0.0, %v4246
      %v4248 = vpop.f32.mrf.mxu0
      %v4249 = vpop.f32.mrf.mxu0
      %v4250 = vadd.f32 0.0, %v4249
      %v4251 = vpop.f32.mrf.mxu0
      %4252 = vdwg.mxu0
      %v4253 = vadd.f32 %v4118, %v4223
      %v4254 = vadd.f32 %v4121, %v4226
      %v4255 = vadd.f32 %v4126, %v4231
      %v4256 = vadd.f32 %v4129, %v4234
      %v4257 = vadd.f32 %v4134, %v4239
      %v4258 = vadd.f32 %v4137, %v4242
      %v4259 = vadd.f32 %v4142, %v4247
      %v4260 = vadd.f32 %v4145, %v4250
      %v4261 = vmax.f32 %v4253, 0.0
      %v4262 = vmax.f32 %v4254, 0.0
      %v4263 = vmax.f32 %v4255, 0.0
      %v4264 = vmax.f32 %v4256, 0.0
      %v4265 = vmax.f32 %v4257, 0.0
      %v4266 = vmax.f32 %v4258, 0.0
      %v4267 = vmax.f32 %v4259, 0.0
      %v4268 = vmax.f32 %v4260, 0.0
      %v4269 = vadd.f32 %v4261, %v4262
      %v4270 = vadd.f32 %v4269, %v4263
      %v4271 = vadd.f32 %v4270, %v4264
      %v4272 = vadd.f32 %v4271, %v4265
      %v4273 = vadd.f32 %v4272, %v4266
      %v4274 = vadd.f32 %v4273, %v4267
      %v4275 = vadd.f32 %v4274, %v4268
      %v4276 = vrot.slane %v4275, 4
      %v4277 = vadd.f32 %v4275, %v4276
      %v4278 = vrot.slane %v4277, 2
      %v4279 = vadd.f32 %v4277, %v4278
      %v4280 = vrot.slane %v4279, 1
      %v4281 = vadd.f32 %v4279, %v4280
      %v4282 = vadd.f32 %v4281, 0.0
      %v4283 = vld [vmem:[%s3967 + $0x20] sm:$0xf]
      %v4284 = vld [vmem:[%s3967 + $0x24] sm:$0xf]
      %v4285 = vld [vmem:[%s3967 + $0x28] sm:$0xf]
      %v4286 = vld [vmem:[%s3967 + $0x2c] sm:$0xf]
      %v4287 = vld [vmem:[%s3967 + $0x30] sm:$0xf]
      %v4288 = vld [vmem:[%s3967 + $0x34] sm:$0xf]
      %v4289 = vld [vmem:[%s3967 + $0x38] sm:$0xf]
      %v4290 = vld [vmem:[%s3967 + $0x3c] sm:$0xf]
      %v4291 = vld [vmem:[%s3967 + $0x40] sm:$0xf]
      %v4292 = vld [vmem:[%s3967 + $0x44] sm:$0xf]
      %v4301 = vunpack.c.l.b16 %v4285
      %v4302 = vunpack.c.l.b16 %v4286
      %v4303 = vunpack.c.l.b16 %v4287
      %v4304 = vunpack.c.l.b16 %v4288
      %v4305 = vunpack.c.l.b16 %v4289
      %v4306 = vunpack.c.l.b16 %v4290
      %v4307 = vunpack.c.l.b16 %v4291
      %v4308 = vunpack.c.l.b16 %v4292
      %v4309 = vpack.c.b16 %v4302, %v4301
      %v4310 = vpack.c.b16 %v4304, %v4303
      %v4311 = vpack.c.b16 %v4306, %v4305
      %v4312 = vpack.c.b16 %v4308, %v4307
      %v4314 = vsel %vm188, %v4309, 0
      %v4317 = vsel %vm188, %v4310, 0
      %v4320 = vsel %vm188, %v4311, 0
      %v4323 = vsel %vm188, %v4312, 0
      %4325 = vmatprep.subr.bf16.mxu0 0
      %4326 = vmatpush1.bf16.msra.mxu0 0
      %4327 = vmatprep.subr.bf16.mxu0 0
      %4328 = vmatpush1.bf16.msra.mxu0 0
      %4329 = vmatprep.subr.bf16.mxu0 0
      %4330 = vmatpush1.bf16.msra.mxu0 0
      %4331 = vmatprep.subr.bf16.mxu0 0
      %4332 = vmatpush1.bf16.msra.mxu0 0
      %4333 = vmatprep.subr.bf16.mxu0 0
      %4334 = vmatpush1.bf16.msra.mxu0 0
      %4335 = vmatprep.subr.bf16.mxu0 0
      %4336 = vmatpush1.bf16.msra.mxu0 0
      %4337 = vmatprep.subr.bf16.mxu0 0
      %4338 = vmatpush1.bf16.msra.mxu0 0
      %4339 = vmatprep.subr.bf16.mxu0 0
      %4340 = vmatpush1.bf16.msra.mxu0 %v206
      %4341 = vmatprep.subr.bf16.mxu0 0
      %4342 = vmatpush2.bf16.msra.mxu0 0
      %4343 = vmatprep.subr.bf16.mxu0 0
      %4344 = vmatpush2.bf16.msra.mxu0 0
      %4345 = vmatprep.subr.bf16.mxu0 0
      %4346 = vmatpush2.bf16.msra.mxu0 0
      %4347 = vmatprep.subr.bf16.mxu0 0
      %4348 = vmatpush2.bf16.msra.mxu0 0
      %4349 = vmatprep.subr.bf16.mxu0 0
      %4350 = vmatpush2.bf16.msra.mxu0 0
      %4351 = vmatprep.subr.bf16.mxu0 0
      %4352 = vmatpush2.bf16.msra.mxu0 0
      %4353 = vmatprep.subr.bf16.mxu0 0
      %4354 = vmatpush2.bf16.msra.mxu0 0
      %4355 = vmatprep.subr.bf16.mxu0 0
      %4356 = vmatpush2.bf16.msra.mxu0 0
      %4357 = vmatprep.mubr.bf16.mxu0 0
      %4358 = vmatmul.mubr.bf16.gmra.mxu0 %v4314
      %v4359 = vpop.f32.mrf.mxu0
      %v4360 = vadd.f32 0.0, %v4359
      %v4361 = vpop.f32.mrf.mxu0
      %v4362 = vpop.f32.mrf.mxu0
      %v4363 = vadd.f32 0.0, %v4362
      %v4364 = vpop.f32.mrf.mxu0
      %4365 = vmatprep.mubr.bf16.mxu0 0
      %4366 = vmatmul.mubr.bf16.gmra.mxu0 %v4317
      %v4367 = vpop.f32.mrf.mxu0
      %v4368 = vadd.f32 0.0, %v4367
      %v4369 = vpop.f32.mrf.mxu0
      %v4370 = vpop.f32.mrf.mxu0
      %v4371 = vadd.f32 0.0, %v4370
      %v4372 = vpop.f32.mrf.mxu0
      %4373 = vmatprep.mubr.bf16.mxu0 0
      %4374 = vmatmul.mubr.bf16.gmra.mxu0 %v4320
      %v4375 = vpop.f32.mrf.mxu0
      %v4376 = vadd.f32 0.0, %v4375
      %v4377 = vpop.f32.mrf.mxu0
      %v4378 = vpop.f32.mrf.mxu0
      %v4379 = vadd.f32 0.0, %v4378
      %v4380 = vpop.f32.mrf.mxu0
      %4381 = vmatprep.mubr.bf16.mxu0 0
      %4382 = vmatmul.mubr.bf16.gmra.mxu0 %v4323
      %v4383 = vpop.f32.mrf.mxu0
      %v4384 = vadd.f32 0.0, %v4383
      %v4385 = vpop.f32.mrf.mxu0
      %v4386 = vpop.f32.mrf.mxu0
      %v4387 = vadd.f32 0.0, %v4386
      %v4388 = vpop.f32.mrf.mxu0
      %4389 = vdwg.mxu0
      %v4392 = vunpack.c.l.b16 %v4283
      %v4393 = vunpack.c.l.b16 %v4284
      %v4394 = vpack.c.b16 %v4393, %v4392
      %v4396 = vsel %vm188, %v4394, 0
      %4398 = vmatprep.subr.bf16.mxu0 0
      %4399 = vmatpush1.bf16.msra.mxu0 0
      %4400 = vmatprep.subr.bf16.mxu0 0
      %4401 = vmatpush1.bf16.msra.mxu0 0
      %4402 = vmatprep.subr.bf16.mxu0 0
      %4403 = vmatpush1.bf16.msra.mxu0 0
      %4404 = vmatprep.subr.bf16.mxu0 0
      %4405 = vmatpush1.bf16.msra.mxu0 0
      %4406 = vmatprep.subr.bf16.mxu0 0
      %4407 = vmatpush1.bf16.msra.mxu0 0
      %4408 = vmatprep.subr.bf16.mxu0 0
      %4409 = vmatpush1.bf16.msra.mxu0 0
      %4410 = vmatprep.subr.bf16.mxu0 0
      %4411 = vmatpush1.bf16.msra.mxu0 0
      %4412 = vmatprep.subr.bf16.mxu0 0
      %4413 = vmatpush1.bf16.msra.mxu0 %v287
      %4414 = vmatprep.subr.bf16.mxu0 0
      %4415 = vmatpush2.bf16.msra.mxu0 0
      %4416 = vmatprep.subr.bf16.mxu0 0
      %4417 = vmatpush2.bf16.msra.mxu0 0
      %4418 = vmatprep.subr.bf16.mxu0 0
      %4419 = vmatpush2.bf16.msra.mxu0 0
      %4420 = vmatprep.subr.bf16.mxu0 0
      %4421 = vmatpush2.bf16.msra.mxu0 0
      %4422 = vmatprep.subr.bf16.mxu0 0
      %4423 = vmatpush2.bf16.msra.mxu0 0
      %4424 = vmatprep.subr.bf16.mxu0 0
      %4425 = vmatpush2.bf16.msra.mxu0 0
      %4426 = vmatprep.subr.bf16.mxu0 0
      %4427 = vmatpush2.bf16.msra.mxu0 0
      %4428 = vmatprep.subr.bf16.mxu0 0
      %4429 = vmatpush2.bf16.msra.mxu0 0
      %4430 = vmatprep.mubr.bf16.mxu0 0
      %4431 = vmatmul.mubr.bf16.gmra.mxu0 %v4396
      %v4432 = vpop.f32.mrf.mxu0
      %v4433 = vadd.f32 %v4360, %v4432
      %v4434 = vpop.f32.mrf.mxu0
      %v4435 = vpop.f32.mrf.mxu0
      %v4436 = vadd.f32 %v4363, %v4435
      %v4437 = vpop.f32.mrf.mxu0
      %4438 = vmatprep.mubr.bf16.mxu0 0
      %4439 = vmatmul.mubr.bf16.gmra.mxu0 %v4314
      %v4440 = vpop.f32.mrf.mxu0
      %v4441 = vadd.f32 %v4368, %v4440
      %v4442 = vpop.f32.mrf.mxu0
      %v4443 = vpop.f32.mrf.mxu0
      %v4444 = vadd.f32 %v4371, %v4443
      %v4445 = vpop.f32.mrf.mxu0
      %4446 = vmatprep.mubr.bf16.mxu0 0
      %4447 = vmatmul.mubr.bf16.gmra.mxu0 %v4317
      %v4448 = vpop.f32.mrf.mxu0
      %v4449 = vadd.f32 %v4376, %v4448
      %v4450 = vpop.f32.mrf.mxu0
      %v4451 = vpop.f32.mrf.mxu0
      %v4452 = vadd.f32 %v4379, %v4451
      %v4453 = vpop.f32.mrf.mxu0
      %4454 = vmatprep.mubr.bf16.mxu0 0
      %4455 = vmatmul.mubr.bf16.gmra.mxu0 %v4320
      %v4456 = vpop.f32.mrf.mxu0
      %v4457 = vadd.f32 %v4384, %v4456
      %v4458 = vpop.f32.mrf.mxu0
      %v4459 = vpop.f32.mrf.mxu0
      %v4460 = vadd.f32 %v4387, %v4459
      %v4461 = vpop.f32.mrf.mxu0
      %4462 = vdwg.mxu0
      %v4463 = vld [vmem:[%s3967 + $0x30] sm:$0xf]
      %v4464 = vld [vmem:[%s3967 + $0x34] sm:$0xf]
      %v4465 = vld [vmem:[%s3967 + $0x38] sm:$0xf]
      %v4466 = vld [vmem:[%s3967 + $0x3c] sm:$0xf]
      %v4467 = vld [vmem:[%s3967 + $0x40] sm:$0xf]
      %v4468 = vld [vmem:[%s3967 + $0x44] sm:$0xf]
      %v4469 = vld [vmem:[%s3967 + $0x48] sm:$0xf]
      %v4470 = vld [vmem:[%s3967 + $0x4c] sm:$0xf]
      %v4479 = vunpack.c.l.b16 %v4463
      %v4480 = vunpack.c.l.b16 %v4464
      %v4481 = vunpack.c.l.b16 %v4465
      %v4482 = vunpack.c.l.b16 %v4466
      %v4483 = vunpack.c.l.b16 %v4467
      %v4484 = vunpack.c.l.b16 %v4468
      %v4485 = vunpack.c.l.b16 %v4469
      %v4486 = vunpack.c.l.b16 %v4470
      %v4487 = vpack.c.b16 %v4480, %v4479
      %v4488 = vpack.c.b16 %v4482, %v4481
      %v4489 = vpack.c.b16 %v4484, %v4483
      %v4490 = vpack.c.b16 %v4486, %v4485
      %v4492 = vsel %vm188, %v4487, 0
      %v4495 = vsel %vm188, %v4488, 0
      %v4498 = vsel %vm188, %v4489, 0
      %v4501 = vsel %vm188, %v4490, 0
      %4503 = vmatprep.subr.bf16.mxu0 0
      %4504 = vmatpush1.bf16.msra.mxu0 0
      %4505 = vmatprep.subr.bf16.mxu0 0
      %4506 = vmatpush1.bf16.msra.mxu0 0
      %4507 = vmatprep.subr.bf16.mxu0 0
      %4508 = vmatpush1.bf16.msra.mxu0 0
      %4509 = vmatprep.subr.bf16.mxu0 0
      %4510 = vmatpush1.bf16.msra.mxu0 0
      %4511 = vmatprep.subr.bf16.mxu0 0
      %4512 = vmatpush1.bf16.msra.mxu0 0
      %4513 = vmatprep.subr.bf16.mxu0 0
      %4514 = vmatpush1.bf16.msra.mxu0 0
      %4515 = vmatprep.subr.bf16.mxu0 0
      %4516 = vmatpush1.bf16.msra.mxu0 0
      %4517 = vmatprep.subr.bf16.mxu0 0
      %4518 = vmatpush1.bf16.msra.mxu0 %v403
      %4519 = vmatprep.subr.bf16.mxu0 0
      %4520 = vmatpush2.bf16.msra.mxu0 0
      %4521 = vmatprep.subr.bf16.mxu0 0
      %4522 = vmatpush2.bf16.msra.mxu0 0
      %4523 = vmatprep.subr.bf16.mxu0 0
      %4524 = vmatpush2.bf16.msra.mxu0 0
      %4525 = vmatprep.subr.bf16.mxu0 0
      %4526 = vmatpush2.bf16.msra.mxu0 0
      %4527 = vmatprep.subr.bf16.mxu0 0
      %4528 = vmatpush2.bf16.msra.mxu0 0
      %4529 = vmatprep.subr.bf16.mxu0 0
      %4530 = vmatpush2.bf16.msra.mxu0 0
      %4531 = vmatprep.subr.bf16.mxu0 0
      %4532 = vmatpush2.bf16.msra.mxu0 0
      %4533 = vmatprep.subr.bf16.mxu0 0
      %4534 = vmatpush2.bf16.msra.mxu0 0
      %4535 = vmatprep.mubr.bf16.mxu0 0
      %4536 = vmatmul.mubr.bf16.gmra.mxu0 %v4492
      %v4537 = vpop.f32.mrf.mxu0
      %v4538 = vadd.f32 0.0, %v4537
      %v4539 = vpop.f32.mrf.mxu0
      %v4540 = vpop.f32.mrf.mxu0
      %v4541 = vadd.f32 0.0, %v4540
      %v4542 = vpop.f32.mrf.mxu0
      %4543 = vmatprep.mubr.bf16.mxu0 0
      %4544 = vmatmul.mubr.bf16.gmra.mxu0 %v4495
      %v4545 = vpop.f32.mrf.mxu0
      %v4546 = vadd.f32 0.0, %v4545
      %v4547 = vpop.f32.mrf.mxu0
      %v4548 = vpop.f32.mrf.mxu0
      %v4549 = vadd.f32 0.0, %v4548
      %v4550 = vpop.f32.mrf.mxu0
      %4551 = vmatprep.mubr.bf16.mxu0 0
      %4552 = vmatmul.mubr.bf16.gmra.mxu0 %v4498
      %v4553 = vpop.f32.mrf.mxu0
      %v4554 = vadd.f32 0.0, %v4553
      %v4555 = vpop.f32.mrf.mxu0
      %v4556 = vpop.f32.mrf.mxu0
      %v4557 = vadd.f32 0.0, %v4556
      %v4558 = vpop.f32.mrf.mxu0
      %4559 = vmatprep.mubr.bf16.mxu0 0
      %4560 = vmatmul.mubr.bf16.gmra.mxu0 %v4501
      %v4561 = vpop.f32.mrf.mxu0
      %v4562 = vadd.f32 0.0, %v4561
      %v4563 = vpop.f32.mrf.mxu0
      %v4564 = vpop.f32.mrf.mxu0
      %v4565 = vadd.f32 0.0, %v4564
      %v4566 = vpop.f32.mrf.mxu0
      %4567 = vdwg.mxu0
      %v4568 = vadd.f32 %v4433, %v4538
      %v4569 = vadd.f32 %v4436, %v4541
      %v4570 = vadd.f32 %v4441, %v4546
      %v4571 = vadd.f32 %v4444, %v4549
      %v4572 = vadd.f32 %v4449, %v4554
      %v4573 = vadd.f32 %v4452, %v4557
      %v4574 = vadd.f32 %v4457, %v4562
      %v4575 = vadd.f32 %v4460, %v4565
      %v4576 = vmax.f32 %v4568, 0.0
      %v4577 = vmax.f32 %v4569, 0.0
      %v4578 = vmax.f32 %v4570, 0.0
      %v4579 = vmax.f32 %v4571, 0.0
      %v4580 = vmax.f32 %v4572, 0.0
      %v4581 = vmax.f32 %v4573, 0.0
      %v4582 = vmax.f32 %v4574, 0.0
      %v4583 = vmax.f32 %v4575, 0.0
      %v4584 = vadd.f32 %v4576, %v4577
      %v4585 = vadd.f32 %v4584, %v4578
      %v4586 = vadd.f32 %v4585, %v4579
      %v4587 = vadd.f32 %v4586, %v4580
      %v4588 = vadd.f32 %v4587, %v4581
      %v4589 = vadd.f32 %v4588, %v4582
      %v4590 = vadd.f32 %v4589, %v4583
      %v4591 = vrot.slane %v4590, 4
      %v4592 = vadd.f32 %v4590, %v4591
      %v4593 = vrot.slane %v4592, 2
      %v4594 = vadd.f32 %v4592, %v4593
      %v4595 = vrot.slane %v4594, 1
      %v4596 = vadd.f32 %v4594, %v4595
      %v4597 = vadd.f32 %v4282, %v4596
      %v4598 = vld [vmem:[%s3967 + $0x40] sm:$0xf]
      %v4599 = vld [vmem:[%s3967 + $0x44] sm:$0xf]
      %v4600 = vld [vmem:[%s3967 + $0x48] sm:$0xf]
      %v4601 = vld [vmem:[%s3967 + $0x4c] sm:$0xf]
      %v4602 = vld [vmem:[%s3967 + $0x50] sm:$0xf]
      %v4603 = vld [vmem:[%s3967 + $0x54] sm:$0xf]
      %v4604 = vld [vmem:[%s3967 + $0x58] sm:$0xf]
      %v4605 = vld [vmem:[%s3967 + $0x5c] sm:$0xf]
      %v4606 = vld [vmem:[%s3967 + $0x60] sm:$0xf]
      %v4607 = vld [vmem:[%s3967 + $0x64] sm:$0xf]
      %v4616 = vunpack.c.l.b16 %v4600
      %v4617 = vunpack.c.l.b16 %v4601
      %v4618 = vunpack.c.l.b16 %v4602
      %v4619 = vunpack.c.l.b16 %v4603
      %v4620 = vunpack.c.l.b16 %v4604
      %v4621 = vunpack.c.l.b16 %v4605
      %v4622 = vunpack.c.l.b16 %v4606
      %v4623 = vunpack.c.l.b16 %v4607
      %v4624 = vpack.c.b16 %v4617, %v4616
      %v4625 = vpack.c.b16 %v4619, %v4618
      %v4626 = vpack.c.b16 %v4621, %v4620
      %v4627 = vpack.c.b16 %v4623, %v4622
      %v4629 = vsel %vm188, %v4624, 0
      %v4632 = vsel %vm188, %v4625, 0
      %v4635 = vsel %vm188, %v4626, 0
      %v4638 = vsel %vm188, %v4627, 0
      %4640 = vmatprep.subr.bf16.mxu0 0
      %4641 = vmatpush1.bf16.msra.mxu0 0
      %4642 = vmatprep.subr.bf16.mxu0 0
      %4643 = vmatpush1.bf16.msra.mxu0 0
      %4644 = vmatprep.subr.bf16.mxu0 0
      %4645 = vmatpush1.bf16.msra.mxu0 0
      %4646 = vmatprep.subr.bf16.mxu0 0
      %4647 = vmatpush1.bf16.msra.mxu0 0
      %4648 = vmatprep.subr.bf16.mxu0 0
      %4649 = vmatpush1.bf16.msra.mxu0 0
      %4650 = vmatprep.subr.bf16.mxu0 0
      %4651 = vmatpush1.bf16.msra.mxu0 0
      %4652 = vmatprep.subr.bf16.mxu0 0
      %4653 = vmatpush1.bf16.msra.mxu0 0
      %4654 = vmatprep.subr.bf16.mxu0 0
      %4655 = vmatpush1.bf16.msra.mxu0 %v206
      %4656 = vmatprep.subr.bf16.mxu0 0
      %4657 = vmatpush2.bf16.msra.mxu0 0
      %4658 = vmatprep.subr.bf16.mxu0 0
      %4659 = vmatpush2.bf16.msra.mxu0 0
      %4660 = vmatprep.subr.bf16.mxu0 0
      %4661 = vmatpush2.bf16.msra.mxu0 0
      %4662 = vmatprep.subr.bf16.mxu0 0
      %4663 = vmatpush2.bf16.msra.mxu0 0
      %4664 = vmatprep.subr.bf16.mxu0 0
      %4665 = vmatpush2.bf16.msra.mxu0 0
      %4666 = vmatprep.subr.bf16.mxu0 0
      %4667 = vmatpush2.bf16.msra.mxu0 0
      %4668 = vmatprep.subr.bf16.mxu0 0
      %4669 = vmatpush2.bf16.msra.mxu0 0
      %4670 = vmatprep.subr.bf16.mxu0 0
      %4671 = vmatpush2.bf16.msra.mxu0 0
      %4672 = vmatprep.mubr.bf16.mxu0 0
      %4673 = vmatmul.mubr.bf16.gmra.mxu0 %v4629
      %v4674 = vpop.f32.mrf.mxu0
      %v4675 = vadd.f32 0.0, %v4674
      %v4676 = vpop.f32.mrf.mxu0
      %v4677 = vpop.f32.mrf.mxu0
      %v4678 = vadd.f32 0.0, %v4677
      %v4679 = vpop.f32.mrf.mxu0
      %4680 = vmatprep.mubr.bf16.mxu0 0
      %4681 = vmatmul.mubr.bf16.gmra.mxu0 %v4632
      %v4682 = vpop.f32.mrf.mxu0
      %v4683 = vadd.f32 0.0, %v4682
      %v4684 = vpop.f32.mrf.mxu0
      %v4685 = vpop.f32.mrf.mxu0
      %v4686 = vadd.f32 0.0, %v4685
      %v4687 = vpop.f32.mrf.mxu0
      %4688 = vmatprep.mubr.bf16.mxu0 0
      %4689 = vmatmul.mubr.bf16.gmra.mxu0 %v4635
      %v4690 = vpop.f32.mrf.mxu0
      %v4691 = vadd.f32 0.0, %v4690
      %v4692 = vpop.f32.mrf.mxu0
      %v4693 = vpop.f32.mrf.mxu0
      %v4694 = vadd.f32 0.0, %v4693
      %v4695 = vpop.f32.mrf.mxu0
      %4696 = vmatprep.mubr.bf16.mxu0 0
      %4697 = vmatmul.mubr.bf16.gmra.mxu0 %v4638
      %v4698 = vpop.f32.mrf.mxu0
      %v4699 = vadd.f32 0.0, %v4698
      %v4700 = vpop.f32.mrf.mxu0
      %v4701 = vpop.f32.mrf.mxu0
      %v4702 = vadd.f32 0.0, %v4701
      %v4703 = vpop.f32.mrf.mxu0
      %4704 = vdwg.mxu0
      %v4707 = vunpack.c.l.b16 %v4598
      %v4708 = vunpack.c.l.b16 %v4599
      %v4709 = vpack.c.b16 %v4708, %v4707
      %v4711 = vsel %vm188, %v4709, 0
      %4713 = vmatprep.subr.bf16.mxu0 0
      %4714 = vmatpush1.bf16.msra.mxu0 0
      %4715 = vmatprep.subr.bf16.mxu0 0
      %4716 = vmatpush1.bf16.msra.mxu0 0
      %4717 = vmatprep.subr.bf16.mxu0 0
      %4718 = vmatpush1.bf16.msra.mxu0 0
      %4719 = vmatprep.subr.bf16.mxu0 0
      %4720 = vmatpush1.bf16.msra.mxu0 0
      %4721 = vmatprep.subr.bf16.mxu0 0
      %4722 = vmatpush1.bf16.msra.mxu0 0
      %4723 = vmatprep.subr.bf16.mxu0 0
      %4724 = vmatpush1.bf16.msra.mxu0 0
      %4725 = vmatprep.subr.bf16.mxu0 0
      %4726 = vmatpush1.bf16.msra.mxu0 0
      %4727 = vmatprep.subr.bf16.mxu0 0
      %4728 = vmatpush1.bf16.msra.mxu0 %v287
      %4729 = vmatprep.subr.bf16.mxu0 0
      %4730 = vmatpush2.bf16.msra.mxu0 0
      %4731 = vmatprep.subr.bf16.mxu0 0
      %4732 = vmatpush2.bf16.msra.mxu0 0
      %4733 = vmatprep.subr.bf16.mxu0 0
      %4734 = vmatpush2.bf16.msra.mxu0 0
      %4735 = vmatprep.subr.bf16.mxu0 0
      %4736 = vmatpush2.bf16.msra.mxu0 0
      %4737 = vmatprep.subr.bf16.mxu0 0
      %4738 = vmatpush2.bf16.msra.mxu0 0
      %4739 = vmatprep.subr.bf16.mxu0 0
      %4740 = vmatpush2.bf16.msra.mxu0 0
      %4741 = vmatprep.subr.bf16.mxu0 0
      %4742 = vmatpush2.bf16.msra.mxu0 0
      %4743 = vmatprep.subr.bf16.mxu0 0
      %4744 = vmatpush2.bf16.msra.mxu0 0
      %4745 = vmatprep.mubr.bf16.mxu0 0
      %4746 = vmatmul.mubr.bf16.gmra.mxu0 %v4711
      %v4747 = vpop.f32.mrf.mxu0
      %v4748 = vadd.f32 %v4675, %v4747
      %v4749 = vpop.f32.mrf.mxu0
      %v4750 = vpop.f32.mrf.mxu0
      %v4751 = vadd.f32 %v4678, %v4750
      %v4752 = vpop.f32.mrf.mxu0
      %4753 = vmatprep.mubr.bf16.mxu0 0
      %4754 = vmatmul.mubr.bf16.gmra.mxu0 %v4629
      %v4755 = vpop.f32.mrf.mxu0
      %v4756 = vadd.f32 %v4683, %v4755
      %v4757 = vpop.f32.mrf.mxu0
      %v4758 = vpop.f32.mrf.mxu0
      %v4759 = vadd.f32 %v4686, %v4758
      %v4760 = vpop.f32.mrf.mxu0
      %4761 = vmatprep.mubr.bf16.mxu0 0
      %4762 = vmatmul.mubr.bf16.gmra.mxu0 %v4632
      %v4763 = vpop.f32.mrf.mxu0
      %v4764 = vadd.f32 %v4691, %v4763
      %v4765 = vpop.f32.mrf.mxu0
      %v4766 = vpop.f32.mrf.mxu0
      %v4767 = vadd.f32 %v4694, %v4766
      %v4768 = vpop.f32.mrf.mxu0
      %4769 = vmatprep.mubr.bf16.mxu0 0
      %4770 = vmatmul.mubr.bf16.gmra.mxu0 %v4635
      %v4771 = vpop.f32.mrf.mxu0
      %v4772 = vadd.f32 %v4699, %v4771
      %v4773 = vpop.f32.mrf.mxu0
      %v4774 = vpop.f32.mrf.mxu0
      %v4775 = vadd.f32 %v4702, %v4774
      %v4776 = vpop.f32.mrf.mxu0
      %4777 = vdwg.mxu0
      %v4778 = vld [vmem:[%s3967 + $0x50] sm:$0xf]
      %v4779 = vld [vmem:[%s3967 + $0x54] sm:$0xf]
      %v4780 = vld [vmem:[%s3967 + $0x58] sm:$0xf]
      %v4781 = vld [vmem:[%s3967 + $0x5c] sm:$0xf]
      %v4782 = vld [vmem:[%s3967 + $0x60] sm:$0xf]
      %v4783 = vld [vmem:[%s3967 + $0x64] sm:$0xf]
      %v4784 = vld [vmem:[%s3967 + $0x68] sm:$0xf]
      %v4785 = vld [vmem:[%s3967 + $0x6c] sm:$0xf]
      %v4794 = vunpack.c.l.b16 %v4778
      %v4795 = vunpack.c.l.b16 %v4779
      %v4796 = vunpack.c.l.b16 %v4780
      %v4797 = vunpack.c.l.b16 %v4781
      %v4798 = vunpack.c.l.b16 %v4782
      %v4799 = vunpack.c.l.b16 %v4783
      %v4800 = vunpack.c.l.b16 %v4784
      %v4801 = vunpack.c.l.b16 %v4785
      %v4802 = vpack.c.b16 %v4795, %v4794
      %v4803 = vpack.c.b16 %v4797, %v4796
      %v4804 = vpack.c.b16 %v4799, %v4798
      %v4805 = vpack.c.b16 %v4801, %v4800
      %v4807 = vsel %vm188, %v4802, 0
      %v4810 = vsel %vm188, %v4803, 0
      %v4813 = vsel %vm188, %v4804, 0
      %v4816 = vsel %vm188, %v4805, 0
      %4818 = vmatprep.subr.bf16.mxu0 0
      %4819 = vmatpush1.bf16.msra.mxu0 0
      %4820 = vmatprep.subr.bf16.mxu0 0
      %4821 = vmatpush1.bf16.msra.mxu0 0
      %4822 = vmatprep.subr.bf16.mxu0 0
      %4823 = vmatpush1.bf16.msra.mxu0 0
      %4824 = vmatprep.subr.bf16.mxu0 0
      %4825 = vmatpush1.bf16.msra.mxu0 0
      %4826 = vmatprep.subr.bf16.mxu0 0
      %4827 = vmatpush1.bf16.msra.mxu0 0
      %4828 = vmatprep.subr.bf16.mxu0 0
      %4829 = vmatpush1.bf16.msra.mxu0 0
      %4830 = vmatprep.subr.bf16.mxu0 0
      %4831 = vmatpush1.bf16.msra.mxu0 0
      %4832 = vmatprep.subr.bf16.mxu0 0
      %4833 = vmatpush1.bf16.msra.mxu0 %v403
      %4834 = vmatprep.subr.bf16.mxu0 0
      %4835 = vmatpush2.bf16.msra.mxu0 0
      %4836 = vmatprep.subr.bf16.mxu0 0
      %4837 = vmatpush2.bf16.msra.mxu0 0
      %4838 = vmatprep.subr.bf16.mxu0 0
      %4839 = vmatpush2.bf16.msra.mxu0 0
      %4840 = vmatprep.subr.bf16.mxu0 0
      %4841 = vmatpush2.bf16.msra.mxu0 0
      %4842 = vmatprep.subr.bf16.mxu0 0
      %4843 = vmatpush2.bf16.msra.mxu0 0
      %4844 = vmatprep.subr.bf16.mxu0 0
      %4845 = vmatpush2.bf16.msra.mxu0 0
      %4846 = vmatprep.subr.bf16.mxu0 0
      %4847 = vmatpush2.bf16.msra.mxu0 0
      %4848 = vmatprep.subr.bf16.mxu0 0
      %4849 = vmatpush2.bf16.msra.mxu0 0
      %4850 = vmatprep.mubr.bf16.mxu0 0
      %4851 = vmatmul.mubr.bf16.gmra.mxu0 %v4807
      %v4852 = vpop.f32.mrf.mxu0
      %v4853 = vadd.f32 0.0, %v4852
      %v4854 = vpop.f32.mrf.mxu0
      %v4855 = vpop.f32.mrf.mxu0
      %v4856 = vadd.f32 0.0, %v4855
      %v4857 = vpop.f32.mrf.mxu0
      %4858 = vmatprep.mubr.bf16.mxu0 0
      %4859 = vmatmul.mubr.bf16.gmra.mxu0 %v4810
      %v4860 = vpop.f32.mrf.mxu0
      %v4861 = vadd.f32 0.0, %v4860
      %v4862 = vpop.f32.mrf.mxu0
      %v4863 = vpop.f32.mrf.mxu0
      %v4864 = vadd.f32 0.0, %v4863
      %v4865 = vpop.f32.mrf.mxu0
      %4866 = vmatprep.mubr.bf16.mxu0 0
      %4867 = vmatmul.mubr.bf16.gmra.mxu0 %v4813
      %v4868 = vpop.f32.mrf.mxu0
      %v4869 = vadd.f32 0.0, %v4868
      %v4870 = vpop.f32.mrf.mxu0
      %v4871 = vpop.f32.mrf.mxu0
      %v4872 = vadd.f32 0.0, %v4871
      %v4873 = vpop.f32.mrf.mxu0
      %4874 = vmatprep.mubr.bf16.mxu0 0
      %4875 = vmatmul.mubr.bf16.gmra.mxu0 %v4816
      %v4876 = vpop.f32.mrf.mxu0
      %v4877 = vadd.f32 0.0, %v4876
      %v4878 = vpop.f32.mrf.mxu0
      %v4879 = vpop.f32.mrf.mxu0
      %v4880 = vadd.f32 0.0, %v4879
      %v4881 = vpop.f32.mrf.mxu0
      %4882 = vdwg.mxu0
      %v4883 = vadd.f32 %v4748, %v4853
      %v4884 = vadd.f32 %v4751, %v4856
      %v4885 = vadd.f32 %v4756, %v4861
      %v4886 = vadd.f32 %v4759, %v4864
      %v4887 = vadd.f32 %v4764, %v4869
      %v4888 = vadd.f32 %v4767, %v4872
      %v4889 = vadd.f32 %v4772, %v4877
      %v4890 = vadd.f32 %v4775, %v4880
      %v4891 = vmax.f32 %v4883, 0.0
      %v4892 = vmax.f32 %v4884, 0.0
      %v4893 = vmax.f32 %v4885, 0.0
      %v4894 = vmax.f32 %v4886, 0.0
      %v4895 = vmax.f32 %v4887, 0.0
      %v4896 = vmax.f32 %v4888, 0.0
      %v4897 = vmax.f32 %v4889, 0.0
      %v4898 = vmax.f32 %v4890, 0.0
      %v4899 = vadd.f32 %v4891, %v4892
      %v4900 = vadd.f32 %v4899, %v4893
      %v4901 = vadd.f32 %v4900, %v4894
      %v4902 = vadd.f32 %v4901, %v4895
      %v4903 = vadd.f32 %v4902, %v4896
      %v4904 = vadd.f32 %v4903, %v4897
      %v4905 = vadd.f32 %v4904, %v4898
      %v4906 = vrot.slane %v4905, 4
      %v4907 = vadd.f32 %v4905, %v4906
      %v4908 = vrot.slane %v4907, 2
      %v4909 = vadd.f32 %v4907, %v4908
      %v4910 = vrot.slane %v4909, 1
      %v4911 = vadd.f32 %v4909, %v4910
      %v4912 = vadd.f32 %v4597, %v4911
      %v4913 = vld [vmem:[%s3967 + $0x60] sm:$0xf]
      %v4914 = vld [vmem:[%s3967 + $0x64] sm:$0xf]
      %v4915 = vld [vmem:[%s3967 + $0x68] sm:$0xf]
      %v4916 = vld [vmem:[%s3967 + $0x6c] sm:$0xf]
      %v4917 = vld [vmem:[%s3967 + $0x70] sm:$0xf]
      %v4918 = vld [vmem:[%s3967 + $0x74] sm:$0xf]
      %v4919 = vld [vmem:[%s3967 + $0x78] sm:$0xf]
      %v4920 = vld [vmem:[%s3967 + $0x7c] sm:$0xf]
      %v4921 = vld [vmem:[%s3967 + $0x80] sm:$0xf]
      %v4922 = vld [vmem:[%s3967 + $0x84] sm:$0xf]
      %v4931 = vunpack.c.l.b16 %v4915
      %v4932 = vunpack.c.l.b16 %v4916
      %v4933 = vunpack.c.l.b16 %v4917
      %v4934 = vunpack.c.l.b16 %v4918
      %v4935 = vunpack.c.l.b16 %v4919
      %v4936 = vunpack.c.l.b16 %v4920
      %v4937 = vunpack.c.l.b16 %v4921
      %v4938 = vunpack.c.l.b16 %v4922
      %v4939 = vpack.c.b16 %v4932, %v4931
      %v4940 = vpack.c.b16 %v4934, %v4933
      %v4941 = vpack.c.b16 %v4936, %v4935
      %v4942 = vpack.c.b16 %v4938, %v4937
      %v4944 = vsel %vm188, %v4939, 0
      %v4947 = vsel %vm188, %v4940, 0
      %v4950 = vsel %vm188, %v4941, 0
      %v4953 = vsel %vm188, %v4942, 0
      %4955 = vmatprep.subr.bf16.mxu0 0
      %4956 = vmatpush1.bf16.msra.mxu0 0
      %4957 = vmatprep.subr.bf16.mxu0 0
      %4958 = vmatpush1.bf16.msra.mxu0 0
      %4959 = vmatprep.subr.bf16.mxu0 0
      %4960 = vmatpush1.bf16.msra.mxu0 0
      %4961 = vmatprep.subr.bf16.mxu0 0
      %4962 = vmatpush1.bf16.msra.mxu0 0
      %4963 = vmatprep.subr.bf16.mxu0 0
      %4964 = vmatpush1.bf16.msra.mxu0 0
      %4965 = vmatprep.subr.bf16.mxu0 0
      %4966 = vmatpush1.bf16.msra.mxu0 0
      %4967 = vmatprep.subr.bf16.mxu0 0
      %4968 = vmatpush1.bf16.msra.mxu0 0
      %4969 = vmatprep.subr.bf16.mxu0 0
      %4970 = vmatpush1.bf16.msra.mxu0 %v206
      %4971 = vmatprep.subr.bf16.mxu0 0
      %4972 = vmatpush2.bf16.msra.mxu0 0
      %4973 = vmatprep.subr.bf16.mxu0 0
      %4974 = vmatpush2.bf16.msra.mxu0 0
      %4975 = vmatprep.subr.bf16.mxu0 0
      %4976 = vmatpush2.bf16.msra.mxu0 0
      %4977 = vmatprep.subr.bf16.mxu0 0
      %4978 = vmatpush2.bf16.msra.mxu0 0
      %4979 = vmatprep.subr.bf16.mxu0 0
      %4980 = vmatpush2.bf16.msra.mxu0 0
      %4981 = vmatprep.subr.bf16.mxu0 0
      %4982 = vmatpush2.bf16.msra.mxu0 0
      %4983 = vmatprep.subr.bf16.mxu0 0
      %4984 = vmatpush2.bf16.msra.mxu0 0
      %4985 = vmatprep.subr.bf16.mxu0 0
      %4986 = vmatpush2.bf16.msra.mxu0 0
      %4987 = vmatprep.mubr.bf16.mxu0 0
      %4988 = vmatmul.mubr.bf16.gmra.mxu0 %v4944
      %v4989 = vpop.f32.mrf.mxu0
      %v4990 = vadd.f32 0.0, %v4989
      %v4991 = vpop.f32.mrf.mxu0
      %v4992 = vpop.f32.mrf.mxu0
      %v4993 = vadd.f32 0.0, %v4992
      %v4994 = vpop.f32.mrf.mxu0
      %4995 = vmatprep.mubr.bf16.mxu0 0
      %4996 = vmatmul.mubr.bf16.gmra.mxu0 %v4947
      %v4997 = vpop.f32.mrf.mxu0
      %v4998 = vadd.f32 0.0, %v4997
      %v4999 = vpop.f32.mrf.mxu0
      %v5000 = vpop.f32.mrf.mxu0
      %v5001 = vadd.f32 0.0, %v5000
      %v5002 = vpop.f32.mrf.mxu0
      %5003 = vmatprep.mubr.bf16.mxu0 0
      %5004 = vmatmul.mubr.bf16.gmra.mxu0 %v4950
      %v5005 = vpop.f32.mrf.mxu0
      %v5006 = vadd.f32 0.0, %v5005
      %v5007 = vpop.f32.mrf.mxu0
      %v5008 = vpop.f32.mrf.mxu0
      %v5009 = vadd.f32 0.0, %v5008
      %v5010 = vpop.f32.mrf.mxu0
      %5011 = vmatprep.mubr.bf16.mxu0 0
      %5012 = vmatmul.mubr.bf16.gmra.mxu0 %v4953
      %v5013 = vpop.f32.mrf.mxu0
      %v5014 = vadd.f32 0.0, %v5013
      %v5015 = vpop.f32.mrf.mxu0
      %v5016 = vpop.f32.mrf.mxu0
      %v5017 = vadd.f32 0.0, %v5016
      %v5018 = vpop.f32.mrf.mxu0
      %5019 = vdwg.mxu0
      %v5022 = vunpack.c.l.b16 %v4913
      %v5023 = vunpack.c.l.b16 %v4914
      %v5024 = vpack.c.b16 %v5023, %v5022
      %v5026 = vsel %vm188, %v5024, 0
      %5028 = vmatprep.subr.bf16.mxu0 0
      %5029 = vmatpush1.bf16.msra.mxu0 0
      %5030 = vmatprep.subr.bf16.mxu0 0
      %5031 = vmatpush1.bf16.msra.mxu0 0
      %5032 = vmatprep.subr.bf16.mxu0 0
      %5033 = vmatpush1.bf16.msra.mxu0 0
      %5034 = vmatprep.subr.bf16.mxu0 0
      %5035 = vmatpush1.bf16.msra.mxu0 0
      %5036 = vmatprep.subr.bf16.mxu0 0
      %5037 = vmatpush1.bf16.msra.mxu0 0
      %5038 = vmatprep.subr.bf16.mxu0 0
      %5039 = vmatpush1.bf16.msra.mxu0 0
      %5040 = vmatprep.subr.bf16.mxu0 0
      %5041 = vmatpush1.bf16.msra.mxu0 0
      %5042 = vmatprep.subr.bf16.mxu0 0
      %5043 = vmatpush1.bf16.msra.mxu0 %v287
      %5044 = vmatprep.subr.bf16.mxu0 0
      %5045 = vmatpush2.bf16.msra.mxu0 0
      %5046 = vmatprep.subr.bf16.mxu0 0
      %5047 = vmatpush2.bf16.msra.mxu0 0
      %5048 = vmatprep.subr.bf16.mxu0 0
      %5049 = vmatpush2.bf16.msra.mxu0 0
      %5050 = vmatprep.subr.bf16.mxu0 0
      %5051 = vmatpush2.bf16.msra.mxu0 0
      %5052 = vmatprep.subr.bf16.mxu0 0
      %5053 = vmatpush2.bf16.msra.mxu0 0
      %5054 = vmatprep.subr.bf16.mxu0 0
      %5055 = vmatpush2.bf16.msra.mxu0 0
      %5056 = vmatprep.subr.bf16.mxu0 0
      %5057 = vmatpush2.bf16.msra.mxu0 0
      %5058 = vmatprep.subr.bf16.mxu0 0
      %5059 = vmatpush2.bf16.msra.mxu0 0
      %5060 = vmatprep.mubr.bf16.mxu0 0
      %5061 = vmatmul.mubr.bf16.gmra.mxu0 %v5026
      %v5062 = vpop.f32.mrf.mxu0
      %v5063 = vadd.f32 %v4990, %v5062
      %v5064 = vpop.f32.mrf.mxu0
      %v5065 = vpop.f32.mrf.mxu0
      %v5066 = vadd.f32 %v4993, %v5065
      %v5067 = vpop.f32.mrf.mxu0
      %5068 = vmatprep.mubr.bf16.mxu0 0
      %5069 = vmatmul.mubr.bf16.gmra.mxu0 %v4944
      %v5070 = vpop.f32.mrf.mxu0
      %v5071 = vadd.f32 %v4998, %v5070
      %v5072 = vpop.f32.mrf.mxu0
      %v5073 = vpop.f32.mrf.mxu0
      %v5074 = vadd.f32 %v5001, %v5073
      %v5075 = vpop.f32.mrf.mxu0
      %5076 = vmatprep.mubr.bf16.mxu0 0
      %5077 = vmatmul.mubr.bf16.gmra.mxu0 %v4947
      %v5078 = vpop.f32.mrf.mxu0
      %v5079 = vadd.f32 %v5006, %v5078
      %v5080 = vpop.f32.mrf.mxu0
      %v5081 = vpop.f32.mrf.mxu0
      %v5082 = vadd.f32 %v5009, %v5081
      %v5083 = vpop.f32.mrf.mxu0
      %5084 = vmatprep.mubr.bf16.mxu0 0
      %5085 = vmatmul.mubr.bf16.gmra.mxu0 %v4950
      %v5086 = vpop.f32.mrf.mxu0
      %v5087 = vadd.f32 %v5014, %v5086
      %v5088 = vpop.f32.mrf.mxu0
      %v5089 = vpop.f32.mrf.mxu0
      %v5090 = vadd.f32 %v5017, %v5089
      %v5091 = vpop.f32.mrf.mxu0
      %5092 = vdwg.mxu0
      %v5093 = vld [vmem:[%s3967 + $0x70] sm:$0xf]
      %v5094 = vld [vmem:[%s3967 + $0x74] sm:$0xf]
      %v5095 = vld [vmem:[%s3967 + $0x78] sm:$0xf]
      %v5096 = vld [vmem:[%s3967 + $0x7c] sm:$0xf]
      %v5097 = vld [vmem:[%s3967 + $0x80] sm:$0xf]
      %v5098 = vld [vmem:[%s3967 + $0x84] sm:$0xf]
      %v5099 = vld [vmem:[%s3967 + $0x88] sm:$0xf]
      %v5100 = vld [vmem:[%s3967 + $0x8c] sm:$0xf]
      %v5109 = vunpack.c.l.b16 %v5093
      %v5110 = vunpack.c.l.b16 %v5094
      %v5111 = vunpack.c.l.b16 %v5095
      %v5112 = vunpack.c.l.b16 %v5096
      %v5113 = vunpack.c.l.b16 %v5097
      %v5114 = vunpack.c.l.b16 %v5098
      %v5115 = vunpack.c.l.b16 %v5099
      %v5116 = vunpack.c.l.b16 %v5100
      %v5117 = vpack.c.b16 %v5110, %v5109
      %v5118 = vpack.c.b16 %v5112, %v5111
      %v5119 = vpack.c.b16 %v5114, %v5113
      %v5120 = vpack.c.b16 %v5116, %v5115
      %v5122 = vsel %vm188, %v5117, 0
      %v5125 = vsel %vm188, %v5118, 0
      %v5128 = vsel %vm188, %v5119, 0
      %v5131 = vsel %vm188, %v5120, 0
      %5133 = vmatprep.subr.bf16.mxu0 0
      %5134 = vmatpush1.bf16.msra.mxu0 0
      %5135 = vmatprep.subr.bf16.mxu0 0
      %5136 = vmatpush1.bf16.msra.mxu0 0
      %5137 = vmatprep.subr.bf16.mxu0 0
      %5138 = vmatpush1.bf16.msra.mxu0 0
      %5139 = vmatprep.subr.bf16.mxu0 0
      %5140 = vmatpush1.bf16.msra.mxu0 0
      %5141 = vmatprep.subr.bf16.mxu0 0
      %5142 = vmatpush1.bf16.msra.mxu0 0
      %5143 = vmatprep.subr.bf16.mxu0 0
      %5144 = vmatpush1.bf16.msra.mxu0 0
      %5145 = vmatprep.subr.bf16.mxu0 0
      %5146 = vmatpush1.bf16.msra.mxu0 0
      %5147 = vmatprep.subr.bf16.mxu0 0
      %5148 = vmatpush1.bf16.msra.mxu0 %v403
      %5149 = vmatprep.subr.bf16.mxu0 0
      %5150 = vmatpush2.bf16.msra.mxu0 0
      %5151 = vmatprep.subr.bf16.mxu0 0
      %5152 = vmatpush2.bf16.msra.mxu0 0
      %5153 = vmatprep.subr.bf16.mxu0 0
      %5154 = vmatpush2.bf16.msra.mxu0 0
      %5155 = vmatprep.subr.bf16.mxu0 0
      %5156 = vmatpush2.bf16.msra.mxu0 0
      %5157 = vmatprep.subr.bf16.mxu0 0
      %5158 = vmatpush2.bf16.msra.mxu0 0
      %5159 = vmatprep.subr.bf16.mxu0 0
      %5160 = vmatpush2.bf16.msra.mxu0 0
      %5161 = vmatprep.subr.bf16.mxu0 0
      %5162 = vmatpush2.bf16.msra.mxu0 0
      %5163 = vmatprep.subr.bf16.mxu0 0
      %5164 = vmatpush2.bf16.msra.mxu0 0
      %5165 = vmatprep.mubr.bf16.mxu0 0
      %5166 = vmatmul.mubr.bf16.gmra.mxu0 %v5122
      %v5167 = vpop.f32.mrf.mxu0
      %v5168 = vadd.f32 0.0, %v5167
      %v5169 = vpop.f32.mrf.mxu0
      %v5170 = vpop.f32.mrf.mxu0
      %v5171 = vadd.f32 0.0, %v5170
      %v5172 = vpop.f32.mrf.mxu0
      %5173 = vmatprep.mubr.bf16.mxu0 0
      %5174 = vmatmul.mubr.bf16.gmra.mxu0 %v5125
      %v5175 = vpop.f32.mrf.mxu0
      %v5176 = vadd.f32 0.0, %v5175
      %v5177 = vpop.f32.mrf.mxu0
      %v5178 = vpop.f32.mrf.mxu0
      %v5179 = vadd.f32 0.0, %v5178
      %v5180 = vpop.f32.mrf.mxu0
      %5181 = vmatprep.mubr.bf16.mxu0 0
      %5182 = vmatmul.mubr.bf16.gmra.mxu0 %v5128
      %v5183 = vpop.f32.mrf.mxu0
      %v5184 = vadd.f32 0.0, %v5183
      %v5185 = vpop.f32.mrf.mxu0
      %v5186 = vpop.f32.mrf.mxu0
      %v5187 = vadd.f32 0.0, %v5186
      %v5188 = vpop.f32.mrf.mxu0
      %5189 = vmatprep.mubr.bf16.mxu0 0
      %5190 = vmatmul.mubr.bf16.gmra.mxu0 %v5131
      %v5191 = vpop.f32.mrf.mxu0
      %v5192 = vadd.f32 0.0, %v5191
      %v5193 = vpop.f32.mrf.mxu0
      %v5194 = vpop.f32.mrf.mxu0
      %v5195 = vadd.f32 0.0, %v5194
      %v5196 = vpop.f32.mrf.mxu0
      %5197 = vdwg.mxu0
      %v5198 = vadd.f32 %v5063, %v5168
      %v5199 = vadd.f32 %v5066, %v5171
      %v5200 = vadd.f32 %v5071, %v5176
      %v5201 = vadd.f32 %v5074, %v5179
      %v5202 = vadd.f32 %v5079, %v5184
      %v5203 = vadd.f32 %v5082, %v5187
      %v5204 = vadd.f32 %v5087, %v5192
      %v5205 = vadd.f32 %v5090, %v5195
      %v5206 = vmax.f32 %v5198, 0.0
      %v5207 = vmax.f32 %v5199, 0.0
      %v5208 = vmax.f32 %v5200, 0.0
      %v5209 = vmax.f32 %v5201, 0.0
      %v5210 = vmax.f32 %v5202, 0.0
      %v5211 = vmax.f32 %v5203, 0.0
      %v5212 = vmax.f32 %v5204, 0.0
      %v5213 = vmax.f32 %v5205, 0.0
      %v5214 = vadd.f32 %v5206, %v5207
      %v5215 = vadd.f32 %v5214, %v5208
      %v5216 = vadd.f32 %v5215, %v5209
      %v5217 = vadd.f32 %v5216, %v5210
      %v5218 = vadd.f32 %v5217, %v5211
      %v5219 = vadd.f32 %v5218, %v5212
      %v5220 = vadd.f32 %v5219, %v5213
      %v5221 = vrot.slane %v5220, 4
      %v5222 = vadd.f32 %v5220, %v5221
      %v5223 = vrot.slane %v5222, 2
      %v5224 = vadd.f32 %v5222, %v5223
      %v5225 = vrot.slane %v5224, 1
      %v5226 = vadd.f32 %v5224, %v5225
      %v5227 = vadd.f32 %v4912, %v5226
      %vm5228 = vcmask 1040384
      %v5229 = vsel %vm5228, %v1444, %v2705
      %vm5230 = vcmask 1041408
      %v5231 = vsel %vm5230, %v5229, %v3966
      %vm5232 = vcmask 1042432
      %v5233 = vsel %vm5232, %v5231, %v5227
      %v5234 = vmul.f32 %v5233, 0.00390625
      %5235 = vst [vmem:[%s146] sm:$0xf] %v5234
      %p5236 = scmp.lt.s32.totalorder %s13, 1
      %s5237 = scalar_select %p5236, %s13, 1
      %s5238 = smul.addr %s5237, 4
      %s5239 = scalar_lea.vmem %s2, %s5238
      // Predicated region
      $region29: #{_lambda_.2} parent=27 // pred_check
        %p5240 = pneg %p78
      $region30: #{_lambda_.2} parent=27 // pred_check_branch
        %5242 = sbr.rel (%p5240) target = $region32
      $region31: #{_lambda_.2} parent=27 // pred_region
        _
      $region32: #{_lambda_.2} parent=27 // pred_fallthru
        _
    $region28: #{_lambda_.2} parent=5 // pred_fallthru
      _
    %p5243 = scmp.le.s32.totalorder 2, %s8
    // Predicated region
    $region33: #{_lambda_.2} parent=5 // pred_check
      %p5244 = pneg %p5243
    $region34: #{_lambda_.2} parent=5 // pred_check_branch
      %5246 = sbr.rel (%p5244) target = $region36
    $region35: #{_lambda_.2} parent=5 // pred_region
      %s5247 = ssub.s32 %s8, 2
      // Predicated region
      $region37: #{_lambda_.2} parent=35 // pred_check
        %p5248 = pneg %p84
      $region38: #{_lambda_.2} parent=35 // pred_check_branch
        %5250 = sbr.rel (%p5248) target = $region40
      $region39: #{_lambda_.2} parent=35 // pred_region
        %p5251 = scmp.lt.s32.totalorder %s14, 1
        %s5252 = scalar_select %p5251, %s14, 1
        %s5253 = smul.addr %s5252, 4
        %s5254 = scalar_lea.vmem %s2, %s5253
      $region40: #{_lambda_.2} parent=35 // pred_fallthru
        _
    $region36: #{_lambda_.2} parent=5 // pred_fallthru
      _
  $region6: #{_lambda_.2} parent=0 // loop_footer
    %s12 = sadd.s32 1, %s8
  $region7: #{_lambda_.2} parent=0 // loop_footer_branch
    %7 = sbr.rel target = $region3
  $region8: #{_lambda_.2} parent=0 // loop_exit
    _

</llo_original>
